<compile_context>
chip_gen: v7x
topology: tpu7x:2x2x1
jax: 0.10.0
libtpu: 0.0.40
codegen_flags: <defaults>
</compile_context>

<pallas_src>
import jax
import jax.numpy as jnp
import numpy as np
from jax import lax
from jax.experimental import pallas as pl
from jax.experimental.pallas import tpu as pltpu

EPS = 1e-5


# ------------------------- fused forward kernel -------------------------

def fused_net_kernel(x_ref, w1_ref, w2_ref, fw1_ref, fw2_ref, small_ref,
                     S_ref, T_ref, A1_ref, A2_ref, out_ref):
    f32 = jnp.float32
    B = x_ref.shape[0]

    sm = small_ref[...]                                   # (8, 128) packed vectors
    b1e, g1e, be1e = sm[0:1, 0:120], sm[1:2, 0:120], sm[2:3, 0:120]
    b2e, g2e, be2e = sm[3:4, 0:80], sm[4:5, 0:80], sm[5:6, 0:80]
    fb1, fb2 = sm[6:7, 0:50], sm[7:8, 0:10]

    # ---------------- conv1: 5 accumulated MXU matmuls, K=28, lane-dense N=240 ----------------
    # Output lanes ordered (s, co, j) with conv column w = 2*j + s, so the column half of the
    # 2x2 max-pool is a free max of two contiguous 120-lane slabs.
    x = x_ref[...]                                                      # (B, 28, 28)
    c1 = jnp.dot(x[:, 0:24, :].reshape(B * 24, 28), w1_ref[0],
                 preferred_element_type=f32)                            # (B*24, 240), rows (b, h)
    for dy in range(1, 5):
        c1 = c1 + jnp.dot(x[:, dy:dy + 24, :].reshape(B * 24, 28), w1_ref[dy],
                          preferred_element_type=f32)

    # 2x2 max-pool: columns = lane-slab max, rows = tiny 0/1 selection matmuls (no strided ops).
    cp1 = jnp.maximum(c1[:, 0:120], c1[:, 120:240])                     # (B*24, 120), lanes (co, j)
    S0, S1 = S_ref[0], S_ref[1]                                         # (B*16, B*24)
    p1 = jnp.maximum(jnp.dot(S0, cp1, preferred_element_type=f32),
                     jnp.dot(S1, cp1, preferred_element_type=f32))      # (B*16, 120); rows i>=12 are pad
    p1 = jnp.maximum(p1 + b1e, 0.0)                                     # conv bias + ReLU

    # ---------------- bn1: training-mode batch stats, single pass (E[x^2] - mean^2) ----------------
    rmask = jnp.sum(S0, axis=1, keepdims=True)                          # (B*16, 1): 1 on the 12 valid rows
    xm = p1 * rmask
    n1 = B * 144.0                                                      # per-channel element count
    mean1 = jnp.dot(jnp.sum(xm, axis=0, keepdims=True), A1_ref[...],
                    preferred_element_type=f32) / n1
    ex1 = jnp.dot(jnp.sum(xm * xm, axis=0, keepdims=True), A1_ref[...],
                  preferred_element_type=f32) / n1
    var1 = ex1 - mean1 * mean1
    p1 = (p1 - mean1) * lax.rsqrt(var1 + EPS) * g1e + be1e

    # ---------------- conv2: 5 accumulated MXU matmuls, K=120, lanes (s, co2, k) ----------------
    p1 = p1.reshape(B, 16, 120)                                         # aligned split (16 % 8 == 0)
    c2 = jnp.dot(p1[:, 0:8, :].reshape(B * 8, 120), w2_ref[0],
                 preferred_element_type=f32)                            # (B*8, 160), rows (b, h2)
    for dy in range(1, 5):
        c2 = c2 + jnp.dot(p1[:, dy:dy + 8, :].reshape(B * 8, 120), w2_ref[dy],
                          preferred_element_type=f32)

    cp2 = jnp.maximum(c2[:, 0:80], c2[:, 80:160])                       # (B*8, 80), lanes (co2, k)
    T0, T1 = T_ref[0], T_ref[1]                                         # (4B, 8B)
    p2 = jnp.maximum(jnp.dot(T0, cp2, preferred_element_type=f32),
                     jnp.dot(T1, cp2, preferred_element_type=f32))      # (4B, 80), rows (i2, b)
    p2 = jnp.maximum(p2 + b2e, 0.0)

    # ---------------- bn2 ----------------
    n2 = B * 16.0
    mean2 = jnp.dot(jnp.sum(p2, axis=0, keepdims=True), A2_ref[...],
                    preferred_element_type=f32) / n2
    ex2 = jnp.dot(jnp.sum(p2 * p2, axis=0, keepdims=True), A2_ref[...],
                  preferred_element_type=f32) / n2
    var2 = ex2 - mean2 * mean2
    p2 = (p2 - mean2) * lax.rsqrt(var2 + EPS) * g2e + be2e

    # -------- fc1 (PyTorch NCHW view(-1,320) baked into fw1 blocks) + relu + fc2 + log_softmax --------
    h = fb1
    for i2 in range(4):
        h = h + jnp.dot(p2[i2 * B:(i2 + 1) * B, :], fw1_ref[i2],
                        preferred_element_type=f32)                     # (B, 50)
    h = jnp.maximum(h, 0.0)
    logits = jnp.dot(h, fw2_ref[...], preferred_element_type=f32) + fb2  # (B, 10)
    z = logits - jnp.max(logits, axis=-1, keepdims=True)
    out_ref[...] = z - jnp.log(jnp.sum(jnp.exp(z), axis=-1, keepdims=True))


# ------------------------- wrapper -------------------------

def net_forward(x_nchw, params):
    B = x_nchw.shape[0]
    x = x_nchw.reshape(B, 28, 28).astype(jnp.float32)

    # Constant 0/1 row-selection matrices for the row half of each 2x2 max-pool
    # (built on host from the static batch size; they become compile-time constants).
    S = np.zeros((2, B * 16, B * 24), np.float32)     # conv1: picks rows 2i+s per image, pads i in [12,16)
    T = np.zeros((2, 4 * B, 8 * B), np.float32)       # conv2: picks rows 2*i2+s, output rows ordered (i2, b)
    for b in range(B):
        for i in range(12):
            for s in range(2):
                S[s, b * 16 + i, b * 24 + 2 * i + s] = 1.0
        for i2 in range(4):
            for s in range(2):
                T[s, i2 * B + b, b * 8 + 2 * i2 + s] = 1.0
    # Per-channel "sum within a lane block and broadcast back" matrices for BatchNorm stats.
    A1 = (np.arange(120)[:, None] // 12 == np.arange(120)[None, :] // 12).astype(np.float32)
    A2 = (np.arange(80)[:, None] // 4 == np.arange(80)[None, :] // 4).astype(np.float32)

    args = (x, params["w1"], params["w2"], params["fw1"], params["fw2"], params["small"],
            jnp.asarray(S), jnp.asarray(T), jnp.asarray(A1), jnp.asarray(A2))

    return pl.pallas_call(
        fused_net_kernel,
        out_shape=jax.ShapeDtypeStruct((B, 10), jnp.float32),
        in_specs=[pl.BlockSpec(memory_space=pltpu.MemorySpace.VMEM)] * len(args),
        out_specs=pl.BlockSpec(memory_space=pltpu.MemorySpace.VMEM),
        compiler_params=pltpu.CompilerParams(vmem_limit_bytes=32 * 1024 * 1024),
    )(*args)


# ------------------------- deterministic parameter init -------------------------

def init_params(key):
    ks = jax.random.split(key, 8)

    def u(k, shape, fan_in):
        bound = 1.0 / float(fan_in) ** 0.5
        return np.asarray(jax.random.uniform(k, shape, jnp.float32, -bound, bound))

    conv1_w = u(ks[0], (10, 1, 5, 5), 25)      # torch conv1.weight layout
    conv1_b = u(ks[1], (10,), 25)
    conv2_w = u(ks[2], (20, 10, 5, 5), 250)    # torch conv2.weight layout
    conv2_b = u(ks[3], (20,), 250)
    fc1_w = u(ks[4], (320, 50), 320)           # (in, out) == torch fc1.weight.T
    fc1_b = u(ks[5], (50,), 320)
    fc2_w = u(ks[6], (50, 10), 50)
    fc2_b = u(ks[7], (10,), 50)
    bn1_g, bn1_b = np.ones(10, np.float32), np.zeros(10, np.float32)
    bn2_g, bn2_b = np.ones(20, np.float32), np.zeros(20, np.float32)

    # conv1 block weights (5, 28, 240): rows = input column c, cols = (s, co, j) with
    # output column w = 2*j + s; kernel-column taps are folded into K.
    w1 = np.zeros((5, 28, 240), np.float32)
    for dy in range(5):
        for co in range(10):
            for j in range(12):
                for s in range(2):
                    n = s * 120 + co * 12 + j
                    for dx in range(5):
                        w1[dy, 2 * j + s + dx, n] = conv1_w[co, 0, dy, dx]

    # conv2 block weights (5, 120, 160): rows = (ci, j), cols = (s, co2, k) with w2 = 2*k + s.
    w2 = np.zeros((5, 10, 12, 160), np.float32)
    for dy in range(5):
        for ci in range(10):
            for co in range(20):
                for k in range(4):
                    for s in range(2):
                        n = s * 80 + co * 4 + k
                        for dx in range(5):
                            w2[dy, ci, 2 * k + s + dx, n] = conv2_w[co, ci, dy, dx]
    w2 = w2.reshape(5, 120, 160)

    # fc1 as 4 spatial-row blocks (i2, co*4+k, out): bakes in PyTorch's (co, i2, k) flatten order.
    fw1 = np.zeros((4, 80, 50), np.float32)
    for i2 in range(4):
        for co in range(20):
            for k in range(4):
                fw1[i2, co * 4 + k, :] = fc1_w[co * 16 + i2 * 4 + k, :]

    # All tiny per-channel vectors packed into one (8, 128) slab (one DMA instead of eight),
    # pre-expanded to the kernel's lane layouts (co*12+j for stage 1, co*4+k for stage 2).
    small = np.zeros((8, 128), np.float32)
    small[0, :120] = np.repeat(conv1_b, 12)
    small[1, :120] = np.repeat(bn1_g, 12)
    small[2, :120] = np.repeat(bn1_b, 12)
    small[3, :80] = np.repeat(conv2_b, 4)
    small[4, :80] = np.repeat(bn2_g, 4)
    small[5, :80] = np.repeat(bn2_b, 4)
    small[6, :50] = fc1_b
    small[7, :10] = fc2_b

    return dict(w1=jnp.asarray(w1), w2=jnp.asarray(w2), fw1=jnp.asarray(fw1),
                fw2=jnp.asarray(fc2_w), small=jnp.asarray(small))


if __name__ == "__main__":
    key = jax.random.PRNGKey(0)
    kx, kp = jax.random.split(key)
    # 28x28 single-channel input is required by fc1's 320 = 20*4*4 fan-in.
    x = jax.random.normal(kx, (2, 1, 28, 28), jnp.float32)
    params = init_params(kp)

    out = jax.jit(net_forward)(x, params)
    out = jax.block_until_ready(out)

    assert out.shape == (2, 10)
    # log_softmax rows must exponentiate-sum to ~1
    assert bool(jnp.all(jnp.abs(jnp.sum(jnp.exp(out), axis=-1) - 1.0) < 1e-4))
    print("KERNEL_OK")
</pallas_src>

<mosaic_0001>
module attributes {stable_mosaic.version = 11 : i64} {
  func.func @fused_net_kernel(%arg0: memref<2x28x28xf32, #tpu.memory_space<vmem>>, %arg1: memref<5x28x240xf32, #tpu.memory_space<vmem>>, %arg2: memref<5x120x160xf32, #tpu.memory_space<vmem>>, %arg3: memref<4x80x50xf32, #tpu.memory_space<vmem>>, %arg4: memref<50x10xf32, #tpu.memory_space<vmem>>, %arg5: memref<8x128xf32, #tpu.memory_space<vmem>>, %arg6: memref<2x32x48xf32, #tpu.memory_space<vmem>>, %arg7: memref<2x8x16xf32, #tpu.memory_space<vmem>>, %arg8: memref<120x120xf32, #tpu.memory_space<vmem>>, %arg9: memref<80x80xf32, #tpu.memory_space<vmem>>, %arg10: memref<2x10xf32, #tpu.memory_space<vmem>>) attributes {dimension_semantics = [], scalar_prefetch = 0 : i64, scratch_operands = 0 : i64, tpu.core_type = #tpu.core_type<tc>} {
    %c0 = arith.constant 0 : index
    %c0_0 = arith.constant 0 : index
    %0 = vector.load %arg5[%c0, %c0_0] : memref<8x128xf32, #tpu.memory_space<vmem>>, vector<8x128xf32>
    %1 = vector.extract_strided_slice %0 {offsets = [0, 0], sizes = [1, 120], strides = [1, 1]} : vector<8x128xf32> to vector<1x120xf32>
    %2 = vector.extract_strided_slice %0 {offsets = [1, 0], sizes = [1, 120], strides = [1, 1]} : vector<8x128xf32> to vector<1x120xf32>
    %3 = vector.extract_strided_slice %0 {offsets = [2, 0], sizes = [1, 120], strides = [1, 1]} : vector<8x128xf32> to vector<1x120xf32>
    %4 = vector.extract_strided_slice %0 {offsets = [3, 0], sizes = [1, 80], strides = [1, 1]} : vector<8x128xf32> to vector<1x80xf32>
    %5 = vector.extract_strided_slice %0 {offsets = [4, 0], sizes = [1, 80], strides = [1, 1]} : vector<8x128xf32> to vector<1x80xf32>
    %6 = vector.extract_strided_slice %0 {offsets = [5, 0], sizes = [1, 80], strides = [1, 1]} : vector<8x128xf32> to vector<1x80xf32>
    %7 = vector.extract_strided_slice %0 {offsets = [6, 0], sizes = [1, 50], strides = [1, 1]} : vector<8x128xf32> to vector<1x50xf32>
    %8 = vector.extract_strided_slice %0 {offsets = [7, 0], sizes = [1, 10], strides = [1, 1]} : vector<8x128xf32> to vector<1x10xf32>
    %c0_1 = arith.constant 0 : index
    %c0_2 = arith.constant 0 : index
    %c0_3 = arith.constant 0 : index
    %9 = vector.load %arg0[%c0_1, %c0_2, %c0_3] : memref<2x28x28xf32, #tpu.memory_space<vmem>>, vector<2x28x28xf32>
    %10 = vector.extract_strided_slice %9 {offsets = [0, 0, 0], sizes = [2, 24, 28], strides = [1, 1, 1]} : vector<2x28x28xf32> to vector<2x24x28xf32>
    %11 = vector.shape_cast %10 : vector<2x24x28xf32> to vector<48x28xf32>
    %c0_4 = arith.constant 0 : index
    %c0_5 = arith.constant 0 : index
    %c0_6 = arith.constant 0 : index
    %12 = vector.load %arg1[%c0_4, %c0_5, %c0_6] : memref<5x28x240xf32, #tpu.memory_space<vmem>>, vector<1x28x240xf32>
    %13 = vector.shape_cast %12 : vector<1x28x240xf32> to vector<28x240xf32>
    %cst = arith.constant dense<0.000000e+00> : vector<48x240xf32>
    %14 = tpu.matmul %11, %13, %cst {dimension_numbers = #tpu.dot_dimension_numbers<[1], [0], [0], [1], [0, 0, 1, 1], [], []>} : vector<48x28xf32>, vector<28x240xf32>, vector<48x240xf32> -> vector<48x240xf32>
    %15 = vector.extract_strided_slice %9 {offsets = [0, 1, 0], sizes = [2, 24, 28], strides = [1, 1, 1]} : vector<2x28x28xf32> to vector<2x24x28xf32>
    %16 = vector.shape_cast %15 : vector<2x24x28xf32> to vector<48x28xf32>
    %c1 = arith.constant 1 : index
    %c0_7 = arith.constant 0 : index
    %c0_8 = arith.constant 0 : index
    %17 = vector.load %arg1[%c1, %c0_7, %c0_8] : memref<5x28x240xf32, #tpu.memory_space<vmem>>, vector<1x28x240xf32>
    %18 = vector.shape_cast %17 : vector<1x28x240xf32> to vector<28x240xf32>
    %cst_9 = arith.constant dense<0.000000e+00> : vector<48x240xf32>
    %19 = tpu.matmul %16, %18, %cst_9 {dimension_numbers = #tpu.dot_dimension_numbers<[1], [0], [0], [1], [0, 0, 1, 1], [], []>} : vector<48x28xf32>, vector<28x240xf32>, vector<48x240xf32> -> vector<48x240xf32>
    %20 = arith.addf %14, %19 : vector<48x240xf32>
    %21 = vector.extract_strided_slice %9 {offsets = [0, 2, 0], sizes = [2, 24, 28], strides = [1, 1, 1]} : vector<2x28x28xf32> to vector<2x24x28xf32>
    %22 = vector.shape_cast %21 : vector<2x24x28xf32> to vector<48x28xf32>
    %c2 = arith.constant 2 : index
    %c0_10 = arith.constant 0 : index
    %c0_11 = arith.constant 0 : index
    %23 = vector.load %arg1[%c2, %c0_10, %c0_11] : memref<5x28x240xf32, #tpu.memory_space<vmem>>, vector<1x28x240xf32>
    %24 = vector.shape_cast %23 : vector<1x28x240xf32> to vector<28x240xf32>
    %cst_12 = arith.constant dense<0.000000e+00> : vector<48x240xf32>
    %25 = tpu.matmul %22, %24, %cst_12 {dimension_numbers = #tpu.dot_dimension_numbers<[1], [0], [0], [1], [0, 0, 1, 1], [], []>} : vector<48x28xf32>, vector<28x240xf32>, vector<48x240xf32> -> vector<48x240xf32>
    %26 = arith.addf %20, %25 : vector<48x240xf32>
    %27 = vector.extract_strided_slice %9 {offsets = [0, 3, 0], sizes = [2, 24, 28], strides = [1, 1, 1]} : vector<2x28x28xf32> to vector<2x24x28xf32>
    %28 = vector.shape_cast %27 : vector<2x24x28xf32> to vector<48x28xf32>
    %c3 = arith.constant 3 : index
    %c0_13 = arith.constant 0 : index
    %c0_14 = arith.constant 0 : index
    %29 = vector.load %arg1[%c3, %c0_13, %c0_14] : memref<5x28x240xf32, #tpu.memory_space<vmem>>, vector<1x28x240xf32>
    %30 = vector.shape_cast %29 : vector<1x28x240xf32> to vector<28x240xf32>
    %cst_15 = arith.constant dense<0.000000e+00> : vector<48x240xf32>
    %31 = tpu.matmul %28, %30, %cst_15 {dimension_numbers = #tpu.dot_dimension_numbers<[1], [0], [0], [1], [0, 0, 1, 1], [], []>} : vector<48x28xf32>, vector<28x240xf32>, vector<48x240xf32> -> vector<48x240xf32>
    %32 = arith.addf %26, %31 : vector<48x240xf32>
    %33 = vector.extract_strided_slice %9 {offsets = [0, 4, 0], sizes = [2, 24, 28], strides = [1, 1, 1]} : vector<2x28x28xf32> to vector<2x24x28xf32>
    %34 = vector.shape_cast %33 : vector<2x24x28xf32> to vector<48x28xf32>
    %c4 = arith.constant 4 : index
    %c0_16 = arith.constant 0 : index
    %c0_17 = arith.constant 0 : index
    %35 = vector.load %arg1[%c4, %c0_16, %c0_17] : memref<5x28x240xf32, #tpu.memory_space<vmem>>, vector<1x28x240xf32>
    %36 = vector.shape_cast %35 : vector<1x28x240xf32> to vector<28x240xf32>
    %cst_18 = arith.constant dense<0.000000e+00> : vector<48x240xf32>
    %37 = tpu.matmul %34, %36, %cst_18 {dimension_numbers = #tpu.dot_dimension_numbers<[1], [0], [0], [1], [0, 0, 1, 1], [], []>} : vector<48x28xf32>, vector<28x240xf32>, vector<48x240xf32> -> vector<48x240xf32>
    %38 = arith.addf %32, %37 : vector<48x240xf32>
    %39 = vector.extract_strided_slice %38 {offsets = [0, 0], sizes = [48, 120], strides = [1, 1]} : vector<48x240xf32> to vector<48x120xf32>
    %40 = vector.extract_strided_slice %38 {offsets = [0, 120], sizes = [48, 120], strides = [1, 1]} : vector<48x240xf32> to vector<48x120xf32>
    %41 = arith.maximumf %39, %40 : vector<48x120xf32>
    %c0_19 = arith.constant 0 : index
    %c0_20 = arith.constant 0 : index
    %c0_21 = arith.constant 0 : index
    %42 = vector.load %arg6[%c0_19, %c0_20, %c0_21] : memref<2x32x48xf32, #tpu.memory_space<vmem>>, vector<1x32x48xf32>
    %43 = vector.shape_cast %42 : vector<1x32x48xf32> to vector<32x48xf32>
    %c1_22 = arith.constant 1 : index
    %c0_23 = arith.constant 0 : index
    %c0_24 = arith.constant 0 : index
    %44 = vector.load %arg6[%c1_22, %c0_23, %c0_24] : memref<2x32x48xf32, #tpu.memory_space<vmem>>, vector<1x32x48xf32>
    %45 = vector.shape_cast %44 : vector<1x32x48xf32> to vector<32x48xf32>
    %cst_25 = arith.constant dense<0.000000e+00> : vector<32x120xf32>
    %46 = tpu.matmul %43, %41, %cst_25 {dimension_numbers = #tpu.dot_dimension_numbers<[1], [0], [0], [1], [0, 0, 1, 1], [], []>} : vector<32x48xf32>, vector<48x120xf32>, vector<32x120xf32> -> vector<32x120xf32>
    %cst_26 = arith.constant dense<0.000000e+00> : vector<32x120xf32>
    %47 = tpu.matmul %45, %41, %cst_26 {dimension_numbers = #tpu.dot_dimension_numbers<[1], [0], [0], [1], [0, 0, 1, 1], [], []>} : vector<32x48xf32>, vector<48x120xf32>, vector<32x120xf32> -> vector<32x120xf32>
    %48 = arith.maximumf %46, %47 : vector<32x120xf32>
    %49 = vector.broadcast %1 : vector<1x120xf32> to vector<32x120xf32>
    %50 = arith.addf %48, %49 : vector<32x120xf32>
    %cst_27 = arith.constant 0.000000e+00 : f32
    %51 = vector.broadcast %cst_27 : f32 to vector<32x120xf32>
    %52 = arith.maximumf %50, %51 : vector<32x120xf32>
    %cst_28 = arith.constant dense<0.000000e+00> : vector<32xf32>
    %53 = vector.multi_reduction <add>, %43, %cst_28 [1] : vector<32x48xf32> to vector<32xf32>
    %54 = vector.shape_cast %53 : vector<32xf32> to vector<32x1xf32>
    %55 = vector.broadcast %54 : vector<32x1xf32> to vector<32x120xf32>
    %56 = arith.mulf %52, %55 : vector<32x120xf32>
    %cst_29 = arith.constant dense<0.000000e+00> : vector<120xf32>
    %57 = vector.multi_reduction <add>, %56, %cst_29 [0] : vector<32x120xf32> to vector<120xf32>
    %58 = vector.shape_cast %57 : vector<120xf32> to vector<1x120xf32>
    %c0_30 = arith.constant 0 : index
    %c0_31 = arith.constant 0 : index
    %59 = vector.load %arg8[%c0_30, %c0_31] : memref<120x120xf32, #tpu.memory_space<vmem>>, vector<120x120xf32>
    %cst_32 = arith.constant dense<0.000000e+00> : vector<1x120xf32>
    %60 = tpu.matmul %58, %59, %cst_32 {dimension_numbers = #tpu.dot_dimension_numbers<[1], [0], [0], [1], [0, 0, 1, 1], [], []>} : vector<1x120xf32>, vector<120x120xf32>, vector<1x120xf32> -> vector<1x120xf32>
    %cst_33 = arith.constant 2.880000e+02 : f32
    %61 = vector.broadcast %cst_33 : f32 to vector<1x120xf32>
    %62 = arith.divf %60, %61 : vector<1x120xf32>
    %63 = arith.mulf %56, %56 : vector<32x120xf32>
    %cst_34 = arith.constant dense<0.000000e+00> : vector<120xf32>
    %64 = vector.multi_reduction <add>, %63, %cst_34 [0] : vector<32x120xf32> to vector<120xf32>
    %65 = vector.shape_cast %64 : vector<120xf32> to vector<1x120xf32>
    %c0_35 = arith.constant 0 : index
    %c0_36 = arith.constant 0 : index
    %66 = vector.load %arg8[%c0_35, %c0_36] : memref<120x120xf32, #tpu.memory_space<vmem>>, vector<120x120xf32>
    %cst_37 = arith.constant dense<0.000000e+00> : vector<1x120xf32>
    %67 = tpu.matmul %65, %66, %cst_37 {dimension_numbers = #tpu.dot_dimension_numbers<[1], [0], [0], [1], [0, 0, 1, 1], [], []>} : vector<1x120xf32>, vector<120x120xf32>, vector<1x120xf32> -> vector<1x120xf32>
    %cst_38 = arith.constant 2.880000e+02 : f32
    %68 = vector.broadcast %cst_38 : f32 to vector<1x120xf32>
    %69 = arith.divf %67, %68 : vector<1x120xf32>
    %70 = arith.mulf %62, %62 : vector<1x120xf32>
    %71 = arith.subf %69, %70 : vector<1x120xf32>
    %72 = vector.broadcast %62 : vector<1x120xf32> to vector<32x120xf32>
    %73 = arith.subf %52, %72 : vector<32x120xf32>
    %cst_39 = arith.constant 9.99999974E-6 : f32
    %74 = vector.broadcast %cst_39 : f32 to vector<1x120xf32>
    %75 = arith.addf %71, %74 : vector<1x120xf32>
    %76 = math.rsqrt %75 : vector<1x120xf32>
    %77 = vector.broadcast %76 : vector<1x120xf32> to vector<32x120xf32>
    %78 = arith.mulf %73, %77 : vector<32x120xf32>
    %79 = vector.broadcast %2 : vector<1x120xf32> to vector<32x120xf32>
    %80 = arith.mulf %78, %79 : vector<32x120xf32>
    %81 = vector.broadcast %3 : vector<1x120xf32> to vector<32x120xf32>
    %82 = arith.addf %80, %81 : vector<32x120xf32>
    %83 = vector.shape_cast %82 : vector<32x120xf32> to vector<2x16x120xf32>
    %84 = vector.extract_strided_slice %83 {offsets = [0, 0, 0], sizes = [2, 8, 120], strides = [1, 1, 1]} : vector<2x16x120xf32> to vector<2x8x120xf32>
    %85 = vector.shape_cast %84 : vector<2x8x120xf32> to vector<16x120xf32>
    %c0_40 = arith.constant 0 : index
    %c0_41 = arith.constant 0 : index
    %c0_42 = arith.constant 0 : index
    %86 = vector.load %arg2[%c0_40, %c0_41, %c0_42] : memref<5x120x160xf32, #tpu.memory_space<vmem>>, vector<1x120x160xf32>
    %87 = vector.shape_cast %86 : vector<1x120x160xf32> to vector<120x160xf32>
    %cst_43 = arith.constant dense<0.000000e+00> : vector<16x160xf32>
    %88 = tpu.matmul %85, %87, %cst_43 {dimension_numbers = #tpu.dot_dimension_numbers<[1], [0], [0], [1], [0, 0, 1, 1], [], []>} : vector<16x120xf32>, vector<120x160xf32>, vector<16x160xf32> -> vector<16x160xf32>
    %89 = vector.extract_strided_slice %83 {offsets = [0, 1, 0], sizes = [2, 8, 120], strides = [1, 1, 1]} : vector<2x16x120xf32> to vector<2x8x120xf32>
    %90 = vector.shape_cast %89 : vector<2x8x120xf32> to vector<16x120xf32>
    %c1_44 = arith.constant 1 : index
    %c0_45 = arith.constant 0 : index
    %c0_46 = arith.constant 0 : index
    %91 = vector.load %arg2[%c1_44, %c0_45, %c0_46] : memref<5x120x160xf32, #tpu.memory_space<vmem>>, vector<1x120x160xf32>
    %92 = vector.shape_cast %91 : vector<1x120x160xf32> to vector<120x160xf32>
    %cst_47 = arith.constant dense<0.000000e+00> : vector<16x160xf32>
    %93 = tpu.matmul %90, %92, %cst_47 {dimension_numbers = #tpu.dot_dimension_numbers<[1], [0], [0], [1], [0, 0, 1, 1], [], []>} : vector<16x120xf32>, vector<120x160xf32>, vector<16x160xf32> -> vector<16x160xf32>
    %94 = arith.addf %88, %93 : vector<16x160xf32>
    %95 = vector.extract_strided_slice %83 {offsets = [0, 2, 0], sizes = [2, 8, 120], strides = [1, 1, 1]} : vector<2x16x120xf32> to vector<2x8x120xf32>
    %96 = vector.shape_cast %95 : vector<2x8x120xf32> to vector<16x120xf32>
    %c2_48 = arith.constant 2 : index
    %c0_49 = arith.constant 0 : index
    %c0_50 = arith.constant 0 : index
    %97 = vector.load %arg2[%c2_48, %c0_49, %c0_50] : memref<5x120x160xf32, #tpu.memory_space<vmem>>, vector<1x120x160xf32>
    %98 = vector.shape_cast %97 : vector<1x120x160xf32> to vector<120x160xf32>
    %cst_51 = arith.constant dense<0.000000e+00> : vector<16x160xf32>
    %99 = tpu.matmul %96, %98, %cst_51 {dimension_numbers = #tpu.dot_dimension_numbers<[1], [0], [0], [1], [0, 0, 1, 1], [], []>} : vector<16x120xf32>, vector<120x160xf32>, vector<16x160xf32> -> vector<16x160xf32>
    %100 = arith.addf %94, %99 : vector<16x160xf32>
    %101 = vector.extract_strided_slice %83 {offsets = [0, 3, 0], sizes = [2, 8, 120], strides = [1, 1, 1]} : vector<2x16x120xf32> to vector<2x8x120xf32>
    %102 = vector.shape_cast %101 : vector<2x8x120xf32> to vector<16x120xf32>
    %c3_52 = arith.constant 3 : index
    %c0_53 = arith.constant 0 : index
    %c0_54 = arith.constant 0 : index
    %103 = vector.load %arg2[%c3_52, %c0_53, %c0_54] : memref<5x120x160xf32, #tpu.memory_space<vmem>>, vector<1x120x160xf32>
    %104 = vector.shape_cast %103 : vector<1x120x160xf32> to vector<120x160xf32>
    %cst_55 = arith.constant dense<0.000000e+00> : vector<16x160xf32>
    %105 = tpu.matmul %102, %104, %cst_55 {dimension_numbers = #tpu.dot_dimension_numbers<[1], [0], [0], [1], [0, 0, 1, 1], [], []>} : vector<16x120xf32>, vector<120x160xf32>, vector<16x160xf32> -> vector<16x160xf32>
    %106 = arith.addf %100, %105 : vector<16x160xf32>
    %107 = vector.extract_strided_slice %83 {offsets = [0, 4, 0], sizes = [2, 8, 120], strides = [1, 1, 1]} : vector<2x16x120xf32> to vector<2x8x120xf32>
    %108 = vector.shape_cast %107 : vector<2x8x120xf32> to vector<16x120xf32>
    %c4_56 = arith.constant 4 : index
    %c0_57 = arith.constant 0 : index
    %c0_58 = arith.constant 0 : index
    %109 = vector.load %arg2[%c4_56, %c0_57, %c0_58] : memref<5x120x160xf32, #tpu.memory_space<vmem>>, vector<1x120x160xf32>
    %110 = vector.shape_cast %109 : vector<1x120x160xf32> to vector<120x160xf32>
    %cst_59 = arith.constant dense<0.000000e+00> : vector<16x160xf32>
    %111 = tpu.matmul %108, %110, %cst_59 {dimension_numbers = #tpu.dot_dimension_numbers<[1], [0], [0], [1], [0, 0, 1, 1], [], []>} : vector<16x120xf32>, vector<120x160xf32>, vector<16x160xf32> -> vector<16x160xf32>
    %112 = arith.addf %106, %111 : vector<16x160xf32>
    %113 = vector.extract_strided_slice %112 {offsets = [0, 0], sizes = [16, 80], strides = [1, 1]} : vector<16x160xf32> to vector<16x80xf32>
    %114 = vector.extract_strided_slice %112 {offsets = [0, 80], sizes = [16, 80], strides = [1, 1]} : vector<16x160xf32> to vector<16x80xf32>
    %115 = arith.maximumf %113, %114 : vector<16x80xf32>
    %c0_60 = arith.constant 0 : index
    %c0_61 = arith.constant 0 : index
    %c0_62 = arith.constant 0 : index
    %116 = vector.load %arg7[%c0_60, %c0_61, %c0_62] : memref<2x8x16xf32, #tpu.memory_space<vmem>>, vector<1x8x16xf32>
    %117 = vector.shape_cast %116 : vector<1x8x16xf32> to vector<8x16xf32>
    %c1_63 = arith.constant 1 : index
    %c0_64 = arith.constant 0 : index
    %c0_65 = arith.constant 0 : index
    %118 = vector.load %arg7[%c1_63, %c0_64, %c0_65] : memref<2x8x16xf32, #tpu.memory_space<vmem>>, vector<1x8x16xf32>
    %119 = vector.shape_cast %118 : vector<1x8x16xf32> to vector<8x16xf32>
    %cst_66 = arith.constant dense<0.000000e+00> : vector<8x80xf32>
    %120 = tpu.matmul %117, %115, %cst_66 {dimension_numbers = #tpu.dot_dimension_numbers<[1], [0], [0], [1], [0, 0, 1, 1], [], []>} : vector<8x16xf32>, vector<16x80xf32>, vector<8x80xf32> -> vector<8x80xf32>
    %cst_67 = arith.constant dense<0.000000e+00> : vector<8x80xf32>
    %121 = tpu.matmul %119, %115, %cst_67 {dimension_numbers = #tpu.dot_dimension_numbers<[1], [0], [0], [1], [0, 0, 1, 1], [], []>} : vector<8x16xf32>, vector<16x80xf32>, vector<8x80xf32> -> vector<8x80xf32>
    %122 = arith.maximumf %120, %121 : vector<8x80xf32>
    %123 = vector.broadcast %4 : vector<1x80xf32> to vector<8x80xf32>
    %124 = arith.addf %122, %123 : vector<8x80xf32>
    %cst_68 = arith.constant 0.000000e+00 : f32
    %125 = vector.broadcast %cst_68 : f32 to vector<8x80xf32>
    %126 = arith.maximumf %124, %125 : vector<8x80xf32>
    %cst_69 = arith.constant dense<0.000000e+00> : vector<80xf32>
    %127 = vector.multi_reduction <add>, %126, %cst_69 [0] : vector<8x80xf32> to vector<80xf32>
    %128 = vector.shape_cast %127 : vector<80xf32> to vector<1x80xf32>
    %c0_70 = arith.constant 0 : index
    %c0_71 = arith.constant 0 : index
    %129 = vector.load %arg9[%c0_70, %c0_71] : memref<80x80xf32, #tpu.memory_space<vmem>>, vector<80x80xf32>
    %cst_72 = arith.constant dense<0.000000e+00> : vector<1x80xf32>
    %130 = tpu.matmul %128, %129, %cst_72 {dimension_numbers = #tpu.dot_dimension_numbers<[1], [0], [0], [1], [0, 0, 1, 1], [], []>} : vector<1x80xf32>, vector<80x80xf32>, vector<1x80xf32> -> vector<1x80xf32>
    %cst_73 = arith.constant 3.200000e+01 : f32
    %131 = vector.broadcast %cst_73 : f32 to vector<1x80xf32>
    %132 = arith.divf %130, %131 : vector<1x80xf32>
    %133 = arith.mulf %126, %126 : vector<8x80xf32>
    %cst_74 = arith.constant dense<0.000000e+00> : vector<80xf32>
    %134 = vector.multi_reduction <add>, %133, %cst_74 [0] : vector<8x80xf32> to vector<80xf32>
    %135 = vector.shape_cast %134 : vector<80xf32> to vector<1x80xf32>
    %c0_75 = arith.constant 0 : index
    %c0_76 = arith.constant 0 : index
    %136 = vector.load %arg9[%c0_75, %c0_76] : memref<80x80xf32, #tpu.memory_space<vmem>>, vector<80x80xf32>
    %cst_77 = arith.constant dense<0.000000e+00> : vector<1x80xf32>
    %137 = tpu.matmul %135, %136, %cst_77 {dimension_numbers = #tpu.dot_dimension_numbers<[1], [0], [0], [1], [0, 0, 1, 1], [], []>} : vector<1x80xf32>, vector<80x80xf32>, vector<1x80xf32> -> vector<1x80xf32>
    %cst_78 = arith.constant 3.200000e+01 : f32
    %138 = vector.broadcast %cst_78 : f32 to vector<1x80xf32>
    %139 = arith.divf %137, %138 : vector<1x80xf32>
    %140 = arith.mulf %132, %132 : vector<1x80xf32>
    %141 = arith.subf %139, %140 : vector<1x80xf32>
    %142 = vector.broadcast %132 : vector<1x80xf32> to vector<8x80xf32>
    %143 = arith.subf %126, %142 : vector<8x80xf32>
    %cst_79 = arith.constant 9.99999974E-6 : f32
    %144 = vector.broadcast %cst_79 : f32 to vector<1x80xf32>
    %145 = arith.addf %141, %144 : vector<1x80xf32>
    %146 = math.rsqrt %145 : vector<1x80xf32>
    %147 = vector.broadcast %146 : vector<1x80xf32> to vector<8x80xf32>
    %148 = arith.mulf %143, %147 : vector<8x80xf32>
    %149 = vector.broadcast %5 : vector<1x80xf32> to vector<8x80xf32>
    %150 = arith.mulf %148, %149 : vector<8x80xf32>
    %151 = vector.broadcast %6 : vector<1x80xf32> to vector<8x80xf32>
    %152 = arith.addf %150, %151 : vector<8x80xf32>
    %153 = vector.extract_strided_slice %152 {offsets = [0, 0], sizes = [2, 80], strides = [1, 1]} : vector<8x80xf32> to vector<2x80xf32>
    %c0_80 = arith.constant 0 : index
    %c0_81 = arith.constant 0 : index
    %c0_82 = arith.constant 0 : index
    %154 = vector.load %arg3[%c0_80, %c0_81, %c0_82] : memref<4x80x50xf32, #tpu.memory_space<vmem>>, vector<1x80x50xf32>
    %155 = vector.shape_cast %154 : vector<1x80x50xf32> to vector<80x50xf32>
    %cst_83 = arith.constant dense<0.000000e+00> : vector<2x50xf32>
    %156 = tpu.matmul %153, %155, %cst_83 {dimension_numbers = #tpu.dot_dimension_numbers<[1], [0], [0], [1], [0, 0, 1, 1], [], []>} : vector<2x80xf32>, vector<80x50xf32>, vector<2x50xf32> -> vector<2x50xf32>
    %157 = vector.broadcast %7 : vector<1x50xf32> to vector<2x50xf32>
    %158 = arith.addf %157, %156 : vector<2x50xf32>
    %159 = vector.extract_strided_slice %152 {offsets = [2, 0], sizes = [2, 80], strides = [1, 1]} : vector<8x80xf32> to vector<2x80xf32>
    %c1_84 = arith.constant 1 : index
    %c0_85 = arith.constant 0 : index
    %c0_86 = arith.constant 0 : index
    %160 = vector.load %arg3[%c1_84, %c0_85, %c0_86] : memref<4x80x50xf32, #tpu.memory_space<vmem>>, vector<1x80x50xf32>
    %161 = vector.shape_cast %160 : vector<1x80x50xf32> to vector<80x50xf32>
    %cst_87 = arith.constant dense<0.000000e+00> : vector<2x50xf32>
    %162 = tpu.matmul %159, %161, %cst_87 {dimension_numbers = #tpu.dot_dimension_numbers<[1], [0], [0], [1], [0, 0, 1, 1], [], []>} : vector<2x80xf32>, vector<80x50xf32>, vector<2x50xf32> -> vector<2x50xf32>
    %163 = arith.addf %158, %162 : vector<2x50xf32>
    %164 = vector.extract_strided_slice %152 {offsets = [4, 0], sizes = [2, 80], strides = [1, 1]} : vector<8x80xf32> to vector<2x80xf32>
    %c2_88 = arith.constant 2 : index
    %c0_89 = arith.constant 0 : index
    %c0_90 = arith.constant 0 : index
    %165 = vector.load %arg3[%c2_88, %c0_89, %c0_90] : memref<4x80x50xf32, #tpu.memory_space<vmem>>, vector<1x80x50xf32>
    %166 = vector.shape_cast %165 : vector<1x80x50xf32> to vector<80x50xf32>
    %cst_91 = arith.constant dense<0.000000e+00> : vector<2x50xf32>
    %167 = tpu.matmul %164, %166, %cst_91 {dimension_numbers = #tpu.dot_dimension_numbers<[1], [0], [0], [1], [0, 0, 1, 1], [], []>} : vector<2x80xf32>, vector<80x50xf32>, vector<2x50xf32> -> vector<2x50xf32>
    %168 = arith.addf %163, %167 : vector<2x50xf32>
    %169 = vector.extract_strided_slice %152 {offsets = [6, 0], sizes = [2, 80], strides = [1, 1]} : vector<8x80xf32> to vector<2x80xf32>
    %c3_92 = arith.constant 3 : index
    %c0_93 = arith.constant 0 : index
    %c0_94 = arith.constant 0 : index
    %170 = vector.load %arg3[%c3_92, %c0_93, %c0_94] : memref<4x80x50xf32, #tpu.memory_space<vmem>>, vector<1x80x50xf32>
    %171 = vector.shape_cast %170 : vector<1x80x50xf32> to vector<80x50xf32>
    %cst_95 = arith.constant dense<0.000000e+00> : vector<2x50xf32>
    %172 = tpu.matmul %169, %171, %cst_95 {dimension_numbers = #tpu.dot_dimension_numbers<[1], [0], [0], [1], [0, 0, 1, 1], [], []>} : vector<2x80xf32>, vector<80x50xf32>, vector<2x50xf32> -> vector<2x50xf32>
    %173 = arith.addf %168, %172 : vector<2x50xf32>
    %cst_96 = arith.constant 0.000000e+00 : f32
    %174 = vector.broadcast %cst_96 : f32 to vector<2x50xf32>
    %175 = arith.maximumf %173, %174 : vector<2x50xf32>
    %c0_97 = arith.constant 0 : index
    %c0_98 = arith.constant 0 : index
    %176 = vector.load %arg4[%c0_97, %c0_98] : memref<50x10xf32, #tpu.memory_space<vmem>>, vector<50x10xf32>
    %cst_99 = arith.constant dense<0.000000e+00> : vector<2x10xf32>
    %177 = tpu.matmul %175, %176, %cst_99 {dimension_numbers = #tpu.dot_dimension_numbers<[1], [0], [0], [1], [0, 0, 1, 1], [], []>} : vector<2x50xf32>, vector<50x10xf32>, vector<2x10xf32> -> vector<2x10xf32>
    %178 = vector.broadcast %8 : vector<1x10xf32> to vector<2x10xf32>
    %179 = arith.addf %177, %178 : vector<2x10xf32>
    %cst_100 = arith.constant dense<0xFF800000> : vector<2xf32>
    %180 = vector.multi_reduction <maximumf>, %179, %cst_100 [1] : vector<2x10xf32> to vector<2xf32>
    %181 = vector.shape_cast %180 : vector<2xf32> to vector<2x1xf32>
    %182 = vector.broadcast %181 : vector<2x1xf32> to vector<2x10xf32>
    %183 = arith.subf %179, %182 : vector<2x10xf32>
    %184 = math.exp %183 : vector<2x10xf32>
    %cst_101 = arith.constant dense<0.000000e+00> : vector<2xf32>
    %185 = vector.multi_reduction <add>, %184, %cst_101 [1] : vector<2x10xf32> to vector<2xf32>
    %186 = vector.shape_cast %185 : vector<2xf32> to vector<2x1xf32>
    %187 = math.log %186 : vector<2x1xf32>
    %188 = vector.broadcast %187 : vector<2x1xf32> to vector<2x10xf32>
    %189 = arith.subf %183, %188 : vector<2x10xf32>
    %c0_102 = arith.constant 0 : index
    %c0_103 = arith.constant 0 : index
    %190 = vector.load %arg10[%c0_102, %c0_103] : memref<2x10xf32, #tpu.memory_space<vmem>>, vector<2x10xf32>
    tpu.vector_store %arg10[%c0_102, %c0_103], %189 {strides = array<i32>} : memref<2x10xf32, #tpu.memory_space<vmem>>, vector<2x10xf32>,
    return
  }
}

</mosaic_0001>

<llo_original>
// kernel: net_forward.1
$region0: #{net_forward.1}
  #allocation0 [shape = 'u32[]', space=smem, size = 0x4, offset = 0x4, fixed_abs, tag = 'smem constant byte address 0x4 - core index']
  #allocation1 [shape = 'u32[144,128]{1,0:T(1,128)}', space=vmem, size = 0x12000, scoped, tag = 'internal scratch']
  %s0 = inlined_call_operand.vmem [shape: f32[2,28,28], index: 0, kind: input, shape index: {}]
  %s1 = inlined_call_operand.vmem [shape: f32[5,28,240], index: 1, kind: input, shape index: {}]
  %s2 = inlined_call_operand.vmem [shape: f32[5,120,160], index: 2, kind: input, shape index: {}]
  %s3 = inlined_call_operand.vmem [shape: f32[4,80,50], index: 3, kind: input, shape index: {}]
  %s4 = inlined_call_operand.vmem [shape: f32[50,10], index: 4, kind: input, shape index: {}]
  %s5 = inlined_call_operand.vmem [shape: f32[8,128], index: 5, kind: input, shape index: {}]
  %s6 = inlined_call_operand.vmem [shape: f32[2,32,48], index: 6, kind: input, shape index: {}]
  %s7 = inlined_call_operand.vmem [shape: f32[2,8,16], index: 7, kind: input, shape index: {}]
  %s8 = inlined_call_operand.vmem [shape: f32[120,120], index: 8, kind: input, shape index: {}]
  %s9 = inlined_call_operand.vmem [shape: f32[80,80], index: 9, kind: input, shape index: {}]
  %s10 = inlined_call_operand.hbm [shape: f32[2,10], index: 10, kind: output, shape index: {}]
  %s11 = sld [smem:[#allocation0]]
  $region50: #{net_forward.1} parent=0
    _
  %s13 = ssub.s32 1, %s11
  %s14 = scalar_select 0, %s13, %s11
  $region1: #{net_forward.1} parent=0
    #allocation2 [shape = 'u8[1024]{0}', space=vmem, size = 0x400, scoped, tag = 'output window, operand 0, single buffered']
    #allocation3 [shape = 's32[1]{0}', space=sflag, size = 0x4, scoped, tag = 'scoped memory for net_forward.1']
    %15 = vsyncpa [#allocation3], 0
    // Predicated region
    $region2: #{net_forward.1} parent=1 // pred_check
      _
    $region3: #{net_forward.1} parent=1 // pred_check_branch
      %17 = sbr.rel (0) target = $region5
    $region4: #{net_forward.1} parent=1 // pred_region
      _
    $region5: #{net_forward.1} parent=1 // pred_fallthru
      _
    // Predicated region
    $region6: #{net_forward.1} parent=1 // pred_check
      _
    $region7: #{net_forward.1} parent=1 // pred_check_branch
      %19 = sbr.rel (0) target = $region9
    $region8: #{net_forward.1} parent=1 // pred_region
      _
    $region9: #{net_forward.1} parent=1 // pred_fallthru
      _
    // Predicated region
    $region10: #{net_forward.1} parent=1 // pred_check
      _
    $region11: #{net_forward.1} parent=1 // pred_check_branch
      %21 = sbr.rel (0) target = $region13
    $region12: #{net_forward.1} parent=1 // pred_region
      _
    $region13: #{net_forward.1} parent=1 // pred_fallthru
      _
    // Predicated region
    $region14: #{net_forward.1} parent=1 // pred_check
      _
    $region15: #{net_forward.1} parent=1 // pred_check_branch
      %23 = sbr.rel (0) target = $region17
    $region16: #{net_forward.1} parent=1 // pred_region
      _
    $region17: #{net_forward.1} parent=1 // pred_fallthru
      _
    // Predicated region
    $region18: #{net_forward.1} parent=1 // pred_check
      _
    $region19: #{net_forward.1} parent=1 // pred_check_branch
      %25 = sbr.rel (0) target = $region21
    $region20: #{net_forward.1} parent=1 // pred_region
      _
    $region21: #{net_forward.1} parent=1 // pred_fallthru
      _
    // Predicated region
    $region22: #{net_forward.1} parent=1 // pred_check
      _
    $region23: #{net_forward.1} parent=1 // pred_check_branch
      %27 = sbr.rel (0) target = $region25
    $region24: #{net_forward.1} parent=1 // pred_region
      _
    $region25: #{net_forward.1} parent=1 // pred_fallthru
      _
    // Predicated region
    $region26: #{net_forward.1} parent=1 // pred_check
      _
    $region27: #{net_forward.1} parent=1 // pred_check_branch
      %29 = sbr.rel (0) target = $region29
    $region28: #{net_forward.1} parent=1 // pred_region
      _
    $region29: #{net_forward.1} parent=1 // pred_fallthru
      _
    // Predicated region
    $region30: #{net_forward.1} parent=1 // pred_check
      _
    $region31: #{net_forward.1} parent=1 // pred_check_branch
      %31 = sbr.rel (0) target = $region33
    $region32: #{net_forward.1} parent=1 // pred_region
      _
    $region33: #{net_forward.1} parent=1 // pred_fallthru
      _
    // Predicated region
    $region34: #{net_forward.1} parent=1 // pred_check
      _
    $region35: #{net_forward.1} parent=1 // pred_check_branch
      %33 = sbr.rel (0) target = $region37
    $region36: #{net_forward.1} parent=1 // pred_region
      _
    $region37: #{net_forward.1} parent=1 // pred_fallthru
      _
    // Predicated region
    $region38: #{net_forward.1} parent=1 // pred_check
      _
    $region39: #{net_forward.1} parent=1 // pred_check_branch
      %35 = sbr.rel (0) target = $region41
    $region40: #{net_forward.1} parent=1 // pred_region
      _
    $region41: #{net_forward.1} parent=1 // pred_fallthru
      _
    %v36 = vld [vmem:[%s5] sm:$0xff]
    %v37 = vld [vmem:[%s0] sm:$0xff]
    %v38 = vld [vmem:[%s0 + $0x8] sm:$0xff]
    %v39 = vld [vmem:[%s0 + $0x10] sm:$0xff]
    %v40 = vld [vmem:[%s0 + $0x18] sm:$0xf]
    %v41 = vld [vmem:[%s0 + $0x20] sm:$0xff]
    %v42 = vld [vmem:[%s0 + $0x28] sm:$0xff]
    %v43 = vld [vmem:[%s0 + $0x30] sm:$0xff]
    %v44 = vld [vmem:[%s0 + $0x38] sm:$0xf]
    %v45 = vld [vmem:[%s1] sm:$0xff]
    %v46 = vld [vmem:[%s1 + $0x8] sm:$0xff]
    %v47 = vld [vmem:[%s1 + $0x10] sm:$0xff]
    %v48 = vld [vmem:[%s1 + $0x18] sm:$0xff]
    %v49 = vld [vmem:[%s1 + $0x20] sm:$0xff]
    %v50 = vld [vmem:[%s1 + $0x28] sm:$0xff]
    %v51 = vld [vmem:[%s1 + $0x30] sm:$0xf]
    %v52 = vld [vmem:[%s1 + $0x38] sm:$0xf]
    %vm61 = vcmask 1046528
    %v62 = vrot.slane %v37, 1
    %v63 = vrot.slane %v38, 1
    %v64 = vsel %vm61, %v62, %v63
    %v65 = vrot.slane %v39, 1
    %v66 = vsel %vm61, %v63, %v65
    %v67 = vrot.slane %v40, 1
    %v68 = vsel %vm61, %v65, %v67
    %v69 = vrot.slane %v41, 1
    %v70 = vrot.slane %v42, 1
    %v71 = vsel %vm61, %v69, %v70
    %v72 = vrot.slane %v43, 1
    %v73 = vsel %vm61, %v70, %v72
    %v74 = vrot.slane %v44, 1
    %v75 = vsel %vm61, %v72, %v74
    %s76 = scalar_lea.vmem %s1, 64
    %v77 = vld [vmem:[%s76] sm:$0xff]
    %v78 = vld [vmem:[%s76 + $0x8] sm:$0xff]
    %v79 = vld [vmem:[%s76 + $0x10] sm:$0xff]
    %v80 = vld [vmem:[%s76 + $0x18] sm:$0xff]
    %v81 = vld [vmem:[%s76 + $0x20] sm:$0xff]
    %v82 = vld [vmem:[%s76 + $0x28] sm:$0xff]
    %v83 = vld [vmem:[%s76 + $0x30] sm:$0xf]
    %v84 = vld [vmem:[%s76 + $0x38] sm:$0xf]
    %vm85 = vcmask 228352
    %v86 = vsel %vm85, %v64, 0
    %v88 = vsel %vm85, %v66, 0
    %v90 = vsel %vm85, %v68, 0
    %v92 = vsel %vm85, %v71, 0
    %v94 = vsel %vm85, %v73, 0
    %v96 = vsel %vm85, %v75, 0
    %vm98 = vcmask 1043456
    %v100 = vsel %vm98, %v83, 0
    %v103 = vsel %vm98, %v84, 0
    %105 = vmatprep.subr.mxu0 %v78
    %106 = vmatpush1.msra.mxu0 %v77
    %107 = vmatprep.subr.mxu0 %v80
    %108 = vmatpush1.msra.mxu0 %v79
    %109 = vmatprep.subr.mxu0 %v82
    %110 = vmatpush1.msra.mxu0 %v81
    %111 = vmatprep.subr.mxu0 %v103
    %112 = vmatpush1.msra.mxu0 %v100
    %113 = vmatprep.subr.mxu0 0.0
    %114 = vmatpush1.msra.mxu0 0.0
    %115 = vmatprep.subr.mxu0 0.0
    %116 = vmatpush1.msra.mxu0 0.0
    %117 = vmatprep.subr.mxu0 0.0
    %118 = vmatpush1.msra.mxu0 0.0
    %119 = vmatprep.subr.mxu0 0.0
    %120 = vmatpush1.msra.mxu0 0.0
    %121 = vmatprep.subr.mxu0 0.0
    %122 = vmatpush1.msra.mxu0 0.0
    %123 = vmatprep.subr.mxu0 0.0
    %124 = vmatpush1.msra.mxu0 0.0
    %125 = vmatprep.subr.mxu0 0.0
    %126 = vmatpush1.msra.mxu0 0.0
    %127 = vmatprep.subr.mxu0 0.0
    %128 = vmatpush1.msra.mxu0 0.0
    %129 = vmatprep.subr.mxu0 0.0
    %130 = vmatpush1.msra.mxu0 0.0
    %131 = vmatprep.subr.mxu0 0.0
    %132 = vmatpush1.msra.mxu0 0.0
    %133 = vmatprep.subr.mxu0 0.0
    %134 = vmatpush1.msra.mxu0 0.0
    %135 = vmatprep.subr.mxu0 0.0
    %136 = vmatpush1.msra.mxu0 0.0
    %137 = vmatprep.subr.mxu0 0.0
    %138 = vmatpush1.msra.mxu0 0.0
    %139 = vmatprep.subr.mxu0 0.0
    %140 = vmatpush1.msra.mxu0 0.0
    %141 = vmatprep.subr.mxu0 0.0
    %142 = vmatpush1.msra.mxu0 0.0
    %143 = vmatprep.subr.mxu0 0.0
    %144 = vmatpush1.msra.mxu0 0.0
    %145 = vmatprep.subr.mxu0 0.0
    %146 = vmatpush1.msra.mxu0 0.0
    %147 = vmatprep.subr.mxu0 0.0
    %148 = vmatpush1.msra.mxu0 0.0
    %149 = vmatprep.subr.mxu0 0.0
    %150 = vmatpush1.msra.mxu0 0.0
    %151 = vmatprep.subr.mxu0 0.0
    %152 = vmatpush1.msra.mxu0 0.0
    %153 = vmatprep.subr.mxu0 0.0
    %154 = vmatpush1.msra.mxu0 0.0
    %155 = vmatprep.subr.mxu0 0.0
    %156 = vmatpush1.msra.mxu0 0.0
    %157 = vmatprep.subr.mxu0 0.0
    %158 = vmatpush1.msra.mxu0 0.0
    %159 = vmatprep.subr.mxu0 0.0
    %160 = vmatpush1.msra.mxu0 0.0
    %161 = vmatprep.subr.mxu0 0.0
    %162 = vmatpush1.msra.mxu0 0.0
    %163 = vmatprep.subr.mxu0 0.0
    %164 = vmatpush1.msra.mxu0 0.0
    %165 = vmatprep.subr.mxu0 0.0
    %166 = vmatpush1.msra.mxu0 0.0
    %167 = vmatprep.subr.mxu0 0.0
    %168 = vmatpush1.msra.mxu0 0.0
    %169 = vmatprep.mubr.f32.mxu0 0.0
    %170 = vmatmul.mubr.f32.gmra.mrb[0].mxu0 %v86
    %v171 = vpop.f32.mrb[0].mxu0
    %v172 = vadd.f32 0.0, %v171
    %v173 = vpop.f32.mrb[0].mxu0
    %v174 = vadd.f32 0.0, %v173
    %175 = vmatprep.mubr.f32.mxu0 0.0
    %176 = vmatmul.mubr.f32.gmra.mrb[0].mxu0 %v88
    %v177 = vpop.f32.mrb[0].mxu0
    %v178 = vadd.f32 0.0, %v177
    %v179 = vpop.f32.mrb[0].mxu0
    %v180 = vadd.f32 0.0, %v179
    %181 = vmatprep.mubr.f32.mxu0 0.0
    %182 = vmatmul.mubr.f32.gmra.mrb[0].mxu0 %v90
    %v183 = vpop.f32.mrb[0].mxu0
    %v184 = vadd.f32 0.0, %v183
    %v185 = vpop.f32.mrb[0].mxu0
    %v186 = vadd.f32 0.0, %v185
    %187 = vmatprep.mubr.f32.mxu0 0.0
    %188 = vmatmul.mubr.f32.gmra.mrb[0].mxu0 %v92
    %v189 = vpop.f32.mrb[0].mxu0
    %v190 = vadd.f32 0.0, %v189
    %v191 = vpop.f32.mrb[0].mxu0
    %v192 = vadd.f32 0.0, %v191
    %193 = vmatprep.mubr.f32.mxu0 0.0
    %194 = vmatmul.mubr.f32.gmra.mrb[0].mxu0 %v94
    %v195 = vpop.f32.mrb[0].mxu0
    %v196 = vadd.f32 0.0, %v195
    %v197 = vpop.f32.mrb[0].mxu0
    %v198 = vadd.f32 0.0, %v197
    %199 = vmatprep.mubr.f32.mxu0 0.0
    %200 = vmatmul.mubr.f32.gmra.mrb[0].mxu0 %v96
    %v201 = vpop.f32.mrb[0].mxu0
    %v202 = vadd.f32 0.0, %v201
    %v203 = vpop.f32.mrb[0].mxu0
    %v204 = vadd.f32 0.0, %v203
    %205 = vdwg.mxu0
    %v206 = vsel %vm85, %v37, 0
    %v208 = vsel %vm85, %v38, 0
    %v210 = vsel %vm85, %v39, 0
    %v212 = vsel %vm85, %v41, 0
    %v214 = vsel %vm85, %v42, 0
    %v216 = vsel %vm85, %v43, 0
    %v219 = vsel %vm98, %v51, 0
    %v222 = vsel %vm98, %v52, 0
    %224 = vmatprep.subr.mxu0 %v46
    %225 = vmatpush1.msra.mxu0 %v45
    %226 = vmatprep.subr.mxu0 %v48
    %227 = vmatpush1.msra.mxu0 %v47
    %228 = vmatprep.subr.mxu0 %v50
    %229 = vmatpush1.msra.mxu0 %v49
    %230 = vmatprep.subr.mxu0 %v222
    %231 = vmatpush1.msra.mxu0 %v219
    %232 = vmatprep.subr.mxu0 0.0
    %233 = vmatpush1.msra.mxu0 0.0
    %234 = vmatprep.subr.mxu0 0.0
    %235 = vmatpush1.msra.mxu0 0.0
    %236 = vmatprep.subr.mxu0 0.0
    %237 = vmatpush1.msra.mxu0 0.0
    %238 = vmatprep.subr.mxu0 0.0
    %239 = vmatpush1.msra.mxu0 0.0
    %240 = vmatprep.subr.mxu0 0.0
    %241 = vmatpush1.msra.mxu0 0.0
    %242 = vmatprep.subr.mxu0 0.0
    %243 = vmatpush1.msra.mxu0 0.0
    %244 = vmatprep.subr.mxu0 0.0
    %245 = vmatpush1.msra.mxu0 0.0
    %246 = vmatprep.subr.mxu0 0.0
    %247 = vmatpush1.msra.mxu0 0.0
    %248 = vmatprep.subr.mxu0 0.0
    %249 = vmatpush1.msra.mxu0 0.0
    %250 = vmatprep.subr.mxu0 0.0
    %251 = vmatpush1.msra.mxu0 0.0
    %252 = vmatprep.subr.mxu0 0.0
    %253 = vmatpush1.msra.mxu0 0.0
    %254 = vmatprep.subr.mxu0 0.0
    %255 = vmatpush1.msra.mxu0 0.0
    %256 = vmatprep.subr.mxu0 0.0
    %257 = vmatpush1.msra.mxu0 0.0
    %258 = vmatprep.subr.mxu0 0.0
    %259 = vmatpush1.msra.mxu0 0.0
    %260 = vmatprep.subr.mxu0 0.0
    %261 = vmatpush1.msra.mxu0 0.0
    %262 = vmatprep.subr.mxu0 0.0
    %263 = vmatpush1.msra.mxu0 0.0
    %264 = vmatprep.subr.mxu0 0.0
    %265 = vmatpush1.msra.mxu0 0.0
    %266 = vmatprep.subr.mxu0 0.0
    %267 = vmatpush1.msra.mxu0 0.0
    %268 = vmatprep.subr.mxu0 0.0
    %269 = vmatpush1.msra.mxu0 0.0
    %270 = vmatprep.subr.mxu0 0.0
    %271 = vmatpush1.msra.mxu0 0.0
    %272 = vmatprep.subr.mxu0 0.0
    %273 = vmatpush1.msra.mxu0 0.0
    %274 = vmatprep.subr.mxu0 0.0
    %275 = vmatpush1.msra.mxu0 0.0
    %276 = vmatprep.subr.mxu0 0.0
    %277 = vmatpush1.msra.mxu0 0.0
    %278 = vmatprep.subr.mxu0 0.0
    %279 = vmatpush1.msra.mxu0 0.0
    %280 = vmatprep.subr.mxu0 0.0
    %281 = vmatpush1.msra.mxu0 0.0
    %282 = vmatprep.subr.mxu0 0.0
    %283 = vmatpush1.msra.mxu0 0.0
    %284 = vmatprep.subr.mxu0 0.0
    %285 = vmatpush1.msra.mxu0 0.0
    %286 = vmatprep.subr.mxu0 0.0
    %287 = vmatpush1.msra.mxu0 0.0
    %288 = vmatprep.mubr.f32.mxu0 0.0
    %289 = vmatmul.mubr.f32.gmra.mrb[0].mxu0 %v206
    %v290 = vpop.f32.mrb[0].mxu0
    %v291 = vadd.f32 %v172, %v290
    %v292 = vpop.f32.mrb[0].mxu0
    %v293 = vadd.f32 %v174, %v292
    %294 = vmatprep.mubr.f32.mxu0 0.0
    %295 = vmatmul.mubr.f32.gmra.mrb[0].mxu0 %v208
    %v296 = vpop.f32.mrb[0].mxu0
    %v297 = vadd.f32 %v178, %v296
    %v298 = vpop.f32.mrb[0].mxu0
    %v299 = vadd.f32 %v180, %v298
    %300 = vmatprep.mubr.f32.mxu0 0.0
    %301 = vmatmul.mubr.f32.gmra.mrb[0].mxu0 %v210
    %v302 = vpop.f32.mrb[0].mxu0
    %v303 = vadd.f32 %v184, %v302
    %v304 = vpop.f32.mrb[0].mxu0
    %v305 = vadd.f32 %v186, %v304
    %306 = vmatprep.mubr.f32.mxu0 0.0
    %307 = vmatmul.mubr.f32.gmra.mrb[0].mxu0 %v212
    %v308 = vpop.f32.mrb[0].mxu0
    %v309 = vadd.f32 %v190, %v308
    %v310 = vpop.f32.mrb[0].mxu0
    %v311 = vadd.f32 %v192, %v310
    %312 = vmatprep.mubr.f32.mxu0 0.0
    %313 = vmatmul.mubr.f32.gmra.mrb[0].mxu0 %v214
    %v314 = vpop.f32.mrb[0].mxu0
    %v315 = vadd.f32 %v196, %v314
    %v316 = vpop.f32.mrb[0].mxu0
    %v317 = vadd.f32 %v198, %v316
    %318 = vmatprep.mubr.f32.mxu0 0.0
    %319 = vmatmul.mubr.f32.gmra.mrb[0].mxu0 %v216
    %v320 = vpop.f32.mrb[0].mxu0
    %v321 = vadd.f32 %v202, %v320
    %v322 = vpop.f32.mrb[0].mxu0
    %v323 = vadd.f32 %v204, %v322
    %324 = vdwg.mxu0
    %vm325 = vcmask 1045504
    %v326 = vrot.slane %v37, 2
    %v327 = vrot.slane %v38, 2
    %v328 = vsel %vm325, %v326, %v327
    %v329 = vrot.slane %v39, 2
    %v330 = vsel %vm325, %v327, %v329
    %v331 = vrot.slane %v40, 2
    %v332 = vsel %vm325, %v329, %v331
    %v333 = vrot.slane %v41, 2
    %v334 = vrot.slane %v42, 2
    %v335 = vsel %vm325, %v333, %v334
    %v336 = vrot.slane %v43, 2
    %v337 = vsel %vm325, %v334, %v336
    %v338 = vrot.slane %v44, 2
    %v339 = vsel %vm325, %v336, %v338
    %s340 = scalar_lea.vmem %s1, 128
    %v341 = vld [vmem:[%s340] sm:$0xff]
    %v342 = vld [vmem:[%s340 + $0x8] sm:$0xff]
    %v343 = vld [vmem:[%s340 + $0x10] sm:$0xff]
    %v344 = vld [vmem:[%s340 + $0x18] sm:$0xff]
    %v345 = vld [vmem:[%s340 + $0x20] sm:$0xff]
    %v346 = vld [vmem:[%s340 + $0x28] sm:$0xff]
    %v347 = vld [vmem:[%s340 + $0x30] sm:$0xf]
    %v348 = vld [vmem:[%s340 + $0x38] sm:$0xf]
    %v349 = vsel %vm85, %v328, 0
    %v351 = vsel %vm85, %v330, 0
    %v353 = vsel %vm85, %v332, 0
    %v355 = vsel %vm85, %v335, 0
    %v357 = vsel %vm85, %v337, 0
    %v359 = vsel %vm85, %v339, 0
    %v362 = vsel %vm98, %v347, 0
    %v365 = vsel %vm98, %v348, 0
    %367 = vmatprep.subr.mxu0 %v342
    %368 = vmatpush1.msra.mxu0 %v341
    %369 = vmatprep.subr.mxu0 %v344
    %370 = vmatpush1.msra.mxu0 %v343
    %371 = vmatprep.subr.mxu0 %v346
    %372 = vmatpush1.msra.mxu0 %v345
    %373 = vmatprep.subr.mxu0 %v365
    %374 = vmatpush1.msra.mxu0 %v362
    %375 = vmatprep.subr.mxu0 0.0
    %376 = vmatpush1.msra.mxu0 0.0
    %377 = vmatprep.subr.mxu0 0.0
    %378 = vmatpush1.msra.mxu0 0.0
    %379 = vmatprep.subr.mxu0 0.0
    %380 = vmatpush1.msra.mxu0 0.0
    %381 = vmatprep.subr.mxu0 0.0
    %382 = vmatpush1.msra.mxu0 0.0
    %383 = vmatprep.subr.mxu0 0.0
    %384 = vmatpush1.msra.mxu0 0.0
    %385 = vmatprep.subr.mxu0 0.0
    %386 = vmatpush1.msra.mxu0 0.0
    %387 = vmatprep.subr.mxu0 0.0
    %388 = vmatpush1.msra.mxu0 0.0
    %389 = vmatprep.subr.mxu0 0.0
    %390 = vmatpush1.msra.mxu0 0.0
    %391 = vmatprep.subr.mxu0 0.0
    %392 = vmatpush1.msra.mxu0 0.0
    %393 = vmatprep.subr.mxu0 0.0
    %394 = vmatpush1.msra.mxu0 0.0
    %395 = vmatprep.subr.mxu0 0.0
    %396 = vmatpush1.msra.mxu0 0.0
    %397 = vmatprep.subr.mxu0 0.0
    %398 = vmatpush1.msra.mxu0 0.0
    %399 = vmatprep.subr.mxu0 0.0
    %400 = vmatpush1.msra.mxu0 0.0
    %401 = vmatprep.subr.mxu0 0.0
    %402 = vmatpush1.msra.mxu0 0.0
    %403 = vmatprep.subr.mxu0 0.0
    %404 = vmatpush1.msra.mxu0 0.0
    %405 = vmatprep.subr.mxu0 0.0
    %406 = vmatpush1.msra.mxu0 0.0
    %407 = vmatprep.subr.mxu0 0.0
    %408 = vmatpush1.msra.mxu0 0.0
    %409 = vmatprep.subr.mxu0 0.0
    %410 = vmatpush1.msra.mxu0 0.0
    %411 = vmatprep.subr.mxu0 0.0
    %412 = vmatpush1.msra.mxu0 0.0
    %413 = vmatprep.subr.mxu0 0.0
    %414 = vmatpush1.msra.mxu0 0.0
    %415 = vmatprep.subr.mxu0 0.0
    %416 = vmatpush1.msra.mxu0 0.0
    %417 = vmatprep.subr.mxu0 0.0
    %418 = vmatpush1.msra.mxu0 0.0
    %419 = vmatprep.subr.mxu0 0.0
    %420 = vmatpush1.msra.mxu0 0.0
    %421 = vmatprep.subr.mxu0 0.0
    %422 = vmatpush1.msra.mxu0 0.0
    %423 = vmatprep.subr.mxu0 0.0
    %424 = vmatpush1.msra.mxu0 0.0
    %425 = vmatprep.subr.mxu0 0.0
    %426 = vmatpush1.msra.mxu0 0.0
    %427 = vmatprep.subr.mxu0 0.0
    %428 = vmatpush1.msra.mxu0 0.0
    %429 = vmatprep.subr.mxu0 0.0
    %430 = vmatpush1.msra.mxu0 0.0
    %431 = vmatprep.mubr.f32.mxu0 0.0
    %432 = vmatmul.mubr.f32.gmra.mrb[0].mxu0 %v349
    %v433 = vpop.f32.mrb[0].mxu0
    %v434 = vadd.f32 0.0, %v433
    %v435 = vpop.f32.mrb[0].mxu0
    %v436 = vadd.f32 0.0, %v435
    %437 = vmatprep.mubr.f32.mxu0 0.0
    %438 = vmatmul.mubr.f32.gmra.mrb[0].mxu0 %v351
    %v439 = vpop.f32.mrb[0].mxu0
    %v440 = vadd.f32 0.0, %v439
    %v441 = vpop.f32.mrb[0].mxu0
    %v442 = vadd.f32 0.0, %v441
    %443 = vmatprep.mubr.f32.mxu0 0.0
    %444 = vmatmul.mubr.f32.gmra.mrb[0].mxu0 %v353
    %v445 = vpop.f32.mrb[0].mxu0
    %v446 = vadd.f32 0.0, %v445
    %v447 = vpop.f32.mrb[0].mxu0
    %v448 = vadd.f32 0.0, %v447
    %449 = vmatprep.mubr.f32.mxu0 0.0
    %450 = vmatmul.mubr.f32.gmra.mrb[0].mxu0 %v355
    %v451 = vpop.f32.mrb[0].mxu0
    %v452 = vadd.f32 0.0, %v451
    %v453 = vpop.f32.mrb[0].mxu0
    %v454 = vadd.f32 0.0, %v453
    %455 = vmatprep.mubr.f32.mxu0 0.0
    %456 = vmatmul.mubr.f32.gmra.mrb[0].mxu0 %v357
    %v457 = vpop.f32.mrb[0].mxu0
    %v458 = vadd.f32 0.0, %v457
    %v459 = vpop.f32.mrb[0].mxu0
    %v460 = vadd.f32 0.0, %v459
    %461 = vmatprep.mubr.f32.mxu0 0.0
    %462 = vmatmul.mubr.f32.gmra.mrb[0].mxu0 %v359
    %v463 = vpop.f32.mrb[0].mxu0
    %v464 = vadd.f32 0.0, %v463
    %v465 = vpop.f32.mrb[0].mxu0
    %v466 = vadd.f32 0.0, %v465
    %467 = vdwg.mxu0
    %v468 = vadd.f32 %v291, %v434
    %v469 = vadd.f32 %v293, %v436
    %v470 = vadd.f32 %v297, %v440
    %v471 = vadd.f32 %v299, %v442
    %v472 = vadd.f32 %v303, %v446
    %v473 = vadd.f32 %v305, %v448
    %v474 = vadd.f32 %v309, %v452
    %v475 = vadd.f32 %v311, %v454
    %v476 = vadd.f32 %v315, %v458
    %v477 = vadd.f32 %v317, %v460
    %v478 = vadd.f32 %v321, %v464
    %v479 = vadd.f32 %v323, %v466
    %vm480 = vcmask 1044480
    %v481 = vrot.slane %v37, 3
    %v482 = vrot.slane %v38, 3
    %v483 = vsel %vm480, %v481, %v482
    %v484 = vrot.slane %v39, 3
    %v485 = vsel %vm480, %v482, %v484
    %v486 = vrot.slane %v40, 3
    %v487 = vsel %vm480, %v484, %v486
    %v488 = vrot.slane %v41, 3
    %v489 = vrot.slane %v42, 3
    %v490 = vsel %vm480, %v488, %v489
    %v491 = vrot.slane %v43, 3
    %v492 = vsel %vm480, %v489, %v491
    %v493 = vrot.slane %v44, 3
    %v494 = vsel %vm480, %v491, %v493
    %s495 = scalar_lea.vmem %s1, 192
    %v496 = vld [vmem:[%s495] sm:$0xff]
    %v497 = vld [vmem:[%s495 + $0x8] sm:$0xff]
    %v498 = vld [vmem:[%s495 + $0x10] sm:$0xff]
    %v499 = vld [vmem:[%s495 + $0x18] sm:$0xff]
    %v500 = vld [vmem:[%s495 + $0x20] sm:$0xff]
    %v501 = vld [vmem:[%s495 + $0x28] sm:$0xff]
    %v502 = vld [vmem:[%s495 + $0x30] sm:$0xf]
    %v503 = vld [vmem:[%s495 + $0x38] sm:$0xf]
    %v504 = vsel %vm85, %v483, 0
    %v506 = vsel %vm85, %v485, 0
    %v508 = vsel %vm85, %v487, 0
    %v510 = vsel %vm85, %v490, 0
    %v512 = vsel %vm85, %v492, 0
    %v514 = vsel %vm85, %v494, 0
    %v517 = vsel %vm98, %v502, 0
    %v520 = vsel %vm98, %v503, 0
    %522 = vmatprep.subr.mxu0 %v497
    %523 = vmatpush1.msra.mxu0 %v496
    %524 = vmatprep.subr.mxu0 %v499
    %525 = vmatpush1.msra.mxu0 %v498
    %526 = vmatprep.subr.mxu0 %v501
    %527 = vmatpush1.msra.mxu0 %v500
    %528 = vmatprep.subr.mxu0 %v520
    %529 = vmatpush1.msra.mxu0 %v517
    %530 = vmatprep.subr.mxu0 0.0
    %531 = vmatpush1.msra.mxu0 0.0
    %532 = vmatprep.subr.mxu0 0.0
    %533 = vmatpush1.msra.mxu0 0.0
    %534 = vmatprep.subr.mxu0 0.0
    %535 = vmatpush1.msra.mxu0 0.0
    %536 = vmatprep.subr.mxu0 0.0
    %537 = vmatpush1.msra.mxu0 0.0
    %538 = vmatprep.subr.mxu0 0.0
    %539 = vmatpush1.msra.mxu0 0.0
    %540 = vmatprep.subr.mxu0 0.0
    %541 = vmatpush1.msra.mxu0 0.0
    %542 = vmatprep.subr.mxu0 0.0
    %543 = vmatpush1.msra.mxu0 0.0
    %544 = vmatprep.subr.mxu0 0.0
    %545 = vmatpush1.msra.mxu0 0.0
    %546 = vmatprep.subr.mxu0 0.0
    %547 = vmatpush1.msra.mxu0 0.0
    %548 = vmatprep.subr.mxu0 0.0
    %549 = vmatpush1.msra.mxu0 0.0
    %550 = vmatprep.subr.mxu0 0.0
    %551 = vmatpush1.msra.mxu0 0.0
    %552 = vmatprep.subr.mxu0 0.0
    %553 = vmatpush1.msra.mxu0 0.0
    %554 = vmatprep.subr.mxu0 0.0
    %555 = vmatpush1.msra.mxu0 0.0
    %556 = vmatprep.subr.mxu0 0.0
    %557 = vmatpush1.msra.mxu0 0.0
    %558 = vmatprep.subr.mxu0 0.0
    %559 = vmatpush1.msra.mxu0 0.0
    %560 = vmatprep.subr.mxu0 0.0
    %561 = vmatpush1.msra.mxu0 0.0
    %562 = vmatprep.subr.mxu0 0.0
    %563 = vmatpush1.msra.mxu0 0.0
    %564 = vmatprep.subr.mxu0 0.0
    %565 = vmatpush1.msra.mxu0 0.0
    %566 = vmatprep.subr.mxu0 0.0
    %567 = vmatpush1.msra.mxu0 0.0
    %568 = vmatprep.subr.mxu0 0.0
    %569 = vmatpush1.msra.mxu0 0.0
    %570 = vmatprep.subr.mxu0 0.0
    %571 = vmatpush1.msra.mxu0 0.0
    %572 = vmatprep.subr.mxu0 0.0
    %573 = vmatpush1.msra.mxu0 0.0
    %574 = vmatprep.subr.mxu0 0.0
    %575 = vmatpush1.msra.mxu0 0.0
    %576 = vmatprep.subr.mxu0 0.0
    %577 = vmatpush1.msra.mxu0 0.0
    %578 = vmatprep.subr.mxu0 0.0
    %579 = vmatpush1.msra.mxu0 0.0
    %580 = vmatprep.subr.mxu0 0.0
    %581 = vmatpush1.msra.mxu0 0.0
    %582 = vmatprep.subr.mxu0 0.0
    %583 = vmatpush1.msra.mxu0 0.0
    %584 = vmatprep.subr.mxu0 0.0
    %585 = vmatpush1.msra.mxu0 0.0
    %586 = vmatprep.mubr.f32.mxu0 0.0
    %587 = vmatmul.mubr.f32.gmra.mrb[0].mxu0 %v504
    %v588 = vpop.f32.mrb[0].mxu0
    %v589 = vadd.f32 0.0, %v588
    %v590 = vpop.f32.mrb[0].mxu0
    %v591 = vadd.f32 0.0, %v590
    %592 = vmatprep.mubr.f32.mxu0 0.0
    %593 = vmatmul.mubr.f32.gmra.mrb[0].mxu0 %v506
    %v594 = vpop.f32.mrb[0].mxu0
    %v595 = vadd.f32 0.0, %v594
    %v596 = vpop.f32.mrb[0].mxu0
    %v597 = vadd.f32 0.0, %v596
    %598 = vmatprep.mubr.f32.mxu0 0.0
    %599 = vmatmul.mubr.f32.gmra.mrb[0].mxu0 %v508
    %v600 = vpop.f32.mrb[0].mxu0
    %v601 = vadd.f32 0.0, %v600
    %v602 = vpop.f32.mrb[0].mxu0
    %v603 = vadd.f32 0.0, %v602
    %604 = vmatprep.mubr.f32.mxu0 0.0
    %605 = vmatmul.mubr.f32.gmra.mrb[0].mxu0 %v510
    %v606 = vpop.f32.mrb[0].mxu0
    %v607 = vadd.f32 0.0, %v606
    %v608 = vpop.f32.mrb[0].mxu0
    %v609 = vadd.f32 0.0, %v608
    %610 = vmatprep.mubr.f32.mxu0 0.0
    %611 = vmatmul.mubr.f32.gmra.mrb[0].mxu0 %v512
    %v612 = vpop.f32.mrb[0].mxu0
    %v613 = vadd.f32 0.0, %v612
    %v614 = vpop.f32.mrb[0].mxu0
    %v615 = vadd.f32 0.0, %v614
    %616 = vmatprep.mubr.f32.mxu0 0.0
    %617 = vmatmul.mubr.f32.gmra.mrb[0].mxu0 %v514
    %v618 = vpop.f32.mrb[0].mxu0
    %v619 = vadd.f32 0.0, %v618
    %v620 = vpop.f32.mrb[0].mxu0
    %v621 = vadd.f32 0.0, %v620
    %622 = vdwg.mxu0
    %v623 = vadd.f32 %v468, %v589
    %v624 = vadd.f32 %v469, %v591
    %v625 = vadd.f32 %v470, %v595
    %v626 = vadd.f32 %v471, %v597
    %v627 = vadd.f32 %v472, %v601
    %v628 = vadd.f32 %v473, %v603
    %v629 = vadd.f32 %v474, %v607
    %v630 = vadd.f32 %v475, %v609
    %v631 = vadd.f32 %v476, %v613
    %v632 = vadd.f32 %v477, %v615
    %v633 = vadd.f32 %v478, %v619
    %v634 = vadd.f32 %v479, %v621
    %v635 = vrot.slane %v37, 4
    %v636 = vrot.slane %v38, 4
    %v637 = vsel %vm98, %v635, %v636
    %v638 = vrot.slane %v39, 4
    %v639 = vsel %vm98, %v636, %v638
    %v640 = vrot.slane %v40, 4
    %v641 = vsel %vm98, %v638, %v640
    %v642 = vrot.slane %v41, 4
    %v643 = vrot.slane %v42, 4
    %v644 = vsel %vm98, %v642, %v643
    %v645 = vrot.slane %v43, 4
    %v646 = vsel %vm98, %v643, %v645
    %v647 = vrot.slane %v44, 4
    %v648 = vsel %vm98, %v645, %v647
    %s649 = scalar_lea.vmem %s1, 256
    %v650 = vld [vmem:[%s649] sm:$0xff]
    %v651 = vld [vmem:[%s649 + $0x8] sm:$0xff]
    %v652 = vld [vmem:[%s649 + $0x10] sm:$0xff]
    %v653 = vld [vmem:[%s649 + $0x18] sm:$0xff]
    %v654 = vld [vmem:[%s649 + $0x20] sm:$0xff]
    %v655 = vld [vmem:[%s649 + $0x28] sm:$0xff]
    %v656 = vld [vmem:[%s649 + $0x30] sm:$0xf]
    %v657 = vld [vmem:[%s649 + $0x38] sm:$0xf]
    %v658 = vsel %vm85, %v637, 0
    %v660 = vsel %vm85, %v639, 0
    %v662 = vsel %vm85, %v641, 0
    %v664 = vsel %vm85, %v644, 0
    %v666 = vsel %vm85, %v646, 0
    %v668 = vsel %vm85, %v648, 0
    %v671 = vsel %vm98, %v656, 0
    %v674 = vsel %vm98, %v657, 0
    %676 = vmatprep.subr.mxu0 %v651
    %677 = vmatpush1.msra.mxu0 %v650
    %678 = vmatprep.subr.mxu0 %v653
    %679 = vmatpush1.msra.mxu0 %v652
    %680 = vmatprep.subr.mxu0 %v655
    %681 = vmatpush1.msra.mxu0 %v654
    %682 = vmatprep.subr.mxu0 %v674
    %683 = vmatpush1.msra.mxu0 %v671
    %684 = vmatprep.subr.mxu0 0.0
    %685 = vmatpush1.msra.mxu0 0.0
    %686 = vmatprep.subr.mxu0 0.0
    %687 = vmatpush1.msra.mxu0 0.0
    %688 = vmatprep.subr.mxu0 0.0
    %689 = vmatpush1.msra.mxu0 0.0
    %690 = vmatprep.subr.mxu0 0.0
    %691 = vmatpush1.msra.mxu0 0.0
    %692 = vmatprep.subr.mxu0 0.0
    %693 = vmatpush1.msra.mxu0 0.0
    %694 = vmatprep.subr.mxu0 0.0
    %695 = vmatpush1.msra.mxu0 0.0
    %696 = vmatprep.subr.mxu0 0.0
    %697 = vmatpush1.msra.mxu0 0.0
    %698 = vmatprep.subr.mxu0 0.0
    %699 = vmatpush1.msra.mxu0 0.0
    %700 = vmatprep.subr.mxu0 0.0
    %701 = vmatpush1.msra.mxu0 0.0
    %702 = vmatprep.subr.mxu0 0.0
    %703 = vmatpush1.msra.mxu0 0.0
    %704 = vmatprep.subr.mxu0 0.0
    %705 = vmatpush1.msra.mxu0 0.0
    %706 = vmatprep.subr.mxu0 0.0
    %707 = vmatpush1.msra.mxu0 0.0
    %708 = vmatprep.subr.mxu0 0.0
    %709 = vmatpush1.msra.mxu0 0.0
    %710 = vmatprep.subr.mxu0 0.0
    %711 = vmatpush1.msra.mxu0 0.0
    %712 = vmatprep.subr.mxu0 0.0
    %713 = vmatpush1.msra.mxu0 0.0
    %714 = vmatprep.subr.mxu0 0.0
    %715 = vmatpush1.msra.mxu0 0.0
    %716 = vmatprep.subr.mxu0 0.0
    %717 = vmatpush1.msra.mxu0 0.0
    %718 = vmatprep.subr.mxu0 0.0
    %719 = vmatpush1.msra.mxu0 0.0
    %720 = vmatprep.subr.mxu0 0.0
    %721 = vmatpush1.msra.mxu0 0.0
    %722 = vmatprep.subr.mxu0 0.0
    %723 = vmatpush1.msra.mxu0 0.0
    %724 = vmatprep.subr.mxu0 0.0
    %725 = vmatpush1.msra.mxu0 0.0
    %726 = vmatprep.subr.mxu0 0.0
    %727 = vmatpush1.msra.mxu0 0.0
    %728 = vmatprep.subr.mxu0 0.0
    %729 = vmatpush1.msra.mxu0 0.0
    %730 = vmatprep.subr.mxu0 0.0
    %731 = vmatpush1.msra.mxu0 0.0
    %732 = vmatprep.subr.mxu0 0.0
    %733 = vmatpush1.msra.mxu0 0.0
    %734 = vmatprep.subr.mxu0 0.0
    %735 = vmatpush1.msra.mxu0 0.0
    %736 = vmatprep.subr.mxu0 0.0
    %737 = vmatpush1.msra.mxu0 0.0
    %738 = vmatprep.subr.mxu0 0.0
    %739 = vmatpush1.msra.mxu0 0.0
    %740 = vmatprep.mubr.f32.mxu0 0.0
    %741 = vmatmul.mubr.f32.gmra.mrb[0].mxu0 %v658
    %v742 = vpop.f32.mrb[0].mxu0
    %v743 = vadd.f32 0.0, %v742
    %v744 = vpop.f32.mrb[0].mxu0
    %v745 = vadd.f32 0.0, %v744
    %746 = vmatprep.mubr.f32.mxu0 0.0
    %747 = vmatmul.mubr.f32.gmra.mrb[0].mxu0 %v660
    %v748 = vpop.f32.mrb[0].mxu0
    %v749 = vadd.f32 0.0, %v748
    %v750 = vpop.f32.mrb[0].mxu0
    %v751 = vadd.f32 0.0, %v750
    %752 = vmatprep.mubr.f32.mxu0 0.0
    %753 = vmatmul.mubr.f32.gmra.mrb[0].mxu0 %v662
    %v754 = vpop.f32.mrb[0].mxu0
    %v755 = vadd.f32 0.0, %v754
    %v756 = vpop.f32.mrb[0].mxu0
    %v757 = vadd.f32 0.0, %v756
    %758 = vmatprep.mubr.f32.mxu0 0.0
    %759 = vmatmul.mubr.f32.gmra.mrb[0].mxu0 %v664
    %v760 = vpop.f32.mrb[0].mxu0
    %v761 = vadd.f32 0.0, %v760
    %v762 = vpop.f32.mrb[0].mxu0
    %v763 = vadd.f32 0.0, %v762
    %764 = vmatprep.mubr.f32.mxu0 0.0
    %765 = vmatmul.mubr.f32.gmra.mrb[0].mxu0 %v666
    %v766 = vpop.f32.mrb[0].mxu0
    %v767 = vadd.f32 0.0, %v766
    %v768 = vpop.f32.mrb[0].mxu0
    %v769 = vadd.f32 0.0, %v768
    %770 = vmatprep.mubr.f32.mxu0 0.0
    %771 = vmatmul.mubr.f32.gmra.mrb[0].mxu0 %v668
    %v772 = vpop.f32.mrb[0].mxu0
    %v773 = vadd.f32 0.0, %v772
    %v774 = vpop.f32.mrb[0].mxu0
    %v775 = vadd.f32 0.0, %v774
    %776 = vdwg.mxu0
    %v777 = vadd.f32 %v623, %v743
    %v778 = vadd.f32 %v624, %v745
    %v779 = vadd.f32 %v625, %v749
    %v780 = vadd.f32 %v626, %v751
    %v781 = vadd.f32 %v627, %v755
    %v782 = vadd.f32 %v628, %v757
    %v783 = vadd.f32 %v629, %v761
    %v784 = vadd.f32 %v630, %v763
    %v785 = vadd.f32 %v631, %v767
    %v786 = vadd.f32 %v632, %v769
    %v787 = vadd.f32 %v633, %v773
    %v788 = vadd.f32 %v634, %v775
    %801 = vrot.lane.b32.xlu0 %v777, 8
    %v802 = vpop.permute.xlu0 %801
    %803 = vrot.lane.b32.xlu0 %v778, 8
    %v804 = vpop.permute.xlu0 %803
    %805 = vrot.lane.b32.xlu0 %v779, 8
    %v806 = vpop.permute.xlu0 %805
    %807 = vrot.lane.b32.xlu0 %v780, 8
    %v808 = vpop.permute.xlu0 %807
    %809 = vrot.lane.b32.xlu0 %v781, 8
    %v810 = vpop.permute.xlu0 %809
    %811 = vrot.lane.b32.xlu0 %v782, 8
    %v812 = vpop.permute.xlu0 %811
    %813 = vrot.lane.b32.xlu0 %v783, 8
    %v814 = vpop.permute.xlu0 %813
    %815 = vrot.lane.b32.xlu0 %v784, 8
    %v816 = vpop.permute.xlu0 %815
    %817 = vrot.lane.b32.xlu0 %v785, 8
    %v818 = vpop.permute.xlu0 %817
    %819 = vrot.lane.b32.xlu0 %v786, 8
    %v820 = vpop.permute.xlu0 %819
    %821 = vrot.lane.b32.xlu0 %v787, 8
    %v822 = vpop.permute.xlu0 %821
    %823 = vrot.lane.b32.xlu0 %v788, 8
    %v824 = vpop.permute.xlu0 %823
    %vm825 = vcmask 64512
    %v826 = vsel %vm825, %v802, %v804
    %v827 = vsel %vm825, %v806, %v808
    %v828 = vsel %vm825, %v810, %v812
    %v829 = vsel %vm825, %v814, %v816
    %v830 = vsel %vm825, %v818, %v820
    %v831 = vsel %vm825, %v822, %v824
    %v838 = vmax.f32 %v777, %v826
    %v839 = vmax.f32 %v779, %v827
    %v840 = vmax.f32 %v781, %v828
    %v841 = vmax.f32 %v783, %v829
    %v842 = vmax.f32 %v785, %v830
    %v843 = vmax.f32 %v787, %v831
    %v844 = vld [vmem:[%s6] sm:$0xff]
    %v845 = vld [vmem:[%s6 + $0x8] sm:$0xff]
    %v846 = vld [vmem:[%s6 + $0x10] sm:$0xff]
    %v847 = vld [vmem:[%s6 + $0x18] sm:$0xff]
    %s848 = scalar_lea.vmem %s6, 32
    %v849 = vld [vmem:[%s848] sm:$0xff]
    %v850 = vld [vmem:[%s848 + $0x8] sm:$0xff]
    %v851 = vld [vmem:[%s848 + $0x10] sm:$0xff]
    %v852 = vld [vmem:[%s848 + $0x18] sm:$0xff]
    %vm853 = vcmask 392192
    %v855 = vsel %vm853, %v844, 0
    %v858 = vsel %vm853, %v845, 0
    %v861 = vsel %vm853, %v846, 0
    %v864 = vsel %vm853, %v847, 0
    %866 = vmatprep.subr.mxu0 0.0
    %867 = vmatpush1.msra.mxu0 %v838
    %868 = vmatprep.subr.mxu0 0.0
    %869 = vmatpush1.msra.mxu0 %v839
    %870 = vmatprep.subr.mxu0 0.0
    %871 = vmatpush1.msra.mxu0 %v840
    %872 = vmatprep.subr.mxu0 0.0
    %873 = vmatpush1.msra.mxu0 %v841
    %874 = vmatprep.subr.mxu0 0.0
    %875 = vmatpush1.msra.mxu0 %v842
    %876 = vmatprep.subr.mxu0 0.0
    %877 = vmatpush1.msra.mxu0 %v843
    %878 = vmatprep.subr.mxu0 0.0
    %879 = vmatpush1.msra.mxu0 0.0
    %880 = vmatprep.subr.mxu0 0.0
    %881 = vmatpush1.msra.mxu0 0.0
    %882 = vmatprep.subr.mxu0 0.0
    %883 = vmatpush1.msra.mxu0 0.0
    %884 = vmatprep.subr.mxu0 0.0
    %885 = vmatpush1.msra.mxu0 0.0
    %886 = vmatprep.subr.mxu0 0.0
    %887 = vmatpush1.msra.mxu0 0.0
    %888 = vmatprep.subr.mxu0 0.0
    %889 = vmatpush1.msra.mxu0 0.0
    %890 = vmatprep.subr.mxu0 0.0
    %891 = vmatpush1.msra.mxu0 0.0
    %892 = vmatprep.subr.mxu0 0.0
    %893 = vmatpush1.msra.mxu0 0.0
    %894 = vmatprep.subr.mxu0 0.0
    %895 = vmatpush1.msra.mxu0 0.0
    %896 = vmatprep.subr.mxu0 0.0
    %897 = vmatpush1.msra.mxu0 0.0
    %898 = vmatprep.subr.mxu0 0.0
    %899 = vmatpush1.msra.mxu0 0.0
    %900 = vmatprep.subr.mxu0 0.0
    %901 = vmatpush1.msra.mxu0 0.0
    %902 = vmatprep.subr.mxu0 0.0
    %903 = vmatpush1.msra.mxu0 0.0
    %904 = vmatprep.subr.mxu0 0.0
    %905 = vmatpush1.msra.mxu0 0.0
    %906 = vmatprep.subr.mxu0 0.0
    %907 = vmatpush1.msra.mxu0 0.0
    %908 = vmatprep.subr.mxu0 0.0
    %909 = vmatpush1.msra.mxu0 0.0
    %910 = vmatprep.subr.mxu0 0.0
    %911 = vmatpush1.msra.mxu0 0.0
    %912 = vmatprep.subr.mxu0 0.0
    %913 = vmatpush1.msra.mxu0 0.0
    %914 = vmatprep.subr.mxu0 0.0
    %915 = vmatpush1.msra.mxu0 0.0
    %916 = vmatprep.subr.mxu0 0.0
    %917 = vmatpush1.msra.mxu0 0.0
    %918 = vmatprep.subr.mxu0 0.0
    %919 = vmatpush1.msra.mxu0 0.0
    %920 = vmatprep.subr.mxu0 0.0
    %921 = vmatpush1.msra.mxu0 0.0
    %922 = vmatprep.subr.mxu0 0.0
    %923 = vmatpush1.msra.mxu0 0.0
    %924 = vmatprep.subr.mxu0 0.0
    %925 = vmatpush1.msra.mxu0 0.0
    %926 = vmatprep.subr.mxu0 0.0
    %927 = vmatpush1.msra.mxu0 0.0
    %928 = vmatprep.subr.mxu0 0.0
    %929 = vmatpush1.msra.mxu0 0.0
    %930 = vmatprep.mubr.f32.mxu0 0.0
    %931 = vmatmul.mubr.f32.gmra.mrb[0].mxu0 %v855
    %v932 = vpop.f32.mrb[0].mxu0
    %v933 = vadd.f32 0.0, %v932
    %v934 = vpop.f32.mrb[0].mxu0
    %935 = vmatprep.mubr.f32.mxu0 0.0
    %936 = vmatmul.mubr.f32.gmra.mrb[0].mxu0 %v858
    %v937 = vpop.f32.mrb[0].mxu0
    %v938 = vadd.f32 0.0, %v937
    %v939 = vpop.f32.mrb[0].mxu0
    %940 = vmatprep.mubr.f32.mxu0 0.0
    %941 = vmatmul.mubr.f32.gmra.mrb[0].mxu0 %v861
    %v942 = vpop.f32.mrb[0].mxu0
    %v943 = vadd.f32 0.0, %v942
    %v944 = vpop.f32.mrb[0].mxu0
    %945 = vmatprep.mubr.f32.mxu0 0.0
    %946 = vmatmul.mubr.f32.gmra.mrb[0].mxu0 %v864
    %v947 = vpop.f32.mrb[0].mxu0
    %v948 = vadd.f32 0.0, %v947
    %v949 = vpop.f32.mrb[0].mxu0
    %950 = vdwg.mxu0
    %v952 = vsel %vm853, %v849, 0
    %v955 = vsel %vm853, %v850, 0
    %v958 = vsel %vm853, %v851, 0
    %v961 = vsel %vm853, %v852, 0
    %963 = vmatprep.subr.mxu0 0.0
    %964 = vmatpush1.msra.mxu0 %v838
    %965 = vmatprep.subr.mxu0 0.0
    %966 = vmatpush1.msra.mxu0 %v839
    %967 = vmatprep.subr.mxu0 0.0
    %968 = vmatpush1.msra.mxu0 %v840
    %969 = vmatprep.subr.mxu0 0.0
    %970 = vmatpush1.msra.mxu0 %v841
    %971 = vmatprep.subr.mxu0 0.0
    %972 = vmatpush1.msra.mxu0 %v842
    %973 = vmatprep.subr.mxu0 0.0
    %974 = vmatpush1.msra.mxu0 %v843
    %975 = vmatprep.subr.mxu0 0.0
    %976 = vmatpush1.msra.mxu0 0.0
    %977 = vmatprep.subr.mxu0 0.0
    %978 = vmatpush1.msra.mxu0 0.0
    %979 = vmatprep.subr.mxu0 0.0
    %980 = vmatpush1.msra.mxu0 0.0
    %981 = vmatprep.subr.mxu0 0.0
    %982 = vmatpush1.msra.mxu0 0.0
    %983 = vmatprep.subr.mxu0 0.0
    %984 = vmatpush1.msra.mxu0 0.0
    %985 = vmatprep.subr.mxu0 0.0
    %986 = vmatpush1.msra.mxu0 0.0
    %987 = vmatprep.subr.mxu0 0.0
    %988 = vmatpush1.msra.mxu0 0.0
    %989 = vmatprep.subr.mxu0 0.0
    %990 = vmatpush1.msra.mxu0 0.0
    %991 = vmatprep.subr.mxu0 0.0
    %992 = vmatpush1.msra.mxu0 0.0
    %993 = vmatprep.subr.mxu0 0.0
    %994 = vmatpush1.msra.mxu0 0.0
    %995 = vmatprep.subr.mxu0 0.0
    %996 = vmatpush1.msra.mxu0 0.0
    %997 = vmatprep.subr.mxu0 0.0
    %998 = vmatpush1.msra.mxu0 0.0
    %999 = vmatprep.subr.mxu0 0.0
    %1000 = vmatpush1.msra.mxu0 0.0
    %1001 = vmatprep.subr.mxu0 0.0
    %1002 = vmatpush1.msra.mxu0 0.0
    %1003 = vmatprep.subr.mxu0 0.0
    %1004 = vmatpush1.msra.mxu0 0.0
    %1005 = vmatprep.subr.mxu0 0.0
    %1006 = vmatpush1.msra.mxu0 0.0
    %1007 = vmatprep.subr.mxu0 0.0
    %1008 = vmatpush1.msra.mxu0 0.0
    %1009 = vmatprep.subr.mxu0 0.0
    %1010 = vmatpush1.msra.mxu0 0.0
    %1011 = vmatprep.subr.mxu0 0.0
    %1012 = vmatpush1.msra.mxu0 0.0
    %1013 = vmatprep.subr.mxu0 0.0
    %1014 = vmatpush1.msra.mxu0 0.0
    %1015 = vmatprep.subr.mxu0 0.0
    %1016 = vmatpush1.msra.mxu0 0.0
    %1017 = vmatprep.subr.mxu0 0.0
    %1018 = vmatpush1.msra.mxu0 0.0
    %1019 = vmatprep.subr.mxu0 0.0
    %1020 = vmatpush1.msra.mxu0 0.0
    %1021 = vmatprep.subr.mxu0 0.0
    %1022 = vmatpush1.msra.mxu0 0.0
    %1023 = vmatprep.subr.mxu0 0.0
    %1024 = vmatpush1.msra.mxu0 0.0
    %1025 = vmatprep.subr.mxu0 0.0
    %1026 = vmatpush1.msra.mxu0 0.0
    %1027 = vmatprep.mubr.f32.mxu0 0.0
    %1028 = vmatmul.mubr.f32.gmra.mrb[0].mxu0 %v952
    %v1029 = vpop.f32.mrb[0].mxu0
    %v1030 = vadd.f32 0.0, %v1029
    %v1031 = vpop.f32.mrb[0].mxu0
    %1032 = vmatprep.mubr.f32.mxu0 0.0
    %1033 = vmatmul.mubr.f32.gmra.mrb[0].mxu0 %v955
    %v1034 = vpop.f32.mrb[0].mxu0
    %v1035 = vadd.f32 0.0, %v1034
    %v1036 = vpop.f32.mrb[0].mxu0
    %1037 = vmatprep.mubr.f32.mxu0 0.0
    %1038 = vmatmul.mubr.f32.gmra.mrb[0].mxu0 %v958
    %v1039 = vpop.f32.mrb[0].mxu0
    %v1040 = vadd.f32 0.0, %v1039
    %v1041 = vpop.f32.mrb[0].mxu0
    %1042 = vmatprep.mubr.f32.mxu0 0.0
    %1043 = vmatmul.mubr.f32.gmra.mrb[0].mxu0 %v961
    %v1044 = vpop.f32.mrb[0].mxu0
    %v1045 = vadd.f32 0.0, %v1044
    %v1046 = vpop.f32.mrb[0].mxu0
    %1047 = vdwg.mxu0
    %v1048 = vmax.f32 %v933, %v1030
    %v1049 = vmax.f32 %v938, %v1035
    %v1050 = vmax.f32 %v943, %v1040
    %v1051 = vmax.f32 %v948, %v1045
    %v1052 = vlaneseq
    %v1053 = vshrl.u32 %v1052, 7
    %v1054 = vsub.s32 0, %v1053
    %v1055 = vrot.slane %v36, %v1054
    %v1056 = vadd.f32 %v1048, %v1055
    %v1057 = vadd.f32 %v1049, %v1055
    %v1058 = vadd.f32 %v1050, %v1055
    %v1059 = vadd.f32 %v1051, %v1055
    %v1060 = vmax.f32 %v1056, 0.0
    %v1061 = vmax.f32 %v1057, 0.0
    %v1062 = vmax.f32 %v1058, 0.0
    %v1063 = vmax.f32 %v1059, 0.0
    %v1064 = vsel %vm853, %v844, 0.0
    %1065 = vadd.xlane.f32.xlu0 %v1064
    %v1066 = vpop.xlane.xlu0 %1065
    %v1067 = vsel %vm853, %v845, 0.0
    %1068 = vadd.xlane.f32.xlu0 %v1067
    %v1069 = vpop.xlane.xlu0 %1068
    %v1070 = vsel %vm853, %v846, 0.0
    %1071 = vadd.xlane.f32.xlu0 %v1070
    %v1072 = vpop.xlane.xlu0 %1071
    %v1073 = vsel %vm853, %v847, 0.0
    %1074 = vadd.xlane.f32.xlu0 %v1073
    %v1075 = vpop.xlane.xlu0 %1074
    %v1076 = vmul.f32 %v1060, %v1066
    %v1077 = vmul.f32 %v1061, %v1069
    %v1078 = vmul.f32 %v1062, %v1072
    %v1079 = vmul.f32 %v1063, %v1075
    %vm1080 = vcmask 982016
    %v1081 = vsel %vm1080, %v1076, 0.0
    %v1082 = vsel %vm1080, %v1077, 0.0
    %v1083 = vadd.f32 %v1081, %v1082
    %v1084 = vsel %vm1080, %v1078, 0.0
    %v1085 = vadd.f32 %v1083, %v1084
    %v1086 = vsel %vm1080, %v1079, 0.0
    %v1087 = vadd.f32 %v1085, %v1086
    %v1088 = vrot.slane %v1087, 4
    %v1089 = vadd.f32 %v1087, %v1088
    %v1090 = vrot.slane %v1089, 2
    %v1091 = vadd.f32 %v1089, %v1090
    %v1092 = vrot.slane %v1091, 1
    %v1093 = vadd.f32 %v1091, %v1092
    %v1094 = vld [vmem:[%s8] sm:$0xff]
    %v1095 = vld [vmem:[%s8 + $0x8] sm:$0xff]
    %v1096 = vld [vmem:[%s8 + $0x10] sm:$0xff]
    %v1097 = vld [vmem:[%s8 + $0x18] sm:$0xff]
    %v1098 = vld [vmem:[%s8 + $0x20] sm:$0xff]
    %v1099 = vld [vmem:[%s8 + $0x28] sm:$0xff]
    %v1100 = vld [vmem:[%s8 + $0x30] sm:$0xff]
    %v1101 = vld [vmem:[%s8 + $0x38] sm:$0xff]
    %v1102 = vld [vmem:[%s8 + $0x40] sm:$0xff]
    %v1103 = vld [vmem:[%s8 + $0x48] sm:$0xff]
    %v1104 = vld [vmem:[%s8 + $0x50] sm:$0xff]
    %v1105 = vld [vmem:[%s8 + $0x58] sm:$0xff]
    %v1106 = vld [vmem:[%s8 + $0x60] sm:$0xff]
    %v1107 = vld [vmem:[%s8 + $0x68] sm:$0xff]
    %v1108 = vld [vmem:[%s8 + $0x70] sm:$0xff]
    %v1110 = vsel %vm1080, %v1093, 0
    %1112 = vmatprep.subr.mxu0 0.0
    %1113 = vmatpush1.msra.mxu0 %v1094
    %1114 = vmatprep.subr.mxu0 0.0
    %1115 = vmatpush1.msra.mxu0 %v1095
    %1116 = vmatprep.subr.mxu0 0.0
    %1117 = vmatpush1.msra.mxu0 %v1096
    %1118 = vmatprep.subr.mxu0 0.0
    %1119 = vmatpush1.msra.mxu0 %v1097
    %1120 = vmatprep.subr.mxu0 0.0
    %1121 = vmatpush1.msra.mxu0 %v1098
    %1122 = vmatprep.subr.mxu0 0.0
    %1123 = vmatpush1.msra.mxu0 %v1099
    %1124 = vmatprep.subr.mxu0 0.0
    %1125 = vmatpush1.msra.mxu0 %v1100
    %1126 = vmatprep.subr.mxu0 0.0
    %1127 = vmatpush1.msra.mxu0 %v1101
    %1128 = vmatprep.subr.mxu0 0.0
    %1129 = vmatpush1.msra.mxu0 %v1102
    %1130 = vmatprep.subr.mxu0 0.0
    %1131 = vmatpush1.msra.mxu0 %v1103
    %1132 = vmatprep.subr.mxu0 0.0
    %1133 = vmatpush1.msra.mxu0 %v1104
    %1134 = vmatprep.subr.mxu0 0.0
    %1135 = vmatpush1.msra.mxu0 %v1105
    %1136 = vmatprep.subr.mxu0 0.0
    %1137 = vmatpush1.msra.mxu0 %v1106
    %1138 = vmatprep.subr.mxu0 0.0
    %1139 = vmatpush1.msra.mxu0 %v1107
    %1140 = vmatprep.subr.mxu0 0.0
    %1141 = vmatpush1.msra.mxu0 %v1108
    %1142 = vmatprep.subr.mxu0 0.0
    %1143 = vmatpush1.msra.mxu0 0.0
    %1144 = vmatprep.subr.mxu0 0.0
    %1145 = vmatpush1.msra.mxu0 0.0
    %1146 = vmatprep.subr.mxu0 0.0
    %1147 = vmatpush1.msra.mxu0 0.0
    %1148 = vmatprep.subr.mxu0 0.0
    %1149 = vmatpush1.msra.mxu0 0.0
    %1150 = vmatprep.subr.mxu0 0.0
    %1151 = vmatpush1.msra.mxu0 0.0
    %1152 = vmatprep.subr.mxu0 0.0
    %1153 = vmatpush1.msra.mxu0 0.0
    %1154 = vmatprep.subr.mxu0 0.0
    %1155 = vmatpush1.msra.mxu0 0.0
    %1156 = vmatprep.subr.mxu0 0.0
    %1157 = vmatpush1.msra.mxu0 0.0
    %1158 = vmatprep.subr.mxu0 0.0
    %1159 = vmatpush1.msra.mxu0 0.0
    %1160 = vmatprep.subr.mxu0 0.0
    %1161 = vmatpush1.msra.mxu0 0.0
    %1162 = vmatprep.subr.mxu0 0.0
    %1163 = vmatpush1.msra.mxu0 0.0
    %1164 = vmatprep.subr.mxu0 0.0
    %1165 = vmatpush1.msra.mxu0 0.0
    %1166 = vmatprep.subr.mxu0 0.0
    %1167 = vmatpush1.msra.mxu0 0.0
    %1168 = vmatprep.subr.mxu0 0.0
    %1169 = vmatpush1.msra.mxu0 0.0
    %1170 = vmatprep.subr.mxu0 0.0
    %1171 = vmatpush1.msra.mxu0 0.0
    %1172 = vmatprep.subr.mxu0 0.0
    %1173 = vmatpush1.msra.mxu0 0.0
    %1174 = vmatprep.subr.mxu0 0.0
    %1175 = vmatpush1.msra.mxu0 0.0
    %1176 = vmatprep.mubr.f32.mxu0 0.0
    %1177 = vmatmul.mubr.f32.gmra.mrb[0].mxu0 %v1110
    %v1178 = vpop.f32.mrb[0].mxu0
    %v1179 = vadd.f32 0.0, %v1178
    %v1180 = vpop.f32.mrb[0].mxu0
    %1181 = vdwg.mxu0
    %v1182 = vrcp.pop 288.0
    %v1183 = vmul.f32 %v1179, %v1182
    %v1184 = vmul.f32 %v1076, %v1076
    %v1185 = vmul.f32 %v1077, %v1077
    %v1186 = vmul.f32 %v1078, %v1078
    %v1187 = vmul.f32 %v1079, %v1079
    %v1188 = vsel %vm1080, %v1184, 0.0
    %v1189 = vsel %vm1080, %v1185, 0.0
    %v1190 = vadd.f32 %v1188, %v1189
    %v1191 = vsel %vm1080, %v1186, 0.0
    %v1192 = vadd.f32 %v1190, %v1191
    %v1193 = vsel %vm1080, %v1187, 0.0
    %v1194 = vadd.f32 %v1192, %v1193
    %v1195 = vrot.slane %v1194, 4
    %v1196 = vadd.f32 %v1194, %v1195
    %v1197 = vrot.slane %v1196, 2
    %v1198 = vadd.f32 %v1196, %v1197
    %v1199 = vrot.slane %v1198, 1
    %v1200 = vadd.f32 %v1198, %v1199
    %v1202 = vsel %vm1080, %v1200, 0
    %1204 = vmatprep.subr.mxu0 0.0
    %1205 = vmatpush1.msra.mxu0 %v1094
    %1206 = vmatprep.subr.mxu0 0.0
    %1207 = vmatpush1.msra.mxu0 %v1095
    %1208 = vmatprep.subr.mxu0 0.0
    %1209 = vmatpush1.msra.mxu0 %v1096
    %1210 = vmatprep.subr.mxu0 0.0
    %1211 = vmatpush1.msra.mxu0 %v1097
    %1212 = vmatprep.subr.mxu0 0.0
    %1213 = vmatpush1.msra.mxu0 %v1098
    %1214 = vmatprep.subr.mxu0 0.0
    %1215 = vmatpush1.msra.mxu0 %v1099
    %1216 = vmatprep.subr.mxu0 0.0
    %1217 = vmatpush1.msra.mxu0 %v1100
    %1218 = vmatprep.subr.mxu0 0.0
    %1219 = vmatpush1.msra.mxu0 %v1101
    %1220 = vmatprep.subr.mxu0 0.0
    %1221 = vmatpush1.msra.mxu0 %v1102
    %1222 = vmatprep.subr.mxu0 0.0
    %1223 = vmatpush1.msra.mxu0 %v1103
    %1224 = vmatprep.subr.mxu0 0.0
    %1225 = vmatpush1.msra.mxu0 %v1104
    %1226 = vmatprep.subr.mxu0 0.0
    %1227 = vmatpush1.msra.mxu0 %v1105
    %1228 = vmatprep.subr.mxu0 0.0
    %1229 = vmatpush1.msra.mxu0 %v1106
    %1230 = vmatprep.subr.mxu0 0.0
    %1231 = vmatpush1.msra.mxu0 %v1107
    %1232 = vmatprep.subr.mxu0 0.0
    %1233 = vmatpush1.msra.mxu0 %v1108
    %1234 = vmatprep.subr.mxu0 0.0
    %1235 = vmatpush1.msra.mxu0 0.0
    %1236 = vmatprep.subr.mxu0 0.0
    %1237 = vmatpush1.msra.mxu0 0.0
    %1238 = vmatprep.subr.mxu0 0.0
    %1239 = vmatpush1.msra.mxu0 0.0
    %1240 = vmatprep.subr.mxu0 0.0
    %1241 = vmatpush1.msra.mxu0 0.0
    %1242 = vmatprep.subr.mxu0 0.0
    %1243 = vmatpush1.msra.mxu0 0.0
    %1244 = vmatprep.subr.mxu0 0.0
    %1245 = vmatpush1.msra.mxu0 0.0
    %1246 = vmatprep.subr.mxu0 0.0
    %1247 = vmatpush1.msra.mxu0 0.0
    %1248 = vmatprep.subr.mxu0 0.0
    %1249 = vmatpush1.msra.mxu0 0.0
    %1250 = vmatprep.subr.mxu0 0.0
    %1251 = vmatpush1.msra.mxu0 0.0
    %1252 = vmatprep.subr.mxu0 0.0
    %1253 = vmatpush1.msra.mxu0 0.0
    %1254 = vmatprep.subr.mxu0 0.0
    %1255 = vmatpush1.msra.mxu0 0.0
    %1256 = vmatprep.subr.mxu0 0.0
    %1257 = vmatpush1.msra.mxu0 0.0
    %1258 = vmatprep.subr.mxu0 0.0
    %1259 = vmatpush1.msra.mxu0 0.0
    %1260 = vmatprep.subr.mxu0 0.0
    %1261 = vmatpush1.msra.mxu0 0.0
    %1262 = vmatprep.subr.mxu0 0.0
    %1263 = vmatpush1.msra.mxu0 0.0
    %1264 = vmatprep.subr.mxu0 0.0
    %1265 = vmatpush1.msra.mxu0 0.0
    %1266 = vmatprep.subr.mxu0 0.0
    %1267 = vmatpush1.msra.mxu0 0.0
    %1268 = vmatprep.mubr.f32.mxu0 0.0
    %1269 = vmatmul.mubr.f32.gmra.mrb[0].mxu0 %v1202
    %v1270 = vpop.f32.mrb[0].mxu0
    %v1271 = vadd.f32 0.0, %v1270
    %v1272 = vpop.f32.mrb[0].mxu0
    %1273 = vdwg.mxu0
    %v1274 = vmul.f32 %v1271, %v1182
    %v1275 = vmul.f32 %v1183, %v1183
    %v1276 = vsub.f32 %v1274, %v1275
    %v1277 = vlaneseq
    %v1278 = vshrl.u32 %v1277, 7
    %v1279 = vsub.s32 0, %v1278
    %v1280 = vrot.slane %v1183, %v1279
    %v1281 = vsub.f32 %v1060, %v1280
    %v1282 = vsub.f32 %v1061, %v1280
    %v1283 = vsub.f32 %v1062, %v1280
    %v1284 = vsub.f32 %v1063, %v1280
    %v1285 = vadd.f32 %v1276, 1e-05
    %v1286 = vrsqrt.pop %v1285
    %v1287 = vlaneseq
    %v1288 = vshrl.u32 %v1287, 7
    %v1289 = vsub.s32 0, %v1288
    %v1290 = vrot.slane %v1286, %v1289
    %v1291 = vmul.f32 %v1281, %v1290
    %v1292 = vmul.f32 %v1282, %v1290
    %v1293 = vmul.f32 %v1283, %v1290
    %v1294 = vmul.f32 %v1284, %v1290
    %v1295 = vlaneseq
    %v1296 = vshrl.u32 %v1295, 7
    %v1297 = vsub.s32 1, %v1296
    %v1298 = vrot.slane %v36, %v1297
    %v1299 = vmul.f32 %v1291, %v1298
    %v1300 = vmul.f32 %v1292, %v1298
    %v1301 = vmul.f32 %v1293, %v1298
    %v1302 = vmul.f32 %v1294, %v1298
    %v1303 = vlaneseq
    %v1304 = vshrl.u32 %v1303, 7
    %v1305 = vsub.s32 2, %v1304
    %v1306 = vrot.slane %v36, %v1305
    %v1307 = vadd.f32 %v1299, %v1306
    %v1308 = vadd.f32 %v1300, %v1306
    %v1309 = vadd.f32 %v1301, %v1306
    %v1310 = vadd.f32 %v1302, %v1306
    %v1311 = vld [vmem:[%s2] sm:$0xff]
    %v1312 = vld [vmem:[%s2 + $0x8] sm:$0xff]
    %v1313 = vld [vmem:[%s2 + $0x10] sm:$0xff]
    %v1314 = vld [vmem:[%s2 + $0x18] sm:$0xff]
    %v1315 = vld [vmem:[%s2 + $0x20] sm:$0xff]
    %v1316 = vld [vmem:[%s2 + $0x28] sm:$0xff]
    %v1317 = vld [vmem:[%s2 + $0x30] sm:$0xff]
    %v1318 = vld [vmem:[%s2 + $0x38] sm:$0xff]
    %v1319 = vld [vmem:[%s2 + $0x40] sm:$0xff]
    %v1320 = vld [vmem:[%s2 + $0x48] sm:$0xff]
    %v1321 = vld [vmem:[%s2 + $0x50] sm:$0xff]
    %v1322 = vld [vmem:[%s2 + $0x58] sm:$0xff]
    %v1323 = vld [vmem:[%s2 + $0x60] sm:$0xff]
    %v1324 = vld [vmem:[%s2 + $0x68] sm:$0xff]
    %v1325 = vld [vmem:[%s2 + $0x70] sm:$0xff]
    %v1326 = vld [vmem:[%s2 + $0x78] sm:$0xff]
    %v1327 = vld [vmem:[%s2 + $0x80] sm:$0xff]
    %v1328 = vld [vmem:[%s2 + $0x88] sm:$0xff]
    %v1329 = vld [vmem:[%s2 + $0x90] sm:$0xff]
    %v1330 = vld [vmem:[%s2 + $0x98] sm:$0xff]
    %v1331 = vld [vmem:[%s2 + $0xa0] sm:$0xff]
    %v1332 = vld [vmem:[%s2 + $0xa8] sm:$0xff]
    %v1333 = vld [vmem:[%s2 + $0xb0] sm:$0xff]
    %v1334 = vld [vmem:[%s2 + $0xb8] sm:$0xff]
    %v1335 = vld [vmem:[%s2 + $0xc0] sm:$0xff]
    %v1336 = vld [vmem:[%s2 + $0xc8] sm:$0xff]
    %v1337 = vld [vmem:[%s2 + $0xd0] sm:$0xff]
    %v1338 = vld [vmem:[%s2 + $0xd8] sm:$0xff]
    %v1339 = vld [vmem:[%s2 + $0xe0] sm:$0xff]
    %v1340 = vld [vmem:[%s2 + $0xe8] sm:$0xff]
    %v1345 = vrot.slane %v1307, 1
    %v1346 = vrot.slane %v1308, 1
    %v1347 = vsel %vm61, %v1345, %v1346
    %v1348 = vrot.slane %v1309, 1
    %v1349 = vrot.slane %v1310, 1
    %v1350 = vsel %vm61, %v1348, %v1349
    %s1351 = scalar_lea.vmem %s2, 240
    %v1352 = vld [vmem:[%s1351] sm:$0xff]
    %v1353 = vld [vmem:[%s1351 + $0x8] sm:$0xff]
    %v1354 = vld [vmem:[%s1351 + $0x10] sm:$0xff]
    %v1355 = vld [vmem:[%s1351 + $0x18] sm:$0xff]
    %v1356 = vld [vmem:[%s1351 + $0x20] sm:$0xff]
    %v1357 = vld [vmem:[%s1351 + $0x28] sm:$0xff]
    %v1358 = vld [vmem:[%s1351 + $0x30] sm:$0xff]
    %v1359 = vld [vmem:[%s1351 + $0x38] sm:$0xff]
    %v1360 = vld [vmem:[%s1351 + $0x40] sm:$0xff]
    %v1361 = vld [vmem:[%s1351 + $0x48] sm:$0xff]
    %v1362 = vld [vmem:[%s1351 + $0x50] sm:$0xff]
    %v1363 = vld [vmem:[%s1351 + $0x58] sm:$0xff]
    %v1364 = vld [vmem:[%s1351 + $0x60] sm:$0xff]
    %v1365 = vld [vmem:[%s1351 + $0x68] sm:$0xff]
    %v1366 = vld [vmem:[%s1351 + $0x70] sm:$0xff]
    %v1367 = vld [vmem:[%s1351 + $0x78] sm:$0xff]
    %v1368 = vld [vmem:[%s1351 + $0x80] sm:$0xff]
    %v1369 = vld [vmem:[%s1351 + $0x88] sm:$0xff]
    %v1370 = vld [vmem:[%s1351 + $0x90] sm:$0xff]
    %v1371 = vld [vmem:[%s1351 + $0x98] sm:$0xff]
    %v1372 = vld [vmem:[%s1351 + $0xa0] sm:$0xff]
    %v1373 = vld [vmem:[%s1351 + $0xa8] sm:$0xff]
    %v1374 = vld [vmem:[%s1351 + $0xb0] sm:$0xff]
    %v1375 = vld [vmem:[%s1351 + $0xb8] sm:$0xff]
    %v1376 = vld [vmem:[%s1351 + $0xc0] sm:$0xff]
    %v1377 = vld [vmem:[%s1351 + $0xc8] sm:$0xff]
    %v1378 = vld [vmem:[%s1351 + $0xd0] sm:$0xff]
    %v1379 = vld [vmem:[%s1351 + $0xd8] sm:$0xff]
    %v1380 = vld [vmem:[%s1351 + $0xe0] sm:$0xff]
    %v1381 = vld [vmem:[%s1351 + $0xe8] sm:$0xff]
    %v1382 = vsel %vm1080, %v1347, 0
    %v1384 = vsel %vm1080, %v1350, 0
    %1386 = vmatprep.subr.mxu0 %v1353
    %1387 = vmatpush1.msra.mxu0 %v1352
    %1388 = vmatprep.subr.mxu0 %v1355
    %1389 = vmatpush1.msra.mxu0 %v1354
    %1390 = vmatprep.subr.mxu0 %v1357
    %1391 = vmatpush1.msra.mxu0 %v1356
    %1392 = vmatprep.subr.mxu0 %v1359
    %1393 = vmatpush1.msra.mxu0 %v1358
    %1394 = vmatprep.subr.mxu0 %v1361
    %1395 = vmatpush1.msra.mxu0 %v1360
    %1396 = vmatprep.subr.mxu0 %v1363
    %1397 = vmatpush1.msra.mxu0 %v1362
    %1398 = vmatprep.subr.mxu0 %v1365
    %1399 = vmatpush1.msra.mxu0 %v1364
    %1400 = vmatprep.subr.mxu0 %v1367
    %1401 = vmatpush1.msra.mxu0 %v1366
    %1402 = vmatprep.subr.mxu0 %v1369
    %1403 = vmatpush1.msra.mxu0 %v1368
    %1404 = vmatprep.subr.mxu0 %v1371
    %1405 = vmatpush1.msra.mxu0 %v1370
    %1406 = vmatprep.subr.mxu0 %v1373
    %1407 = vmatpush1.msra.mxu0 %v1372
    %1408 = vmatprep.subr.mxu0 %v1375
    %1409 = vmatpush1.msra.mxu0 %v1374
    %1410 = vmatprep.subr.mxu0 %v1377
    %1411 = vmatpush1.msra.mxu0 %v1376
    %1412 = vmatprep.subr.mxu0 %v1379
    %1413 = vmatpush1.msra.mxu0 %v1378
    %1414 = vmatprep.subr.mxu0 %v1381
    %1415 = vmatpush1.msra.mxu0 %v1380
    %1416 = vmatprep.subr.mxu0 0.0
    %1417 = vmatpush1.msra.mxu0 0.0
    %1418 = vmatprep.subr.mxu0 0.0
    %1419 = vmatpush1.msra.mxu0 0.0
    %1420 = vmatprep.subr.mxu0 0.0
    %1421 = vmatpush1.msra.mxu0 0.0
    %1422 = vmatprep.subr.mxu0 0.0
    %1423 = vmatpush1.msra.mxu0 0.0
    %1424 = vmatprep.subr.mxu0 0.0
    %1425 = vmatpush1.msra.mxu0 0.0
    %1426 = vmatprep.subr.mxu0 0.0
    %1427 = vmatpush1.msra.mxu0 0.0
    %1428 = vmatprep.subr.mxu0 0.0
    %1429 = vmatpush1.msra.mxu0 0.0
    %1430 = vmatprep.subr.mxu0 0.0
    %1431 = vmatpush1.msra.mxu0 0.0
    %1432 = vmatprep.subr.mxu0 0.0
    %1433 = vmatpush1.msra.mxu0 0.0
    %1434 = vmatprep.subr.mxu0 0.0
    %1435 = vmatpush1.msra.mxu0 0.0
    %1436 = vmatprep.subr.mxu0 0.0
    %1437 = vmatpush1.msra.mxu0 0.0
    %1438 = vmatprep.subr.mxu0 0.0
    %1439 = vmatpush1.msra.mxu0 0.0
    %1440 = vmatprep.subr.mxu0 0.0
    %1441 = vmatpush1.msra.mxu0 0.0
    %1442 = vmatprep.subr.mxu0 0.0
    %1443 = vmatpush1.msra.mxu0 0.0
    %1444 = vmatprep.subr.mxu0 0.0
    %1445 = vmatpush1.msra.mxu0 0.0
    %1446 = vmatprep.subr.mxu0 0.0
    %1447 = vmatpush1.msra.mxu0 0.0
    %1448 = vmatprep.subr.mxu0 0.0
    %1449 = vmatpush1.msra.mxu0 0.0
    %1450 = vmatprep.mubr.f32.mxu0 0.0
    %1451 = vmatmul.mubr.f32.gmra.mrb[0].mxu0 %v1382
    %v1452 = vpop.f32.mrb[0].mxu0
    %v1453 = vadd.f32 0.0, %v1452
    %v1454 = vpop.f32.mrb[0].mxu0
    %v1455 = vadd.f32 0.0, %v1454
    %1456 = vmatprep.mubr.f32.mxu0 0.0
    %1457 = vmatmul.mubr.f32.gmra.mrb[0].mxu0 %v1384
    %v1458 = vpop.f32.mrb[0].mxu0
    %v1459 = vadd.f32 0.0, %v1458
    %v1460 = vpop.f32.mrb[0].mxu0
    %v1461 = vadd.f32 0.0, %v1460
    %1462 = vdwg.mxu0
    %v1463 = vsel %vm1080, %v1307, 0
    %v1465 = vsel %vm1080, %v1309, 0
    %1467 = vmatprep.subr.mxu0 %v1312
    %1468 = vmatpush1.msra.mxu0 %v1311
    %1469 = vmatprep.subr.mxu0 %v1314
    %1470 = vmatpush1.msra.mxu0 %v1313
    %1471 = vmatprep.subr.mxu0 %v1316
    %1472 = vmatpush1.msra.mxu0 %v1315
    %1473 = vmatprep.subr.mxu0 %v1318
    %1474 = vmatpush1.msra.mxu0 %v1317
    %1475 = vmatprep.subr.mxu0 %v1320
    %1476 = vmatpush1.msra.mxu0 %v1319
    %1477 = vmatprep.subr.mxu0 %v1322
    %1478 = vmatpush1.msra.mxu0 %v1321
    %1479 = vmatprep.subr.mxu0 %v1324
    %1480 = vmatpush1.msra.mxu0 %v1323
    %1481 = vmatprep.subr.mxu0 %v1326
    %1482 = vmatpush1.msra.mxu0 %v1325
    %1483 = vmatprep.subr.mxu0 %v1328
    %1484 = vmatpush1.msra.mxu0 %v1327
    %1485 = vmatprep.subr.mxu0 %v1330
    %1486 = vmatpush1.msra.mxu0 %v1329
    %1487 = vmatprep.subr.mxu0 %v1332
    %1488 = vmatpush1.msra.mxu0 %v1331
    %1489 = vmatprep.subr.mxu0 %v1334
    %1490 = vmatpush1.msra.mxu0 %v1333
    %1491 = vmatprep.subr.mxu0 %v1336
    %1492 = vmatpush1.msra.mxu0 %v1335
    %1493 = vmatprep.subr.mxu0 %v1338
    %1494 = vmatpush1.msra.mxu0 %v1337
    %1495 = vmatprep.subr.mxu0 %v1340
    %1496 = vmatpush1.msra.mxu0 %v1339
    %1497 = vmatprep.subr.mxu0 0.0
    %1498 = vmatpush1.msra.mxu0 0.0
    %1499 = vmatprep.subr.mxu0 0.0
    %1500 = vmatpush1.msra.mxu0 0.0
    %1501 = vmatprep.subr.mxu0 0.0
    %1502 = vmatpush1.msra.mxu0 0.0
    %1503 = vmatprep.subr.mxu0 0.0
    %1504 = vmatpush1.msra.mxu0 0.0
    %1505 = vmatprep.subr.mxu0 0.0
    %1506 = vmatpush1.msra.mxu0 0.0
    %1507 = vmatprep.subr.mxu0 0.0
    %1508 = vmatpush1.msra.mxu0 0.0
    %1509 = vmatprep.subr.mxu0 0.0
    %1510 = vmatpush1.msra.mxu0 0.0
    %1511 = vmatprep.subr.mxu0 0.0
    %1512 = vmatpush1.msra.mxu0 0.0
    %1513 = vmatprep.subr.mxu0 0.0
    %1514 = vmatpush1.msra.mxu0 0.0
    %1515 = vmatprep.subr.mxu0 0.0
    %1516 = vmatpush1.msra.mxu0 0.0
    %1517 = vmatprep.subr.mxu0 0.0
    %1518 = vmatpush1.msra.mxu0 0.0
    %1519 = vmatprep.subr.mxu0 0.0
    %1520 = vmatpush1.msra.mxu0 0.0
    %1521 = vmatprep.subr.mxu0 0.0
    %1522 = vmatpush1.msra.mxu0 0.0
    %1523 = vmatprep.subr.mxu0 0.0
    %1524 = vmatpush1.msra.mxu0 0.0
    %1525 = vmatprep.subr.mxu0 0.0
    %1526 = vmatpush1.msra.mxu0 0.0
    %1527 = vmatprep.subr.mxu0 0.0
    %1528 = vmatpush1.msra.mxu0 0.0
    %1529 = vmatprep.subr.mxu0 0.0
    %1530 = vmatpush1.msra.mxu0 0.0
    %1531 = vmatprep.mubr.f32.mxu0 0.0
    %1532 = vmatmul.mubr.f32.gmra.mrb[0].mxu0 %v1463
    %v1533 = vpop.f32.mrb[0].mxu0
    %v1534 = vadd.f32 %v1453, %v1533
    %v1535 = vpop.f32.mrb[0].mxu0
    %v1536 = vadd.f32 %v1455, %v1535
    %1537 = vmatprep.mubr.f32.mxu0 0.0
    %1538 = vmatmul.mubr.f32.gmra.mrb[0].mxu0 %v1465
    %v1539 = vpop.f32.mrb[0].mxu0
    %v1540 = vadd.f32 %v1459, %v1539
    %v1541 = vpop.f32.mrb[0].mxu0
    %v1542 = vadd.f32 %v1461, %v1541
    %1543 = vdwg.mxu0
    %v1544 = vrot.slane %v1307, 2
    %v1545 = vrot.slane %v1308, 2
    %v1546 = vsel %vm325, %v1544, %v1545
    %v1547 = vrot.slane %v1309, 2
    %v1548 = vrot.slane %v1310, 2
    %v1549 = vsel %vm325, %v1547, %v1548
    %s1550 = scalar_lea.vmem %s2, 480
    %v1551 = vld [vmem:[%s1550] sm:$0xff]
    %v1552 = vld [vmem:[%s1550 + $0x8] sm:$0xff]
    %v1553 = vld [vmem:[%s1550 + $0x10] sm:$0xff]
    %v1554 = vld [vmem:[%s1550 + $0x18] sm:$0xff]
    %v1555 = vld [vmem:[%s1550 + $0x20] sm:$0xff]
    %v1556 = vld [vmem:[%s1550 + $0x28] sm:$0xff]
    %v1557 = vld [vmem:[%s1550 + $0x30] sm:$0xff]
    %v1558 = vld [vmem:[%s1550 + $0x38] sm:$0xff]
    %v1559 = vld [vmem:[%s1550 + $0x40] sm:$0xff]
    %v1560 = vld [vmem:[%s1550 + $0x48] sm:$0xff]
    %v1561 = vld [vmem:[%s1550 + $0x50] sm:$0xff]
    %v1562 = vld [vmem:[%s1550 + $0x58] sm:$0xff]
    %v1563 = vld [vmem:[%s1550 + $0x60] sm:$0xff]
    %v1564 = vld [vmem:[%s1550 + $0x68] sm:$0xff]
    %v1565 = vld [vmem:[%s1550 + $0x70] sm:$0xff]
    %v1566 = vld [vmem:[%s1550 + $0x78] sm:$0xff]
    %v1567 = vld [vmem:[%s1550 + $0x80] sm:$0xff]
    %v1568 = vld [vmem:[%s1550 + $0x88] sm:$0xff]
    %v1569 = vld [vmem:[%s1550 + $0x90] sm:$0xff]
    %v1570 = vld [vmem:[%s1550 + $0x98] sm:$0xff]
    %v1571 = vld [vmem:[%s1550 + $0xa0] sm:$0xff]
    %v1572 = vld [vmem:[%s1550 + $0xa8] sm:$0xff]
    %v1573 = vld [vmem:[%s1550 + $0xb0] sm:$0xff]
    %v1574 = vld [vmem:[%s1550 + $0xb8] sm:$0xff]
    %v1575 = vld [vmem:[%s1550 + $0xc0] sm:$0xff]
    %v1576 = vld [vmem:[%s1550 + $0xc8] sm:$0xff]
    %v1577 = vld [vmem:[%s1550 + $0xd0] sm:$0xff]
    %v1578 = vld [vmem:[%s1550 + $0xd8] sm:$0xff]
    %v1579 = vld [vmem:[%s1550 + $0xe0] sm:$0xff]
    %v1580 = vld [vmem:[%s1550 + $0xe8] sm:$0xff]
    %v1581 = vsel %vm1080, %v1546, 0
    %v1583 = vsel %vm1080, %v1549, 0
    %1585 = vmatprep.subr.mxu0 %v1552
    %1586 = vmatpush1.msra.mxu0 %v1551
    %1587 = vmatprep.subr.mxu0 %v1554
    %1588 = vmatpush1.msra.mxu0 %v1553
    %1589 = vmatprep.subr.mxu0 %v1556
    %1590 = vmatpush1.msra.mxu0 %v1555
    %1591 = vmatprep.subr.mxu0 %v1558
    %1592 = vmatpush1.msra.mxu0 %v1557
    %1593 = vmatprep.subr.mxu0 %v1560
    %1594 = vmatpush1.msra.mxu0 %v1559
    %1595 = vmatprep.subr.mxu0 %v1562
    %1596 = vmatpush1.msra.mxu0 %v1561
    %1597 = vmatprep.subr.mxu0 %v1564
    %1598 = vmatpush1.msra.mxu0 %v1563
    %1599 = vmatprep.subr.mxu0 %v1566
    %1600 = vmatpush1.msra.mxu0 %v1565
    %1601 = vmatprep.subr.mxu0 %v1568
    %1602 = vmatpush1.msra.mxu0 %v1567
    %1603 = vmatprep.subr.mxu0 %v1570
    %1604 = vmatpush1.msra.mxu0 %v1569
    %1605 = vmatprep.subr.mxu0 %v1572
    %1606 = vmatpush1.msra.mxu0 %v1571
    %1607 = vmatprep.subr.mxu0 %v1574
    %1608 = vmatpush1.msra.mxu0 %v1573
    %1609 = vmatprep.subr.mxu0 %v1576
    %1610 = vmatpush1.msra.mxu0 %v1575
    %1611 = vmatprep.subr.mxu0 %v1578
    %1612 = vmatpush1.msra.mxu0 %v1577
    %1613 = vmatprep.subr.mxu0 %v1580
    %1614 = vmatpush1.msra.mxu0 %v1579
    %1615 = vmatprep.subr.mxu0 0.0
    %1616 = vmatpush1.msra.mxu0 0.0
    %1617 = vmatprep.subr.mxu0 0.0
    %1618 = vmatpush1.msra.mxu0 0.0
    %1619 = vmatprep.subr.mxu0 0.0
    %1620 = vmatpush1.msra.mxu0 0.0
    %1621 = vmatprep.subr.mxu0 0.0
    %1622 = vmatpush1.msra.mxu0 0.0
    %1623 = vmatprep.subr.mxu0 0.0
    %1624 = vmatpush1.msra.mxu0 0.0
    %1625 = vmatprep.subr.mxu0 0.0
    %1626 = vmatpush1.msra.mxu0 0.0
    %1627 = vmatprep.subr.mxu0 0.0
    %1628 = vmatpush1.msra.mxu0 0.0
    %1629 = vmatprep.subr.mxu0 0.0
    %1630 = vmatpush1.msra.mxu0 0.0
    %1631 = vmatprep.subr.mxu0 0.0
    %1632 = vmatpush1.msra.mxu0 0.0
    %1633 = vmatprep.subr.mxu0 0.0
    %1634 = vmatpush1.msra.mxu0 0.0
    %1635 = vmatprep.subr.mxu0 0.0
    %1636 = vmatpush1.msra.mxu0 0.0
    %1637 = vmatprep.subr.mxu0 0.0
    %1638 = vmatpush1.msra.mxu0 0.0
    %1639 = vmatprep.subr.mxu0 0.0
    %1640 = vmatpush1.msra.mxu0 0.0
    %1641 = vmatprep.subr.mxu0 0.0
    %1642 = vmatpush1.msra.mxu0 0.0
    %1643 = vmatprep.subr.mxu0 0.0
    %1644 = vmatpush1.msra.mxu0 0.0
    %1645 = vmatprep.subr.mxu0 0.0
    %1646 = vmatpush1.msra.mxu0 0.0
    %1647 = vmatprep.subr.mxu0 0.0
    %1648 = vmatpush1.msra.mxu0 0.0
    %1649 = vmatprep.mubr.f32.mxu0 0.0
    %1650 = vmatmul.mubr.f32.gmra.mrb[0].mxu0 %v1581
    %v1651 = vpop.f32.mrb[0].mxu0
    %v1652 = vadd.f32 0.0, %v1651
    %v1653 = vpop.f32.mrb[0].mxu0
    %v1654 = vadd.f32 0.0, %v1653
    %1655 = vmatprep.mubr.f32.mxu0 0.0
    %1656 = vmatmul.mubr.f32.gmra.mrb[0].mxu0 %v1583
    %v1657 = vpop.f32.mrb[0].mxu0
    %v1658 = vadd.f32 0.0, %v1657
    %v1659 = vpop.f32.mrb[0].mxu0
    %v1660 = vadd.f32 0.0, %v1659
    %1661 = vdwg.mxu0
    %v1662 = vadd.f32 %v1534, %v1652
    %v1663 = vadd.f32 %v1536, %v1654
    %v1664 = vadd.f32 %v1540, %v1658
    %v1665 = vadd.f32 %v1542, %v1660
    %v1666 = vrot.slane %v1307, 3
    %v1667 = vrot.slane %v1308, 3
    %v1668 = vsel %vm480, %v1666, %v1667
    %v1669 = vrot.slane %v1309, 3
    %v1670 = vrot.slane %v1310, 3
    %v1671 = vsel %vm480, %v1669, %v1670
    %s1672 = scalar_lea.vmem %s2, 720
    %v1673 = vld [vmem:[%s1672] sm:$0xff]
    %v1674 = vld [vmem:[%s1672 + $0x8] sm:$0xff]
    %v1675 = vld [vmem:[%s1672 + $0x10] sm:$0xff]
    %v1676 = vld [vmem:[%s1672 + $0x18] sm:$0xff]
    %v1677 = vld [vmem:[%s1672 + $0x20] sm:$0xff]
    %v1678 = vld [vmem:[%s1672 + $0x28] sm:$0xff]
    %v1679 = vld [vmem:[%s1672 + $0x30] sm:$0xff]
    %v1680 = vld [vmem:[%s1672 + $0x38] sm:$0xff]
    %v1681 = vld [vmem:[%s1672 + $0x40] sm:$0xff]
    %v1682 = vld [vmem:[%s1672 + $0x48] sm:$0xff]
    %v1683 = vld [vmem:[%s1672 + $0x50] sm:$0xff]
    %v1684 = vld [vmem:[%s1672 + $0x58] sm:$0xff]
    %v1685 = vld [vmem:[%s1672 + $0x60] sm:$0xff]
    %v1686 = vld [vmem:[%s1672 + $0x68] sm:$0xff]
    %v1687 = vld [vmem:[%s1672 + $0x70] sm:$0xff]
    %v1688 = vld [vmem:[%s1672 + $0x78] sm:$0xff]
    %v1689 = vld [vmem:[%s1672 + $0x80] sm:$0xff]
    %v1690 = vld [vmem:[%s1672 + $0x88] sm:$0xff]
    %v1691 = vld [vmem:[%s1672 + $0x90] sm:$0xff]
    %v1692 = vld [vmem:[%s1672 + $0x98] sm:$0xff]
    %v1693 = vld [vmem:[%s1672 + $0xa0] sm:$0xff]
    %v1694 = vld [vmem:[%s1672 + $0xa8] sm:$0xff]
    %v1695 = vld [vmem:[%s1672 + $0xb0] sm:$0xff]
    %v1696 = vld [vmem:[%s1672 + $0xb8] sm:$0xff]
    %v1697 = vld [vmem:[%s1672 + $0xc0] sm:$0xff]
    %v1698 = vld [vmem:[%s1672 + $0xc8] sm:$0xff]
    %v1699 = vld [vmem:[%s1672 + $0xd0] sm:$0xff]
    %v1700 = vld [vmem:[%s1672 + $0xd8] sm:$0xff]
    %v1701 = vld [vmem:[%s1672 + $0xe0] sm:$0xff]
    %v1702 = vld [vmem:[%s1672 + $0xe8] sm:$0xff]
    %v1703 = vsel %vm1080, %v1668, 0
    %v1705 = vsel %vm1080, %v1671, 0
    %1707 = vmatprep.subr.mxu0 %v1674
    %1708 = vmatpush1.msra.mxu0 %v1673
    %1709 = vmatprep.subr.mxu0 %v1676
    %1710 = vmatpush1.msra.mxu0 %v1675
    %1711 = vmatprep.subr.mxu0 %v1678
    %1712 = vmatpush1.msra.mxu0 %v1677
    %1713 = vmatprep.subr.mxu0 %v1680
    %1714 = vmatpush1.msra.mxu0 %v1679
    %1715 = vmatprep.subr.mxu0 %v1682
    %1716 = vmatpush1.msra.mxu0 %v1681
    %1717 = vmatprep.subr.mxu0 %v1684
    %1718 = vmatpush1.msra.mxu0 %v1683
    %1719 = vmatprep.subr.mxu0 %v1686
    %1720 = vmatpush1.msra.mxu0 %v1685
    %1721 = vmatprep.subr.mxu0 %v1688
    %1722 = vmatpush1.msra.mxu0 %v1687
    %1723 = vmatprep.subr.mxu0 %v1690
    %1724 = vmatpush1.msra.mxu0 %v1689
    %1725 = vmatprep.subr.mxu0 %v1692
    %1726 = vmatpush1.msra.mxu0 %v1691
    %1727 = vmatprep.subr.mxu0 %v1694
    %1728 = vmatpush1.msra.mxu0 %v1693
    %1729 = vmatprep.subr.mxu0 %v1696
    %1730 = vmatpush1.msra.mxu0 %v1695
    %1731 = vmatprep.subr.mxu0 %v1698
    %1732 = vmatpush1.msra.mxu0 %v1697
    %1733 = vmatprep.subr.mxu0 %v1700
    %1734 = vmatpush1.msra.mxu0 %v1699
    %1735 = vmatprep.subr.mxu0 %v1702
    %1736 = vmatpush1.msra.mxu0 %v1701
    %1737 = vmatprep.subr.mxu0 0.0
    %1738 = vmatpush1.msra.mxu0 0.0
    %1739 = vmatprep.subr.mxu0 0.0
    %1740 = vmatpush1.msra.mxu0 0.0
    %1741 = vmatprep.subr.mxu0 0.0
    %1742 = vmatpush1.msra.mxu0 0.0
    %1743 = vmatprep.subr.mxu0 0.0
    %1744 = vmatpush1.msra.mxu0 0.0
    %1745 = vmatprep.subr.mxu0 0.0
    %1746 = vmatpush1.msra.mxu0 0.0
    %1747 = vmatprep.subr.mxu0 0.0
    %1748 = vmatpush1.msra.mxu0 0.0
    %1749 = vmatprep.subr.mxu0 0.0
    %1750 = vmatpush1.msra.mxu0 0.0
    %1751 = vmatprep.subr.mxu0 0.0
    %1752 = vmatpush1.msra.mxu0 0.0
    %1753 = vmatprep.subr.mxu0 0.0
    %1754 = vmatpush1.msra.mxu0 0.0
    %1755 = vmatprep.subr.mxu0 0.0
    %1756 = vmatpush1.msra.mxu0 0.0
    %1757 = vmatprep.subr.mxu0 0.0
    %1758 = vmatpush1.msra.mxu0 0.0
    %1759 = vmatprep.subr.mxu0 0.0
    %1760 = vmatpush1.msra.mxu0 0.0
    %1761 = vmatprep.subr.mxu0 0.0
    %1762 = vmatpush1.msra.mxu0 0.0
    %1763 = vmatprep.subr.mxu0 0.0
    %1764 = vmatpush1.msra.mxu0 0.0
    %1765 = vmatprep.subr.mxu0 0.0
    %1766 = vmatpush1.msra.mxu0 0.0
    %1767 = vmatprep.subr.mxu0 0.0
    %1768 = vmatpush1.msra.mxu0 0.0
    %1769 = vmatprep.subr.mxu0 0.0
    %1770 = vmatpush1.msra.mxu0 0.0
    %1771 = vmatprep.mubr.f32.mxu0 0.0
    %1772 = vmatmul.mubr.f32.gmra.mrb[0].mxu0 %v1703
    %v1773 = vpop.f32.mrb[0].mxu0
    %v1774 = vadd.f32 0.0, %v1773
    %v1775 = vpop.f32.mrb[0].mxu0
    %v1776 = vadd.f32 0.0, %v1775
    %1777 = vmatprep.mubr.f32.mxu0 0.0
    %1778 = vmatmul.mubr.f32.gmra.mrb[0].mxu0 %v1705
    %v1779 = vpop.f32.mrb[0].mxu0
    %v1780 = vadd.f32 0.0, %v1779
    %v1781 = vpop.f32.mrb[0].mxu0
    %v1782 = vadd.f32 0.0, %v1781
    %1783 = vdwg.mxu0
    %v1784 = vadd.f32 %v1662, %v1774
    %v1785 = vadd.f32 %v1663, %v1776
    %v1786 = vadd.f32 %v1664, %v1780
    %v1787 = vadd.f32 %v1665, %v1782
    %v1788 = vrot.slane %v1307, 4
    %v1789 = vrot.slane %v1308, 4
    %v1790 = vsel %vm98, %v1788, %v1789
    %v1791 = vrot.slane %v1309, 4
    %v1792 = vrot.slane %v1310, 4
    %v1793 = vsel %vm98, %v1791, %v1792
    %s1794 = scalar_lea.vmem %s2, 960
    %v1795 = vld [vmem:[%s1794] sm:$0xff]
    %v1796 = vld [vmem:[%s1794 + $0x8] sm:$0xff]
    %v1797 = vld [vmem:[%s1794 + $0x10] sm:$0xff]
    %v1798 = vld [vmem:[%s1794 + $0x18] sm:$0xff]
    %v1799 = vld [vmem:[%s1794 + $0x20] sm:$0xff]
    %v1800 = vld [vmem:[%s1794 + $0x28] sm:$0xff]
    %v1801 = vld [vmem:[%s1794 + $0x30] sm:$0xff]
    %v1802 = vld [vmem:[%s1794 + $0x38] sm:$0xff]
    %v1803 = vld [vmem:[%s1794 + $0x40] sm:$0xff]
    %v1804 = vld [vmem:[%s1794 + $0x48] sm:$0xff]
    %v1805 = vld [vmem:[%s1794 + $0x50] sm:$0xff]
    %v1806 = vld [vmem:[%s1794 + $0x58] sm:$0xff]
    %v1807 = vld [vmem:[%s1794 + $0x60] sm:$0xff]
    %v1808 = vld [vmem:[%s1794 + $0x68] sm:$0xff]
    %v1809 = vld [vmem:[%s1794 + $0x70] sm:$0xff]
    %v1810 = vld [vmem:[%s1794 + $0x78] sm:$0xff]
    %v1811 = vld [vmem:[%s1794 + $0x80] sm:$0xff]
    %v1812 = vld [vmem:[%s1794 + $0x88] sm:$0xff]
    %v1813 = vld [vmem:[%s1794 + $0x90] sm:$0xff]
    %v1814 = vld [vmem:[%s1794 + $0x98] sm:$0xff]
    %v1815 = vld [vmem:[%s1794 + $0xa0] sm:$0xff]
    %v1816 = vld [vmem:[%s1794 + $0xa8] sm:$0xff]
    %v1817 = vld [vmem:[%s1794 + $0xb0] sm:$0xff]
    %v1818 = vld [vmem:[%s1794 + $0xb8] sm:$0xff]
    %v1819 = vld [vmem:[%s1794 + $0xc0] sm:$0xff]
    %v1820 = vld [vmem:[%s1794 + $0xc8] sm:$0xff]
    %v1821 = vld [vmem:[%s1794 + $0xd0] sm:$0xff]
    %v1822 = vld [vmem:[%s1794 + $0xd8] sm:$0xff]
    %v1823 = vld [vmem:[%s1794 + $0xe0] sm:$0xff]
    %v1824 = vld [vmem:[%s1794 + $0xe8] sm:$0xff]
    %v1825 = vsel %vm1080, %v1790, 0
    %v1827 = vsel %vm1080, %v1793, 0
    %1829 = vmatprep.subr.mxu0 %v1796
    %1830 = vmatpush1.msra.mxu0 %v1795
    %1831 = vmatprep.subr.mxu0 %v1798
    %1832 = vmatpush1.msra.mxu0 %v1797
    %1833 = vmatprep.subr.mxu0 %v1800
    %1834 = vmatpush1.msra.mxu0 %v1799
    %1835 = vmatprep.subr.mxu0 %v1802
    %1836 = vmatpush1.msra.mxu0 %v1801
    %1837 = vmatprep.subr.mxu0 %v1804
    %1838 = vmatpush1.msra.mxu0 %v1803
    %1839 = vmatprep.subr.mxu0 %v1806
    %1840 = vmatpush1.msra.mxu0 %v1805
    %1841 = vmatprep.subr.mxu0 %v1808
    %1842 = vmatpush1.msra.mxu0 %v1807
    %1843 = vmatprep.subr.mxu0 %v1810
    %1844 = vmatpush1.msra.mxu0 %v1809
    %1845 = vmatprep.subr.mxu0 %v1812
    %1846 = vmatpush1.msra.mxu0 %v1811
    %1847 = vmatprep.subr.mxu0 %v1814
    %1848 = vmatpush1.msra.mxu0 %v1813
    %1849 = vmatprep.subr.mxu0 %v1816
    %1850 = vmatpush1.msra.mxu0 %v1815
    %1851 = vmatprep.subr.mxu0 %v1818
    %1852 = vmatpush1.msra.mxu0 %v1817
    %1853 = vmatprep.subr.mxu0 %v1820
    %1854 = vmatpush1.msra.mxu0 %v1819
    %1855 = vmatprep.subr.mxu0 %v1822
    %1856 = vmatpush1.msra.mxu0 %v1821
    %1857 = vmatprep.subr.mxu0 %v1824
    %1858 = vmatpush1.msra.mxu0 %v1823
    %1859 = vmatprep.subr.mxu0 0.0
    %1860 = vmatpush1.msra.mxu0 0.0
    %1861 = vmatprep.subr.mxu0 0.0
    %1862 = vmatpush1.msra.mxu0 0.0
    %1863 = vmatprep.subr.mxu0 0.0
    %1864 = vmatpush1.msra.mxu0 0.0
    %1865 = vmatprep.subr.mxu0 0.0
    %1866 = vmatpush1.msra.mxu0 0.0
    %1867 = vmatprep.subr.mxu0 0.0
    %1868 = vmatpush1.msra.mxu0 0.0
    %1869 = vmatprep.subr.mxu0 0.0
    %1870 = vmatpush1.msra.mxu0 0.0
    %1871 = vmatprep.subr.mxu0 0.0
    %1872 = vmatpush1.msra.mxu0 0.0
    %1873 = vmatprep.subr.mxu0 0.0
    %1874 = vmatpush1.msra.mxu0 0.0
    %1875 = vmatprep.subr.mxu0 0.0
    %1876 = vmatpush1.msra.mxu0 0.0
    %1877 = vmatprep.subr.mxu0 0.0
    %1878 = vmatpush1.msra.mxu0 0.0
    %1879 = vmatprep.subr.mxu0 0.0
    %1880 = vmatpush1.msra.mxu0 0.0
    %1881 = vmatprep.subr.mxu0 0.0
    %1882 = vmatpush1.msra.mxu0 0.0
    %1883 = vmatprep.subr.mxu0 0.0
    %1884 = vmatpush1.msra.mxu0 0.0
    %1885 = vmatprep.subr.mxu0 0.0
    %1886 = vmatpush1.msra.mxu0 0.0
    %1887 = vmatprep.subr.mxu0 0.0
    %1888 = vmatpush1.msra.mxu0 0.0
    %1889 = vmatprep.subr.mxu0 0.0
    %1890 = vmatpush1.msra.mxu0 0.0
    %1891 = vmatprep.subr.mxu0 0.0
    %1892 = vmatpush1.msra.mxu0 0.0
    %1893 = vmatprep.mubr.f32.mxu0 0.0
    %1894 = vmatmul.mubr.f32.gmra.mrb[0].mxu0 %v1825
    %v1895 = vpop.f32.mrb[0].mxu0
    %v1896 = vadd.f32 0.0, %v1895
    %v1897 = vpop.f32.mrb[0].mxu0
    %v1898 = vadd.f32 0.0, %v1897
    %1899 = vmatprep.mubr.f32.mxu0 0.0
    %1900 = vmatmul.mubr.f32.gmra.mrb[0].mxu0 %v1827
    %v1901 = vpop.f32.mrb[0].mxu0
    %v1902 = vadd.f32 0.0, %v1901
    %v1903 = vpop.f32.mrb[0].mxu0
    %v1904 = vadd.f32 0.0, %v1903
    %1905 = vdwg.mxu0
    %v1906 = vadd.f32 %v1784, %v1896
    %v1907 = vadd.f32 %v1785, %v1898
    %v1908 = vadd.f32 %v1786, %v1902
    %v1909 = vadd.f32 %v1787, %v1904
    %1914 = vrot.lane.b32.xlu0 %v1906, 48
    %v1915 = vpop.permute.xlu0 %1914
    %1916 = vrot.lane.b32.xlu0 %v1907, 48
    %v1917 = vpop.permute.xlu0 %1916
    %1918 = vrot.lane.b32.xlu0 %v1908, 48
    %v1919 = vpop.permute.xlu0 %1918
    %1920 = vrot.lane.b32.xlu0 %v1909, 48
    %v1921 = vpop.permute.xlu0 %1920
    %v1922 = vsel %vm853, %v1915, %v1917
    %v1923 = vsel %vm853, %v1919, %v1921
    %v1926 = vmax.f32 %v1906, %v1922
    %v1927 = vmax.f32 %v1908, %v1923
    %v1928 = vld [vmem:[%s7] sm:$0xff]
    %s1929 = scalar_lea.vmem %s7, 8
    %v1930 = vld [vmem:[%s1929] sm:$0xff]
    %vm1931 = vcmask 130048
    %v1933 = vsel %vm1931, %v1928, 0
    %1935 = vmatprep.subr.mxu0 0.0
    %1936 = vmatpush1.msra.mxu0 %v1926
    %1937 = vmatprep.subr.mxu0 0.0
    %1938 = vmatpush1.msra.mxu0 %v1927
    %1939 = vmatprep.subr.mxu0 0.0
    %1940 = vmatpush1.msra.mxu0 0.0
    %1941 = vmatprep.subr.mxu0 0.0
    %1942 = vmatpush1.msra.mxu0 0.0
    %1943 = vmatprep.subr.mxu0 0.0
    %1944 = vmatpush1.msra.mxu0 0.0
    %1945 = vmatprep.subr.mxu0 0.0
    %1946 = vmatpush1.msra.mxu0 0.0
    %1947 = vmatprep.subr.mxu0 0.0
    %1948 = vmatpush1.msra.mxu0 0.0
    %1949 = vmatprep.subr.mxu0 0.0
    %1950 = vmatpush1.msra.mxu0 0.0
    %1951 = vmatprep.subr.mxu0 0.0
    %1952 = vmatpush1.msra.mxu0 0.0
    %1953 = vmatprep.subr.mxu0 0.0
    %1954 = vmatpush1.msra.mxu0 0.0
    %1955 = vmatprep.subr.mxu0 0.0
    %1956 = vmatpush1.msra.mxu0 0.0
    %1957 = vmatprep.subr.mxu0 0.0
    %1958 = vmatpush1.msra.mxu0 0.0
    %1959 = vmatprep.subr.mxu0 0.0
    %1960 = vmatpush1.msra.mxu0 0.0
    %1961 = vmatprep.subr.mxu0 0.0
    %1962 = vmatpush1.msra.mxu0 0.0
    %1963 = vmatprep.subr.mxu0 0.0
    %1964 = vmatpush1.msra.mxu0 0.0
    %1965 = vmatprep.subr.mxu0 0.0
    %1966 = vmatpush1.msra.mxu0 0.0
    %1967 = vmatprep.subr.mxu0 0.0
    %1968 = vmatpush1.msra.mxu0 0.0
    %1969 = vmatprep.subr.mxu0 0.0
    %1970 = vmatpush1.msra.mxu0 0.0
    %1971 = vmatprep.subr.mxu0 0.0
    %1972 = vmatpush1.msra.mxu0 0.0
    %1973 = vmatprep.subr.mxu0 0.0
    %1974 = vmatpush1.msra.mxu0 0.0
    %1975 = vmatprep.subr.mxu0 0.0
    %1976 = vmatpush1.msra.mxu0 0.0
    %1977 = vmatprep.subr.mxu0 0.0
    %1978 = vmatpush1.msra.mxu0 0.0
    %1979 = vmatprep.subr.mxu0 0.0
    %1980 = vmatpush1.msra.mxu0 0.0
    %1981 = vmatprep.subr.mxu0 0.0
    %1982 = vmatpush1.msra.mxu0 0.0
    %1983 = vmatprep.subr.mxu0 0.0
    %1984 = vmatpush1.msra.mxu0 0.0
    %1985 = vmatprep.subr.mxu0 0.0
    %1986 = vmatpush1.msra.mxu0 0.0
    %1987 = vmatprep.subr.mxu0 0.0
    %1988 = vmatpush1.msra.mxu0 0.0
    %1989 = vmatprep.subr.mxu0 0.0
    %1990 = vmatpush1.msra.mxu0 0.0
    %1991 = vmatprep.subr.mxu0 0.0
    %1992 = vmatpush1.msra.mxu0 0.0
    %1993 = vmatprep.subr.mxu0 0.0
    %1994 = vmatpush1.msra.mxu0 0.0
    %1995 = vmatprep.subr.mxu0 0.0
    %1996 = vmatpush1.msra.mxu0 0.0
    %1997 = vmatprep.subr.mxu0 0.0
    %1998 = vmatpush1.msra.mxu0 0.0
    %1999 = vmatprep.mubr.f32.mxu0 0.0
    %2000 = vmatmul.mubr.f32.gmra.mrb[0].mxu0 %v1933
    %v2001 = vpop.f32.mrb[0].mxu0
    %v2002 = vadd.f32 0.0, %v2001
    %v2003 = vpop.f32.mrb[0].mxu0
    %2004 = vdwg.mxu0
    %v2006 = vsel %vm1931, %v1930, 0
    %2008 = vmatprep.subr.mxu0 0.0
    %2009 = vmatpush1.msra.mxu0 %v1926
    %2010 = vmatprep.subr.mxu0 0.0
    %2011 = vmatpush1.msra.mxu0 %v1927
    %2012 = vmatprep.subr.mxu0 0.0
    %2013 = vmatpush1.msra.mxu0 0.0
    %2014 = vmatprep.subr.mxu0 0.0
    %2015 = vmatpush1.msra.mxu0 0.0
    %2016 = vmatprep.subr.mxu0 0.0
    %2017 = vmatpush1.msra.mxu0 0.0
    %2018 = vmatprep.subr.mxu0 0.0
    %2019 = vmatpush1.msra.mxu0 0.0
    %2020 = vmatprep.subr.mxu0 0.0
    %2021 = vmatpush1.msra.mxu0 0.0
    %2022 = vmatprep.subr.mxu0 0.0
    %2023 = vmatpush1.msra.mxu0 0.0
    %2024 = vmatprep.subr.mxu0 0.0
    %2025 = vmatpush1.msra.mxu0 0.0
    %2026 = vmatprep.subr.mxu0 0.0
    %2027 = vmatpush1.msra.mxu0 0.0
    %2028 = vmatprep.subr.mxu0 0.0
    %2029 = vmatpush1.msra.mxu0 0.0
    %2030 = vmatprep.subr.mxu0 0.0
    %2031 = vmatpush1.msra.mxu0 0.0
    %2032 = vmatprep.subr.mxu0 0.0
    %2033 = vmatpush1.msra.mxu0 0.0
    %2034 = vmatprep.subr.mxu0 0.0
    %2035 = vmatpush1.msra.mxu0 0.0
    %2036 = vmatprep.subr.mxu0 0.0
    %2037 = vmatpush1.msra.mxu0 0.0
    %2038 = vmatprep.subr.mxu0 0.0
    %2039 = vmatpush1.msra.mxu0 0.0
    %2040 = vmatprep.subr.mxu0 0.0
    %2041 = vmatpush1.msra.mxu0 0.0
    %2042 = vmatprep.subr.mxu0 0.0
    %2043 = vmatpush1.msra.mxu0 0.0
    %2044 = vmatprep.subr.mxu0 0.0
    %2045 = vmatpush1.msra.mxu0 0.0
    %2046 = vmatprep.subr.mxu0 0.0
    %2047 = vmatpush1.msra.mxu0 0.0
    %2048 = vmatprep.subr.mxu0 0.0
    %2049 = vmatpush1.msra.mxu0 0.0
    %2050 = vmatprep.subr.mxu0 0.0
    %2051 = vmatpush1.msra.mxu0 0.0
    %2052 = vmatprep.subr.mxu0 0.0
    %2053 = vmatpush1.msra.mxu0 0.0
    %2054 = vmatprep.subr.mxu0 0.0
    %2055 = vmatpush1.msra.mxu0 0.0
    %2056 = vmatprep.subr.mxu0 0.0
    %2057 = vmatpush1.msra.mxu0 0.0
    %2058 = vmatprep.subr.mxu0 0.0
    %2059 = vmatpush1.msra.mxu0 0.0
    %2060 = vmatprep.subr.mxu0 0.0
    %2061 = vmatpush1.msra.mxu0 0.0
    %2062 = vmatprep.subr.mxu0 0.0
    %2063 = vmatpush1.msra.mxu0 0.0
    %2064 = vmatprep.subr.mxu0 0.0
    %2065 = vmatpush1.msra.mxu0 0.0
    %2066 = vmatprep.subr.mxu0 0.0
    %2067 = vmatpush1.msra.mxu0 0.0
    %2068 = vmatprep.subr.mxu0 0.0
    %2069 = vmatpush1.msra.mxu0 0.0
    %2070 = vmatprep.subr.mxu0 0.0
    %2071 = vmatpush1.msra.mxu0 0.0
    %2072 = vmatprep.mubr.f32.mxu0 0.0
    %2073 = vmatmul.mubr.f32.gmra.mrb[0].mxu0 %v2006
    %v2074 = vpop.f32.mrb[0].mxu0
    %v2075 = vadd.f32 0.0, %v2074
    %v2076 = vpop.f32.mrb[0].mxu0
    %2077 = vdwg.mxu0
    %v2078 = vmax.f32 %v2002, %v2075
    %v2079 = vlaneseq
    %v2080 = vshrl.u32 %v2079, 7
    %v2081 = vsub.s32 3, %v2080
    %v2082 = vrot.slane %v36, %v2081
    %v2083 = vadd.f32 %v2078, %v2082
    %v2084 = vmax.f32 %v2083, 0.0
    %vm2085 = vcmask 654336
    %v2086 = vsel %vm2085, %v2084, 0.0
    %v2087 = vrot.slane %v2086, 4
    %v2088 = vadd.f32 %v2086, %v2087
    %v2089 = vrot.slane %v2088, 2
    %v2090 = vadd.f32 %v2088, %v2089
    %v2091 = vrot.slane %v2090, 1
    %v2092 = vadd.f32 %v2090, %v2091
    %v2093 = vld [vmem:[%s9] sm:$0xff]
    %v2094 = vld [vmem:[%s9 + $0x8] sm:$0xff]
    %v2095 = vld [vmem:[%s9 + $0x10] sm:$0xff]
    %v2096 = vld [vmem:[%s9 + $0x18] sm:$0xff]
    %v2097 = vld [vmem:[%s9 + $0x20] sm:$0xff]
    %v2098 = vld [vmem:[%s9 + $0x28] sm:$0xff]
    %v2099 = vld [vmem:[%s9 + $0x30] sm:$0xff]
    %v2100 = vld [vmem:[%s9 + $0x38] sm:$0xff]
    %v2101 = vld [vmem:[%s9 + $0x40] sm:$0xff]
    %v2102 = vld [vmem:[%s9 + $0x48] sm:$0xff]
    %v2104 = vsel %vm2085, %v2092, 0
    %2106 = vmatprep.subr.mxu0 0.0
    %2107 = vmatpush1.msra.mxu0 %v2093
    %2108 = vmatprep.subr.mxu0 0.0
    %2109 = vmatpush1.msra.mxu0 %v2094
    %2110 = vmatprep.subr.mxu0 0.0
    %2111 = vmatpush1.msra.mxu0 %v2095
    %2112 = vmatprep.subr.mxu0 0.0
    %2113 = vmatpush1.msra.mxu0 %v2096
    %2114 = vmatprep.subr.mxu0 0.0
    %2115 = vmatpush1.msra.mxu0 %v2097
    %2116 = vmatprep.subr.mxu0 0.0
    %2117 = vmatpush1.msra.mxu0 %v2098
    %2118 = vmatprep.subr.mxu0 0.0
    %2119 = vmatpush1.msra.mxu0 %v2099
    %2120 = vmatprep.subr.mxu0 0.0
    %2121 = vmatpush1.msra.mxu0 %v2100
    %2122 = vmatprep.subr.mxu0 0.0
    %2123 = vmatpush1.msra.mxu0 %v2101
    %2124 = vmatprep.subr.mxu0 0.0
    %2125 = vmatpush1.msra.mxu0 %v2102
    %2126 = vmatprep.subr.mxu0 0.0
    %2127 = vmatpush1.msra.mxu0 0.0
    %2128 = vmatprep.subr.mxu0 0.0
    %2129 = vmatpush1.msra.mxu0 0.0
    %2130 = vmatprep.subr.mxu0 0.0
    %2131 = vmatpush1.msra.mxu0 0.0
    %2132 = vmatprep.subr.mxu0 0.0
    %2133 = vmatpush1.msra.mxu0 0.0
    %2134 = vmatprep.subr.mxu0 0.0
    %2135 = vmatpush1.msra.mxu0 0.0
    %2136 = vmatprep.subr.mxu0 0.0
    %2137 = vmatpush1.msra.mxu0 0.0
    %2138 = vmatprep.subr.mxu0 0.0
    %2139 = vmatpush1.msra.mxu0 0.0
    %2140 = vmatprep.subr.mxu0 0.0
    %2141 = vmatpush1.msra.mxu0 0.0
    %2142 = vmatprep.subr.mxu0 0.0
    %2143 = vmatpush1.msra.mxu0 0.0
    %2144 = vmatprep.subr.mxu0 0.0
    %2145 = vmatpush1.msra.mxu0 0.0
    %2146 = vmatprep.subr.mxu0 0.0
    %2147 = vmatpush1.msra.mxu0 0.0
    %2148 = vmatprep.subr.mxu0 0.0
    %2149 = vmatpush1.msra.mxu0 0.0
    %2150 = vmatprep.subr.mxu0 0.0
    %2151 = vmatpush1.msra.mxu0 0.0
    %2152 = vmatprep.subr.mxu0 0.0
    %2153 = vmatpush1.msra.mxu0 0.0
    %2154 = vmatprep.subr.mxu0 0.0
    %2155 = vmatpush1.msra.mxu0 0.0
    %2156 = vmatprep.subr.mxu0 0.0
    %2157 = vmatpush1.msra.mxu0 0.0
    %2158 = vmatprep.subr.mxu0 0.0
    %2159 = vmatpush1.msra.mxu0 0.0
    %2160 = vmatprep.subr.mxu0 0.0
    %2161 = vmatpush1.msra.mxu0 0.0
    %2162 = vmatprep.subr.mxu0 0.0
    %2163 = vmatpush1.msra.mxu0 0.0
    %2164 = vmatprep.subr.mxu0 0.0
    %2165 = vmatpush1.msra.mxu0 0.0
    %2166 = vmatprep.subr.mxu0 0.0
    %2167 = vmatpush1.msra.mxu0 0.0
    %2168 = vmatprep.subr.mxu0 0.0
    %2169 = vmatpush1.msra.mxu0 0.0
    %2170 = vmatprep.mubr.f32.mxu0 0.0
    %2171 = vmatmul.mubr.f32.gmra.mrb[0].mxu0 %v2104
    %v2172 = vpop.f32.mrb[0].mxu0
    %v2173 = vadd.f32 0.0, %v2172
    %v2174 = vpop.f32.mrb[0].mxu0
    %2175 = vdwg.mxu0
    %v2176 = vrcp.pop 32.0
    %v2177 = vmul.f32 %v2173, %v2176
    %v2178 = vmul.f32 %v2084, %v2084
    %v2179 = vsel %vm2085, %v2178, 0.0
    %v2180 = vrot.slane %v2179, 4
    %v2181 = vadd.f32 %v2179, %v2180
    %v2182 = vrot.slane %v2181, 2
    %v2183 = vadd.f32 %v2181, %v2182
    %v2184 = vrot.slane %v2183, 1
    %v2185 = vadd.f32 %v2183, %v2184
    %v2187 = vsel %vm2085, %v2185, 0
    %2189 = vmatprep.subr.mxu0 0.0
    %2190 = vmatpush1.msra.mxu0 %v2093
    %2191 = vmatprep.subr.mxu0 0.0
    %2192 = vmatpush1.msra.mxu0 %v2094
    %2193 = vmatprep.subr.mxu0 0.0
    %2194 = vmatpush1.msra.mxu0 %v2095
    %2195 = vmatprep.subr.mxu0 0.0
    %2196 = vmatpush1.msra.mxu0 %v2096
    %2197 = vmatprep.subr.mxu0 0.0
    %2198 = vmatpush1.msra.mxu0 %v2097
    %2199 = vmatprep.subr.mxu0 0.0
    %2200 = vmatpush1.msra.mxu0 %v2098
    %2201 = vmatprep.subr.mxu0 0.0
    %2202 = vmatpush1.msra.mxu0 %v2099
    %2203 = vmatprep.subr.mxu0 0.0
    %2204 = vmatpush1.msra.mxu0 %v2100
    %2205 = vmatprep.subr.mxu0 0.0
    %2206 = vmatpush1.msra.mxu0 %v2101
    %2207 = vmatprep.subr.mxu0 0.0
    %2208 = vmatpush1.msra.mxu0 %v2102
    %2209 = vmatprep.subr.mxu0 0.0
    %2210 = vmatpush1.msra.mxu0 0.0
    %2211 = vmatprep.subr.mxu0 0.0
    %2212 = vmatpush1.msra.mxu0 0.0
    %2213 = vmatprep.subr.mxu0 0.0
    %2214 = vmatpush1.msra.mxu0 0.0
    %2215 = vmatprep.subr.mxu0 0.0
    %2216 = vmatpush1.msra.mxu0 0.0
    %2217 = vmatprep.subr.mxu0 0.0
    %2218 = vmatpush1.msra.mxu0 0.0
    %2219 = vmatprep.subr.mxu0 0.0
    %2220 = vmatpush1.msra.mxu0 0.0
    %2221 = vmatprep.subr.mxu0 0.0
    %2222 = vmatpush1.msra.mxu0 0.0
    %2223 = vmatprep.subr.mxu0 0.0
    %2224 = vmatpush1.msra.mxu0 0.0
    %2225 = vmatprep.subr.mxu0 0.0
    %2226 = vmatpush1.msra.mxu0 0.0
    %2227 = vmatprep.subr.mxu0 0.0
    %2228 = vmatpush1.msra.mxu0 0.0
    %2229 = vmatprep.subr.mxu0 0.0
    %2230 = vmatpush1.msra.mxu0 0.0
    %2231 = vmatprep.subr.mxu0 0.0
    %2232 = vmatpush1.msra.mxu0 0.0
    %2233 = vmatprep.subr.mxu0 0.0
    %2234 = vmatpush1.msra.mxu0 0.0
    %2235 = vmatprep.subr.mxu0 0.0
    %2236 = vmatpush1.msra.mxu0 0.0
    %2237 = vmatprep.subr.mxu0 0.0
    %2238 = vmatpush1.msra.mxu0 0.0
    %2239 = vmatprep.subr.mxu0 0.0
    %2240 = vmatpush1.msra.mxu0 0.0
    %2241 = vmatprep.subr.mxu0 0.0
    %2242 = vmatpush1.msra.mxu0 0.0
    %2243 = vmatprep.subr.mxu0 0.0
    %2244 = vmatpush1.msra.mxu0 0.0
    %2245 = vmatprep.subr.mxu0 0.0
    %2246 = vmatpush1.msra.mxu0 0.0
    %2247 = vmatprep.subr.mxu0 0.0
    %2248 = vmatpush1.msra.mxu0 0.0
    %2249 = vmatprep.subr.mxu0 0.0
    %2250 = vmatpush1.msra.mxu0 0.0
    %2251 = vmatprep.subr.mxu0 0.0
    %2252 = vmatpush1.msra.mxu0 0.0
    %2253 = vmatprep.mubr.f32.mxu0 0.0
    %2254 = vmatmul.mubr.f32.gmra.mrb[0].mxu0 %v2187
    %v2255 = vpop.f32.mrb[0].mxu0
    %v2256 = vadd.f32 0.0, %v2255
    %v2257 = vpop.f32.mrb[0].mxu0
    %2258 = vdwg.mxu0
    %v2259 = vmul.f32 %v2256, %v2176
    %v2260 = vmul.f32 %v2177, %v2177
    %v2261 = vsub.f32 %v2259, %v2260
    %v2262 = vlaneseq
    %v2263 = vshrl.u32 %v2262, 7
    %v2264 = vsub.s32 0, %v2263
    %v2265 = vrot.slane %v2177, %v2264
    %v2266 = vsub.f32 %v2084, %v2265
    %v2267 = vadd.f32 %v2261, 1e-05
    %v2268 = vrsqrt.pop %v2267
    %v2269 = vlaneseq
    %v2270 = vshrl.u32 %v2269, 7
    %v2271 = vsub.s32 0, %v2270
    %v2272 = vrot.slane %v2268, %v2271
    %v2273 = vmul.f32 %v2266, %v2272
    %v2274 = vlaneseq
    %v2275 = vshrl.u32 %v2274, 7
    %v2276 = vsub.s32 4, %v2275
    %v2277 = vrot.slane %v36, %v2276
    %v2278 = vmul.f32 %v2273, %v2277
    %v2279 = vlaneseq
    %v2280 = vshrl.u32 %v2279, 7
    %v2281 = vsub.s32 5, %v2280
    %v2282 = vrot.slane %v36, %v2281
    %v2283 = vadd.f32 %v2278, %v2282
    %v2284 = vld [vmem:[%s3] sm:$0xff]
    %v2285 = vld [vmem:[%s3 + $0x8] sm:$0xff]
    %v2286 = vld [vmem:[%s3 + $0x10] sm:$0xff]
    %v2287 = vld [vmem:[%s3 + $0x18] sm:$0xff]
    %v2288 = vld [vmem:[%s3 + $0x20] sm:$0xff]
    %v2289 = vld [vmem:[%s3 + $0x28] sm:$0xff]
    %v2290 = vld [vmem:[%s3 + $0x30] sm:$0xff]
    %v2291 = vld [vmem:[%s3 + $0x38] sm:$0xff]
    %v2292 = vld [vmem:[%s3 + $0x40] sm:$0xff]
    %v2293 = vld [vmem:[%s3 + $0x48] sm:$0xff]
    %v2295 = vsel %vm2085, %v2283, 0
    %2297 = vmatprep.subr.mxu0 0.0
    %2298 = vmatpush1.msra.mxu0 %v2284
    %2299 = vmatprep.subr.mxu0 0.0
    %2300 = vmatpush1.msra.mxu0 %v2285
    %2301 = vmatprep.subr.mxu0 0.0
    %2302 = vmatpush1.msra.mxu0 %v2286
    %2303 = vmatprep.subr.mxu0 0.0
    %2304 = vmatpush1.msra.mxu0 %v2287
    %2305 = vmatprep.subr.mxu0 0.0
    %2306 = vmatpush1.msra.mxu0 %v2288
    %2307 = vmatprep.subr.mxu0 0.0
    %2308 = vmatpush1.msra.mxu0 %v2289
    %2309 = vmatprep.subr.mxu0 0.0
    %2310 = vmatpush1.msra.mxu0 %v2290
    %2311 = vmatprep.subr.mxu0 0.0
    %2312 = vmatpush1.msra.mxu0 %v2291
    %2313 = vmatprep.subr.mxu0 0.0
    %2314 = vmatpush1.msra.mxu0 %v2292
    %2315 = vmatprep.subr.mxu0 0.0
    %2316 = vmatpush1.msra.mxu0 %v2293
    %2317 = vmatprep.subr.mxu0 0.0
    %2318 = vmatpush1.msra.mxu0 0.0
    %2319 = vmatprep.subr.mxu0 0.0
    %2320 = vmatpush1.msra.mxu0 0.0
    %2321 = vmatprep.subr.mxu0 0.0
    %2322 = vmatpush1.msra.mxu0 0.0
    %2323 = vmatprep.subr.mxu0 0.0
    %2324 = vmatpush1.msra.mxu0 0.0
    %2325 = vmatprep.subr.mxu0 0.0
    %2326 = vmatpush1.msra.mxu0 0.0
    %2327 = vmatprep.subr.mxu0 0.0
    %2328 = vmatpush1.msra.mxu0 0.0
    %2329 = vmatprep.subr.mxu0 0.0
    %2330 = vmatpush1.msra.mxu0 0.0
    %2331 = vmatprep.subr.mxu0 0.0
    %2332 = vmatpush1.msra.mxu0 0.0
    %2333 = vmatprep.subr.mxu0 0.0
    %2334 = vmatpush1.msra.mxu0 0.0
    %2335 = vmatprep.subr.mxu0 0.0
    %2336 = vmatpush1.msra.mxu0 0.0
    %2337 = vmatprep.subr.mxu0 0.0
    %2338 = vmatpush1.msra.mxu0 0.0
    %2339 = vmatprep.subr.mxu0 0.0
    %2340 = vmatpush1.msra.mxu0 0.0
    %2341 = vmatprep.subr.mxu0 0.0
    %2342 = vmatpush1.msra.mxu0 0.0
    %2343 = vmatprep.subr.mxu0 0.0
    %2344 = vmatpush1.msra.mxu0 0.0
    %2345 = vmatprep.subr.mxu0 0.0
    %2346 = vmatpush1.msra.mxu0 0.0
    %2347 = vmatprep.subr.mxu0 0.0
    %2348 = vmatpush1.msra.mxu0 0.0
    %2349 = vmatprep.subr.mxu0 0.0
    %2350 = vmatpush1.msra.mxu0 0.0
    %2351 = vmatprep.subr.mxu0 0.0
    %2352 = vmatpush1.msra.mxu0 0.0
    %2353 = vmatprep.subr.mxu0 0.0
    %2354 = vmatpush1.msra.mxu0 0.0
    %2355 = vmatprep.subr.mxu0 0.0
    %2356 = vmatpush1.msra.mxu0 0.0
    %2357 = vmatprep.subr.mxu0 0.0
    %2358 = vmatpush1.msra.mxu0 0.0
    %2359 = vmatprep.subr.mxu0 0.0
    %2360 = vmatpush1.msra.mxu0 0.0
    %2361 = vmatprep.mubr.f32.mxu0 0.0
    %2362 = vmatmul.mubr.f32.gmra.mrb[0].mxu0 %v2295
    %v2363 = vpop.f32.mrb[0].mxu0
    %v2364 = vadd.f32 0.0, %v2363
    %v2365 = vpop.f32.mrb[0].mxu0
    %2366 = vdwg.mxu0
    %v2367 = vlaneseq
    %v2368 = vshrl.u32 %v2367, 7
    %v2369 = vsub.s32 6, %v2368
    %v2370 = vrot.slane %v36, %v2369
    %v2371 = vadd.f32 %v2370, %v2364
    %s2372 = scalar_lea.vmem %s3, 80
    %v2373 = vld [vmem:[%s2372] sm:$0xff]
    %v2374 = vld [vmem:[%s2372 + $0x8] sm:$0xff]
    %v2375 = vld [vmem:[%s2372 + $0x10] sm:$0xff]
    %v2376 = vld [vmem:[%s2372 + $0x18] sm:$0xff]
    %v2377 = vld [vmem:[%s2372 + $0x20] sm:$0xff]
    %v2378 = vld [vmem:[%s2372 + $0x28] sm:$0xff]
    %v2379 = vld [vmem:[%s2372 + $0x30] sm:$0xff]
    %v2380 = vld [vmem:[%s2372 + $0x38] sm:$0xff]
    %v2381 = vld [vmem:[%s2372 + $0x40] sm:$0xff]
    %v2382 = vld [vmem:[%s2372 + $0x48] sm:$0xff]
    %v2383 = vrot.slane %v2283, 2
    %v2384 = vsel %vm2085, %v2383, 0
    %2386 = vmatprep.subr.mxu0 0.0
    %2387 = vmatpush1.msra.mxu0 %v2373
    %2388 = vmatprep.subr.mxu0 0.0
    %2389 = vmatpush1.msra.mxu0 %v2374
    %2390 = vmatprep.subr.mxu0 0.0
    %2391 = vmatpush1.msra.mxu0 %v2375
    %2392 = vmatprep.subr.mxu0 0.0
    %2393 = vmatpush1.msra.mxu0 %v2376
    %2394 = vmatprep.subr.mxu0 0.0
    %2395 = vmatpush1.msra.mxu0 %v2377
    %2396 = vmatprep.subr.mxu0 0.0
    %2397 = vmatpush1.msra.mxu0 %v2378
    %2398 = vmatprep.subr.mxu0 0.0
    %2399 = vmatpush1.msra.mxu0 %v2379
    %2400 = vmatprep.subr.mxu0 0.0
    %2401 = vmatpush1.msra.mxu0 %v2380
    %2402 = vmatprep.subr.mxu0 0.0
    %2403 = vmatpush1.msra.mxu0 %v2381
    %2404 = vmatprep.subr.mxu0 0.0
    %2405 = vmatpush1.msra.mxu0 %v2382
    %2406 = vmatprep.subr.mxu0 0.0
    %2407 = vmatpush1.msra.mxu0 0.0
    %2408 = vmatprep.subr.mxu0 0.0
    %2409 = vmatpush1.msra.mxu0 0.0
    %2410 = vmatprep.subr.mxu0 0.0
    %2411 = vmatpush1.msra.mxu0 0.0
    %2412 = vmatprep.subr.mxu0 0.0
    %2413 = vmatpush1.msra.mxu0 0.0
    %2414 = vmatprep.subr.mxu0 0.0
    %2415 = vmatpush1.msra.mxu0 0.0
    %2416 = vmatprep.subr.mxu0 0.0
    %2417 = vmatpush1.msra.mxu0 0.0
    %2418 = vmatprep.subr.mxu0 0.0
    %2419 = vmatpush1.msra.mxu0 0.0
    %2420 = vmatprep.subr.mxu0 0.0
    %2421 = vmatpush1.msra.mxu0 0.0
    %2422 = vmatprep.subr.mxu0 0.0
    %2423 = vmatpush1.msra.mxu0 0.0
    %2424 = vmatprep.subr.mxu0 0.0
    %2425 = vmatpush1.msra.mxu0 0.0
    %2426 = vmatprep.subr.mxu0 0.0
    %2427 = vmatpush1.msra.mxu0 0.0
    %2428 = vmatprep.subr.mxu0 0.0
    %2429 = vmatpush1.msra.mxu0 0.0
    %2430 = vmatprep.subr.mxu0 0.0
    %2431 = vmatpush1.msra.mxu0 0.0
    %2432 = vmatprep.subr.mxu0 0.0
    %2433 = vmatpush1.msra.mxu0 0.0
    %2434 = vmatprep.subr.mxu0 0.0
    %2435 = vmatpush1.msra.mxu0 0.0
    %2436 = vmatprep.subr.mxu0 0.0
    %2437 = vmatpush1.msra.mxu0 0.0
    %2438 = vmatprep.subr.mxu0 0.0
    %2439 = vmatpush1.msra.mxu0 0.0
    %2440 = vmatprep.subr.mxu0 0.0
    %2441 = vmatpush1.msra.mxu0 0.0
    %2442 = vmatprep.subr.mxu0 0.0
    %2443 = vmatpush1.msra.mxu0 0.0
    %2444 = vmatprep.subr.mxu0 0.0
    %2445 = vmatpush1.msra.mxu0 0.0
    %2446 = vmatprep.subr.mxu0 0.0
    %2447 = vmatpush1.msra.mxu0 0.0
    %2448 = vmatprep.subr.mxu0 0.0
    %2449 = vmatpush1.msra.mxu0 0.0
    %2450 = vmatprep.mubr.f32.mxu0 0.0
    %2451 = vmatmul.mubr.f32.gmra.mrb[0].mxu0 %v2384
    %v2452 = vpop.f32.mrb[0].mxu0
    %v2453 = vadd.f32 0.0, %v2452
    %v2454 = vpop.f32.mrb[0].mxu0
    %2455 = vdwg.mxu0
    %v2456 = vadd.f32 %v2371, %v2453
    %s2457 = scalar_lea.vmem %s3, 160
    %v2458 = vld [vmem:[%s2457] sm:$0xff]
    %v2459 = vld [vmem:[%s2457 + $0x8] sm:$0xff]
    %v2460 = vld [vmem:[%s2457 + $0x10] sm:$0xff]
    %v2461 = vld [vmem:[%s2457 + $0x18] sm:$0xff]
    %v2462 = vld [vmem:[%s2457 + $0x20] sm:$0xff]
    %v2463 = vld [vmem:[%s2457 + $0x28] sm:$0xff]
    %v2464 = vld [vmem:[%s2457 + $0x30] sm:$0xff]
    %v2465 = vld [vmem:[%s2457 + $0x38] sm:$0xff]
    %v2466 = vld [vmem:[%s2457 + $0x40] sm:$0xff]
    %v2467 = vld [vmem:[%s2457 + $0x48] sm:$0xff]
    %v2468 = vrot.slane %v2283, 4
    %v2469 = vsel %vm2085, %v2468, 0
    %2471 = vmatprep.subr.mxu0 0.0
    %2472 = vmatpush1.msra.mxu0 %v2458
    %2473 = vmatprep.subr.mxu0 0.0
    %2474 = vmatpush1.msra.mxu0 %v2459
    %2475 = vmatprep.subr.mxu0 0.0
    %2476 = vmatpush1.msra.mxu0 %v2460
    %2477 = vmatprep.subr.mxu0 0.0
    %2478 = vmatpush1.msra.mxu0 %v2461
    %2479 = vmatprep.subr.mxu0 0.0
    %2480 = vmatpush1.msra.mxu0 %v2462
    %2481 = vmatprep.subr.mxu0 0.0
    %2482 = vmatpush1.msra.mxu0 %v2463
    %2483 = vmatprep.subr.mxu0 0.0
    %2484 = vmatpush1.msra.mxu0 %v2464
    %2485 = vmatprep.subr.mxu0 0.0
    %2486 = vmatpush1.msra.mxu0 %v2465
    %2487 = vmatprep.subr.mxu0 0.0
    %2488 = vmatpush1.msra.mxu0 %v2466
    %2489 = vmatprep.subr.mxu0 0.0
    %2490 = vmatpush1.msra.mxu0 %v2467
    %2491 = vmatprep.subr.mxu0 0.0
    %2492 = vmatpush1.msra.mxu0 0.0
    %2493 = vmatprep.subr.mxu0 0.0
    %2494 = vmatpush1.msra.mxu0 0.0
    %2495 = vmatprep.subr.mxu0 0.0
    %2496 = vmatpush1.msra.mxu0 0.0
    %2497 = vmatprep.subr.mxu0 0.0
    %2498 = vmatpush1.msra.mxu0 0.0
    %2499 = vmatprep.subr.mxu0 0.0
    %2500 = vmatpush1.msra.mxu0 0.0
    %2501 = vmatprep.subr.mxu0 0.0
    %2502 = vmatpush1.msra.mxu0 0.0
    %2503 = vmatprep.subr.mxu0 0.0
    %2504 = vmatpush1.msra.mxu0 0.0
    %2505 = vmatprep.subr.mxu0 0.0
    %2506 = vmatpush1.msra.mxu0 0.0
    %2507 = vmatprep.subr.mxu0 0.0
    %2508 = vmatpush1.msra.mxu0 0.0
    %2509 = vmatprep.subr.mxu0 0.0
    %2510 = vmatpush1.msra.mxu0 0.0
    %2511 = vmatprep.subr.mxu0 0.0
    %2512 = vmatpush1.msra.mxu0 0.0
    %2513 = vmatprep.subr.mxu0 0.0
    %2514 = vmatpush1.msra.mxu0 0.0
    %2515 = vmatprep.subr.mxu0 0.0
    %2516 = vmatpush1.msra.mxu0 0.0
    %2517 = vmatprep.subr.mxu0 0.0
    %2518 = vmatpush1.msra.mxu0 0.0
    %2519 = vmatprep.subr.mxu0 0.0
    %2520 = vmatpush1.msra.mxu0 0.0
    %2521 = vmatprep.subr.mxu0 0.0
    %2522 = vmatpush1.msra.mxu0 0.0
    %2523 = vmatprep.subr.mxu0 0.0
    %2524 = vmatpush1.msra.mxu0 0.0
    %2525 = vmatprep.subr.mxu0 0.0
    %2526 = vmatpush1.msra.mxu0 0.0
    %2527 = vmatprep.subr.mxu0 0.0
    %2528 = vmatpush1.msra.mxu0 0.0
    %2529 = vmatprep.subr.mxu0 0.0
    %2530 = vmatpush1.msra.mxu0 0.0
    %2531 = vmatprep.subr.mxu0 0.0
    %2532 = vmatpush1.msra.mxu0 0.0
    %2533 = vmatprep.subr.mxu0 0.0
    %2534 = vmatpush1.msra.mxu0 0.0
    %2535 = vmatprep.mubr.f32.mxu0 0.0
    %2536 = vmatmul.mubr.f32.gmra.mrb[0].mxu0 %v2469
    %v2537 = vpop.f32.mrb[0].mxu0
    %v2538 = vadd.f32 0.0, %v2537
    %v2539 = vpop.f32.mrb[0].mxu0
    %2540 = vdwg.mxu0
    %v2541 = vadd.f32 %v2456, %v2538
    %s2542 = scalar_lea.vmem %s3, 240
    %v2543 = vld [vmem:[%s2542] sm:$0xff]
    %v2544 = vld [vmem:[%s2542 + $0x8] sm:$0xff]
    %v2545 = vld [vmem:[%s2542 + $0x10] sm:$0xff]
    %v2546 = vld [vmem:[%s2542 + $0x18] sm:$0xff]
    %v2547 = vld [vmem:[%s2542 + $0x20] sm:$0xff]
    %v2548 = vld [vmem:[%s2542 + $0x28] sm:$0xff]
    %v2549 = vld [vmem:[%s2542 + $0x30] sm:$0xff]
    %v2550 = vld [vmem:[%s2542 + $0x38] sm:$0xff]
    %v2551 = vld [vmem:[%s2542 + $0x40] sm:$0xff]
    %v2552 = vld [vmem:[%s2542 + $0x48] sm:$0xff]
    %v2553 = vrot.slane %v2283, 6
    %v2554 = vsel %vm2085, %v2553, 0
    %2556 = vmatprep.subr.mxu0 0.0
    %2557 = vmatpush1.msra.mxu0 %v2543
    %2558 = vmatprep.subr.mxu0 0.0
    %2559 = vmatpush1.msra.mxu0 %v2544
    %2560 = vmatprep.subr.mxu0 0.0
    %2561 = vmatpush1.msra.mxu0 %v2545
    %2562 = vmatprep.subr.mxu0 0.0
    %2563 = vmatpush1.msra.mxu0 %v2546
    %2564 = vmatprep.subr.mxu0 0.0
    %2565 = vmatpush1.msra.mxu0 %v2547
    %2566 = vmatprep.subr.mxu0 0.0
    %2567 = vmatpush1.msra.mxu0 %v2548
    %2568 = vmatprep.subr.mxu0 0.0
    %2569 = vmatpush1.msra.mxu0 %v2549
    %2570 = vmatprep.subr.mxu0 0.0
    %2571 = vmatpush1.msra.mxu0 %v2550
    %2572 = vmatprep.subr.mxu0 0.0
    %2573 = vmatpush1.msra.mxu0 %v2551
    %2574 = vmatprep.subr.mxu0 0.0
    %2575 = vmatpush1.msra.mxu0 %v2552
    %2576 = vmatprep.subr.mxu0 0.0
    %2577 = vmatpush1.msra.mxu0 0.0
    %2578 = vmatprep.subr.mxu0 0.0
    %2579 = vmatpush1.msra.mxu0 0.0
    %2580 = vmatprep.subr.mxu0 0.0
    %2581 = vmatpush1.msra.mxu0 0.0
    %2582 = vmatprep.subr.mxu0 0.0
    %2583 = vmatpush1.msra.mxu0 0.0
    %2584 = vmatprep.subr.mxu0 0.0
    %2585 = vmatpush1.msra.mxu0 0.0
    %2586 = vmatprep.subr.mxu0 0.0
    %2587 = vmatpush1.msra.mxu0 0.0
    %2588 = vmatprep.subr.mxu0 0.0
    %2589 = vmatpush1.msra.mxu0 0.0
    %2590 = vmatprep.subr.mxu0 0.0
    %2591 = vmatpush1.msra.mxu0 0.0
    %2592 = vmatprep.subr.mxu0 0.0
    %2593 = vmatpush1.msra.mxu0 0.0
    %2594 = vmatprep.subr.mxu0 0.0
    %2595 = vmatpush1.msra.mxu0 0.0
    %2596 = vmatprep.subr.mxu0 0.0
    %2597 = vmatpush1.msra.mxu0 0.0
    %2598 = vmatprep.subr.mxu0 0.0
    %2599 = vmatpush1.msra.mxu0 0.0
    %2600 = vmatprep.subr.mxu0 0.0
    %2601 = vmatpush1.msra.mxu0 0.0
    %2602 = vmatprep.subr.mxu0 0.0
    %2603 = vmatpush1.msra.mxu0 0.0
    %2604 = vmatprep.subr.mxu0 0.0
    %2605 = vmatpush1.msra.mxu0 0.0
    %2606 = vmatprep.subr.mxu0 0.0
    %2607 = vmatpush1.msra.mxu0 0.0
    %2608 = vmatprep.subr.mxu0 0.0
    %2609 = vmatpush1.msra.mxu0 0.0
    %2610 = vmatprep.subr.mxu0 0.0
    %2611 = vmatpush1.msra.mxu0 0.0
    %2612 = vmatprep.subr.mxu0 0.0
    %2613 = vmatpush1.msra.mxu0 0.0
    %2614 = vmatprep.subr.mxu0 0.0
    %2615 = vmatpush1.msra.mxu0 0.0
    %2616 = vmatprep.subr.mxu0 0.0
    %2617 = vmatpush1.msra.mxu0 0.0
    %2618 = vmatprep.subr.mxu0 0.0
    %2619 = vmatpush1.msra.mxu0 0.0
    %2620 = vmatprep.mubr.f32.mxu0 0.0
    %2621 = vmatmul.mubr.f32.gmra.mrb[0].mxu0 %v2554
    %v2622 = vpop.f32.mrb[0].mxu0
    %v2623 = vadd.f32 0.0, %v2622
    %v2624 = vpop.f32.mrb[0].mxu0
    %2625 = vdwg.mxu0
    %v2626 = vadd.f32 %v2541, %v2623
    %v2627 = vmax.f32 %v2626, 0.0
    %v2628 = vld [vmem:[%s4] sm:$0xff]
    %v2629 = vld [vmem:[%s4 + $0x8] sm:$0xff]
    %v2630 = vld [vmem:[%s4 + $0x10] sm:$0xff]
    %v2631 = vld [vmem:[%s4 + $0x18] sm:$0xff]
    %v2632 = vld [vmem:[%s4 + $0x20] sm:$0xff]
    %v2633 = vld [vmem:[%s4 + $0x28] sm:$0xff]
    %v2634 = vld [vmem:[%s4 + $0x30] sm:$0x3]
    %v2635 = vlaneseq
    %v2636 = vshrl.u32 %v2635, 7
    %v2637 = vsub.s32 7, %v2636
    %v2638 = vrot.slane %v36, %v2637
    %vm2639 = vcmask 408576
    %v2641 = vsel %vm2639, %v2627, 0
    %vm2643 = vcmask 1041408
    %v2645 = vsel %vm2643, %v2634, 0
    %2647 = vmatprep.subr.mxu0 0.0
    %2648 = vmatpush1.msra.mxu0 %v2628
    %2649 = vmatprep.subr.mxu0 0.0
    %2650 = vmatpush1.msra.mxu0 %v2629
    %2651 = vmatprep.subr.mxu0 0.0
    %2652 = vmatpush1.msra.mxu0 %v2630
    %2653 = vmatprep.subr.mxu0 0.0
    %2654 = vmatpush1.msra.mxu0 %v2631
    %2655 = vmatprep.subr.mxu0 0.0
    %2656 = vmatpush1.msra.mxu0 %v2632
    %2657 = vmatprep.subr.mxu0 0.0
    %2658 = vmatpush1.msra.mxu0 %v2633
    %2659 = vmatprep.subr.mxu0 0.0
    %2660 = vmatpush1.msra.mxu0 %v2645
    %2661 = vmatprep.subr.mxu0 0.0
    %2662 = vmatpush1.msra.mxu0 0.0
    %2663 = vmatprep.subr.mxu0 0.0
    %2664 = vmatpush1.msra.mxu0 0.0
    %2665 = vmatprep.subr.mxu0 0.0
    %2666 = vmatpush1.msra.mxu0 0.0
    %2667 = vmatprep.subr.mxu0 0.0
    %2668 = vmatpush1.msra.mxu0 0.0
    %2669 = vmatprep.subr.mxu0 0.0
    %2670 = vmatpush1.msra.mxu0 0.0
    %2671 = vmatprep.subr.mxu0 0.0
    %2672 = vmatpush1.msra.mxu0 0.0
    %2673 = vmatprep.subr.mxu0 0.0
    %2674 = vmatpush1.msra.mxu0 0.0
    %2675 = vmatprep.subr.mxu0 0.0
    %2676 = vmatpush1.msra.mxu0 0.0
    %2677 = vmatprep.subr.mxu0 0.0
    %2678 = vmatpush1.msra.mxu0 0.0
    %2679 = vmatprep.subr.mxu0 0.0
    %2680 = vmatpush1.msra.mxu0 0.0
    %2681 = vmatprep.subr.mxu0 0.0
    %2682 = vmatpush1.msra.mxu0 0.0
    %2683 = vmatprep.subr.mxu0 0.0
    %2684 = vmatpush1.msra.mxu0 0.0
    %2685 = vmatprep.subr.mxu0 0.0
    %2686 = vmatpush1.msra.mxu0 0.0
    %2687 = vmatprep.subr.mxu0 0.0
    %2688 = vmatpush1.msra.mxu0 0.0
    %2689 = vmatprep.subr.mxu0 0.0
    %2690 = vmatpush1.msra.mxu0 0.0
    %2691 = vmatprep.subr.mxu0 0.0
    %2692 = vmatpush1.msra.mxu0 0.0
    %2693 = vmatprep.subr.mxu0 0.0
    %2694 = vmatpush1.msra.mxu0 0.0
    %2695 = vmatprep.subr.mxu0 0.0
    %2696 = vmatpush1.msra.mxu0 0.0
    %2697 = vmatprep.subr.mxu0 0.0
    %2698 = vmatpush1.msra.mxu0 0.0
    %2699 = vmatprep.subr.mxu0 0.0
    %2700 = vmatpush1.msra.mxu0 0.0
    %2701 = vmatprep.subr.mxu0 0.0
    %2702 = vmatpush1.msra.mxu0 0.0
    %2703 = vmatprep.subr.mxu0 0.0
    %2704 = vmatpush1.msra.mxu0 0.0
    %2705 = vmatprep.subr.mxu0 0.0
    %2706 = vmatpush1.msra.mxu0 0.0
    %2707 = vmatprep.subr.mxu0 0.0
    %2708 = vmatpush1.msra.mxu0 0.0
    %2709 = vmatprep.subr.mxu0 0.0
    %2710 = vmatpush1.msra.mxu0 0.0
    %2711 = vmatprep.mubr.f32.mxu0 0.0
    %2712 = vmatmul.mubr.f32.gmra.mrb[0].mxu0 %v2641
    %v2713 = vpop.f32.mrb[0].mxu0
    %v2714 = vadd.f32 %v2638, %v2713
    %v2715 = vpop.f32.mrb[0].mxu0
    %2716 = vdwg.mxu0
    %vm2717 = vcmask 74752
    %v2718 = vsel %vm2717, %v2714, -inf
    %2719 = vmax.xlane.f32.xlu0 %v2718
    %v2720 = vpop.xlane.xlu0 %2719
    %v2721 = vsub.f32 %v2714, %v2720
    %v2722 = vmul.f32 %v2721, 1.442695
    %v2723 = vpow.pop %v2722
    %v2724 = vsel %vm2717, %v2723, 0.0
    %2725 = vadd.xlane.f32.xlu0 %v2724
    %v2726 = vpop.xlane.xlu0 %2725
    %v2727 = vlog2.pop %v2726
    %v2728 = vmul.f32 %v2727, 0.6931472
    %v2729 = vsub.f32 %v2721, %v2728
    %2730 = vst.msk [vmem:[#allocation2] sm:$0x3] %vm2717, %v2729
    // Predicated region
    $region42: #{net_forward.1} parent=1 // pred_check
      _
    $region43: #{net_forward.1} parent=1 // pred_check_branch
      %2732 = sbr.rel (0) target = $region45
    $region44: #{net_forward.1} parent=1 // pred_region
      %s2734 = ssub.s32 32, 32
      %2735 = vsyncadd [#allocation3], %s2734
      %s2737 = sshll.u32 [#allocation2], 4
      %s2738 = int_to_ptr.vmem [resolvable:$true] %s2737
      %2740 = dma.vmem_to_hbm [thread:$0]  %s2738, 32, %s10, [#allocation3]
    $region45: #{net_forward.1} parent=1 // pred_fallthru
      _
    // Predicated region
    $region46: #{net_forward.1} parent=1 // pred_check
      _
    $region47: #{net_forward.1} parent=1 // pred_check_branch
      %2742 = sbr.rel (0) target = $region49
    $region48: #{net_forward.1} parent=1 // pred_region
      %2743 = dma.done [#allocation3], 32
    $region49: #{net_forward.1} parent=1 // pred_fallthru
      _
    %2744 = vsyncpa [#allocation3], 1

</llo_original>
